<compile_context>
chip_gen: v7x
topology: tpu7x:2x2x1
jax: 0.10.0
libtpu: 0.0.40
codegen_flags: <defaults>
</compile_context>

<pallas_src>
import functools
import math

import jax
import jax.numpy as jnp
from jax.experimental import pallas as pl
from jax.experimental.pallas import tpu as pltpu


# rows of the packed per-layer bias/LayerNorm slab
_ROW_BOUT, _ROW_LN1G, _ROW_LN1B, _ROW_BFF1, _ROW_BFF2, _ROW_LN2G, _ROW_LN2B = range(7)
_BIAS_ROWS = 8  # padded to a full sublane group


def _layer_norm(x, g, b, eps):
    mu = jnp.mean(x, axis=-1, keepdims=True)
    xc = x - mu
    var = jnp.mean(xc * xc, axis=-1, keepdims=True)
    return xc * jax.lax.rsqrt(var + eps) * g + b


# ------------------------------ fused kernel --------------------------------

def _fused_encoder_kernel(
    featT_ref,    # (B, Pp, C_feat) bf16   trunk feature map, spatial-major, sublane-padded
    conv_w_ref,   # (S, C_feat)     bf16   trailing Conv2d(C_feat, S, 1) weight
    fc1T_ref,     # (Pp, D)         bf16   GridEmbedding Linear(49->D), transposed + padded
    emb_b_ref,    # (S, D)          f32    folded conv bias + fc1 bias
    wqT_ref,      # (L, H, D, dh)   bf16   per-head Q weight, 1/sqrt(dh) folded in
    wkT_ref,      # (L, H, D, dh)   bf16
    wvT_ref,      # (L, H, D, dh)   bf16
    bqkv_ref,     # (L, H, 3, dh)   f32    per-head q/k/v biases (q scaled)
    woT_ref,      # (L, H, dh, D)   bf16   out-proj split per head
    wff1T_ref,    # (L, D, F)       bf16
    wff2T_ref,    # (L, F, D)       bf16
    bias_ref,     # (L, 8, W)       f32    packed b_out/ln1/b_ff1/b_ff2/ln2 rows
    o_ref,        # (D, B*S)        f32    lane-dense transposed output
    *, eps,
):
    f32 = jnp.float32
    bf16 = jnp.bfloat16

    B, Pp, C = featT_ref.shape
    S = conv_w_ref.shape[0]
    L, H, D, dh = wqT_ref.shape
    F = wff1T_ref.shape[2]
    BS = B * S

    # --- grid_extract tail (1x1 conv, bias folded) + GridEmbedding -----------------
    conv_w = conv_w_ref[...]
    fc1T = fc1T_ref[...]
    emb_b = emb_b_ref[...]
    rows = []
    for b in range(B):
        # t[s, p] = sum_c conv_w[s, c] * feat[b, c, p]
        t = jax.lax.dot_general(conv_w, featT_ref[b], (((1,), (1,)), ((), ())),
                                preferred_element_type=f32)              # (S, Pp)
        rows.append(jnp.dot(t.astype(bf16), fc1T,
                            preferred_element_type=f32) + emb_b)         # (S, D)
    x = jnp.concatenate(rows, axis=0)                                    # (BS, D) f32

    # --- nn.TransformerEncoder: post-norm, relu FFN, dropout=identity --------------
    def layer(l, x):
        wq = wqT_ref[l]          # (H, D, dh)
        wk = wkT_ref[l]
        wv = wvT_ref[l]
        wo = woT_ref[l]          # (H, dh, D)
        bqkv = bqkv_ref[l]       # (H, 3, dh)
        bias = bias_ref[l]       # (8, W)

        x_bf = x.astype(bf16)
        attn = jnp.zeros((BS, D), f32)
        for h in range(H):
            q = jnp.dot(x_bf, wq[h], preferred_element_type=f32) + bqkv[h, 0]  # (BS, dh)
            k = jnp.dot(x_bf, wk[h], preferred_element_type=f32) + bqkv[h, 1]
            v = jnp.dot(x_bf, wv[h], preferred_element_type=f32) + bqkv[h, 2]
            parts = []
            for b in range(B):                       # attention only mixes within a batch
                qb = q[b * S:(b + 1) * S].astype(bf16)
                kb = k[b * S:(b + 1) * S].astype(bf16)
                vb = v[b * S:(b + 1) * S].astype(bf16)
                s = jax.lax.dot_general(qb, kb, (((1,), (1,)), ((), ())),
                                        preferred_element_type=f32)      # (S, S)
                m = jnp.max(s, axis=-1, keepdims=True)
                e = jnp.exp(s - m)
                p = e * pl.reciprocal(jnp.sum(e, axis=-1, keepdims=True), approx=True)
                parts.append(jnp.dot(p.astype(bf16), vb,
                                     preferred_element_type=f32))        # (S, dh)
            ho = jnp.concatenate(parts, axis=0)                          # (BS, dh)
            # head concat folded into out-projection accumulation
            attn = attn + jnp.dot(ho.astype(bf16), wo[h], preferred_element_type=f32)
        attn = attn + bias[_ROW_BOUT, :D]
        x = _layer_norm(x + attn, bias[_ROW_LN1G, :D], bias[_ROW_LN1B, :D], eps)

        h1 = jnp.dot(x.astype(bf16), wff1T_ref[l], preferred_element_type=f32)
        h1 = jnp.maximum(h1 + bias[_ROW_BFF1, :F], 0.0)
        h2 = jnp.dot(h1.astype(bf16), wff2T_ref[l], preferred_element_type=f32)
        h2 = h2 + bias[_ROW_BFF2, :D]
        x = _layer_norm(x + h2, bias[_ROW_LN2G, :D], bias[_ROW_LN2B, :D], eps)
        return x

    x = jax.lax.fori_loop(0, L, layer, x)

    # lane-dense store: last dim = B*S (multiple of 128 when batches are packed)
    o_ref[...] = jnp.transpose(x).astype(o_ref.dtype)


# --------------------------- one-time weight packing -------------------------

def prepare_params(params, num_head):
    """Pack / transpose / cast all weights once (hoisted out of the forward pass)."""
    f32, bf16 = jnp.float32, jnp.bfloat16

    conv_w = params["conv_w"]                    # (S, C_feat)
    fc1_w = params["fc1_w"]                      # (D, P)
    D, P = fc1_w.shape
    Pp = ((P + 7) // 8) * 8                      # sublane pad 49 -> 56
    fc1T = jnp.pad(fc1_w, ((0, 0), (0, Pp - P))).T.astype(bf16)   # (Pp, D)
    # Fold conv bias through the GridEmbedding linear (valid because padded
    # feature rows / fc1 columns are zero past the real P=49):
    emb_b = (params["conv_b"][:, None] * jnp.sum(fc1_w, axis=1)[None, :]
             + params["fc1_b"][None, :]).astype(f32)              # (S, D)

    L = len(params["layers"])
    H = num_head
    dh = D // H
    scale = 1.0 / math.sqrt(dh)
    stack = lambda name: jnp.stack([params["layers"][l][name] for l in range(L)])

    w_in = stack("w_in")                          # (L, 3D, D)
    b_in = stack("b_in")                          # (L, 3D)
    wq = w_in[:, :D].reshape(L, H, dh, D)
    wk = w_in[:, D:2 * D].reshape(L, H, dh, D)
    wv = w_in[:, 2 * D:].reshape(L, H, dh, D)
    wqT = (jnp.transpose(wq, (0, 1, 3, 2)) * scale).astype(bf16)  # scale folded into Q
    wkT = jnp.transpose(wk, (0, 1, 3, 2)).astype(bf16)
    wvT = jnp.transpose(wv, (0, 1, 3, 2)).astype(bf16)
    bq = b_in[:, :D].reshape(L, H, dh) * scale
    bk = b_in[:, D:2 * D].reshape(L, H, dh)
    bv = b_in[:, 2 * D:].reshape(L, H, dh)
    bqkv = jnp.stack([bq, bk, bv], axis=2).astype(f32)            # (L, H, 3, dh)

    w_out = stack("w_out")                         # (L, D, D)
    woT = jnp.transpose(w_out, (0, 2, 1)).reshape(L, H, dh, D).astype(bf16)

    wff1T = jnp.transpose(stack("w_ff1"), (0, 2, 1)).astype(bf16)  # (L, D, F)
    wff2T = jnp.transpose(stack("w_ff2"), (0, 2, 1)).astype(bf16)  # (L, F, D)
    F = wff1T.shape[2]

    W = max(D, F)
    padw = lambda v: jnp.pad(v, ((0, 0), (0, W - v.shape[1])))
    rows = [jnp.zeros((L, W), f32)] * _BIAS_ROWS
    rows[_ROW_BOUT] = padw(stack("b_out"))
    rows[_ROW_LN1G] = padw(stack("ln1_g"))
    rows[_ROW_LN1B] = padw(stack("ln1_b"))
    rows[_ROW_BFF1] = padw(stack("b_ff1"))
    rows[_ROW_BFF2] = padw(stack("b_ff2"))
    rows[_ROW_LN2G] = padw(stack("ln2_g"))
    rows[_ROW_LN2B] = padw(stack("ln2_b"))
    bias = jnp.stack(rows, axis=1).astype(f32)                    # (L, 8, W)

    return {
        "conv_w": conv_w.astype(bf16), "fc1T": fc1T, "emb_b": emb_b,
        "wqT": wqT, "wkT": wkT, "wvT": wvT, "bqkv": bqkv, "woT": woT,
        "wff1T": wff1T, "wff2T": wff2T, "bias": bias,
    }


# ------------------------------ forward wrapper ------------------------------

_IDX0 = {2: lambda i: (0, 0), 3: lambda i: (0, 0, 0), 4: lambda i: (0, 0, 0, 0)}


def transformer_encoder_forward(feat, packed):
    # feat: (B, C_feat, 7, 7) NCHW feature map (stand-in for ResNet-101 trunk output)
    B, C_feat, Hh, Ww = feat.shape
    P = Hh * Ww
    fc1T = packed["fc1T"]
    Pp, D = fc1T.shape
    S = packed["conv_w"].shape[0]

    # input-dependent prep only: spatial-major layout, sublane pad, bf16 cast
    featT = jnp.transpose(feat.reshape(B, C_feat, P), (0, 2, 1))
    featT = jnp.pad(featT, ((0, 0), (0, Pp - P), (0, 0))).astype(jnp.bfloat16)

    args = (featT, packed["conv_w"], fc1T, packed["emb_b"],
            packed["wqT"], packed["wkT"], packed["wvT"], packed["bqkv"],
            packed["woT"], packed["wff1T"], packed["wff2T"], packed["bias"])
    full_spec = lambda a: pl.BlockSpec(a.shape, _IDX0[a.ndim])

    out_t = pl.pallas_call(
        functools.partial(_fused_encoder_kernel, eps=1e-5),
        out_shape=jax.ShapeDtypeStruct((D, B * S), jnp.float32),
        grid=(1,),                                   # batches packed into one step
        in_specs=[full_spec(a) for a in args],
        out_specs=pl.BlockSpec((D, B * S), lambda i: (0, 0)),
        compiler_params=pltpu.CompilerParams(dimension_semantics=("arbitrary",)),
    )(*args)

    # undo the lane-dense transpose (layout plumbing only)
    return jnp.transpose(out_t).reshape(B, S, D)


# ------------------------------- param init ----------------------------------

def init_params(key, c_feat, c_seq, grid_embed_size, num_head, dim_ff, num_layers):
    D = grid_embed_size
    ks = iter(jax.random.split(key, 4 + 6 * num_layers))
    nrm = lambda k, shape: (0.02 * jax.random.normal(k, shape, jnp.float32))
    params = {
        "conv_w": nrm(next(ks), (c_seq, c_feat)),      # Conv2d(C_feat, C_seq, 1) weight
        "conv_b": jnp.zeros((c_seq,), jnp.float32),
        "fc1_w": nrm(next(ks), (D, 49)),               # GridEmbedding Linear(49, D)
        "fc1_b": jnp.zeros((D,), jnp.float32),
        "layers": [],
    }
    for _ in range(num_layers):
        params["layers"].append({
            "w_in": nrm(next(ks), (3 * D, D)),         # MHA in_proj_weight
            "b_in": jnp.zeros((3 * D,), jnp.float32),
            "w_out": nrm(next(ks), (D, D)),            # MHA out_proj
            "b_out": jnp.zeros((D,), jnp.float32),
            "ln1_g": jnp.ones((D,), jnp.float32),
            "ln1_b": jnp.zeros((D,), jnp.float32),
            "w_ff1": nrm(next(ks), (dim_ff, D)),       # linear1
            "b_ff1": jnp.zeros((dim_ff,), jnp.float32),
            "w_ff2": nrm(next(ks), (D, dim_ff)),       # linear2
            "b_ff2": jnp.zeros((D,), jnp.float32),
            "ln2_g": jnp.ones((D,), jnp.float32),
            "ln2_b": jnp.zeros((D,), jnp.float32),
        })
    return params


# ----------------------------------- main -------------------------------------

if __name__ == "__main__":
    # Small, structurally faithful configuration:
    #   C_feat (trunk channels, 2048 -> 256), C_seq (conv out / seq len, 512 -> 64),
    #   grid_embed_size=32, num_head=4, dim_ff (512 -> 64), num_encoder_layer (6 -> 2).
    B, C_FEAT, C_SEQ = 2, 256, 64
    GRID_EMBED, NUM_HEAD, DIM_FF, NUM_LAYERS = 32, 4, 64, 2

    key = jax.random.PRNGKey(0)
    k_feat, k_params = jax.random.split(key)

    feat = jax.random.normal(k_feat, (B, C_FEAT, 7, 7), jnp.float32)  # NCHW feature map
    params = init_params(k_params, C_FEAT, C_SEQ, GRID_EMBED, NUM_HEAD, DIM_FF, NUM_LAYERS)

    packed = prepare_params(params, NUM_HEAD)          # one-time weight packing
    packed = jax.tree_util.tree_map(jax.block_until_ready, packed)

    fwd = jax.jit(transformer_encoder_forward)
    out = jax.block_until_ready(fwd(feat, packed))

    assert out.shape == (B, C_SEQ, GRID_EMBED), out.shape
    assert bool(jnp.all(jnp.isfinite(out)))
    print("KERNEL_OK")
</pallas_src>

<mosaic_0001>
module attributes {stable_mosaic.version = 11 : i64} {
  func.func @_fused_encoder_kernel(%arg0: i32, %arg1: memref<2x56x256xbf16, #tpu.memory_space<vmem>>, %arg2: memref<64x256xbf16, #tpu.memory_space<vmem>>, %arg3: memref<56x32xbf16, #tpu.memory_space<vmem>>, %arg4: memref<64x32xf32, #tpu.memory_space<vmem>>, %arg5: memref<2x4x32x8xbf16, #tpu.memory_space<vmem>>, %arg6: memref<2x4x32x8xbf16, #tpu.memory_space<vmem>>, %arg7: memref<2x4x32x8xbf16, #tpu.memory_space<vmem>>, %arg8: memref<2x4x3x8xf32, #tpu.memory_space<vmem>>, %arg9: memref<2x4x8x32xbf16, #tpu.memory_space<vmem>>, %arg10: memref<2x32x64xbf16, #tpu.memory_space<vmem>>, %arg11: memref<2x64x32xbf16, #tpu.memory_space<vmem>>, %arg12: memref<2x8x64xf32, #tpu.memory_space<vmem>>, %arg13: memref<32x128xf32, #tpu.memory_space<vmem>>) attributes {dimension_semantics = [#tpu.dimension_semantics<arbitrary>], iteration_bounds = array<i64: 1>, scalar_prefetch = 0 : i64, scratch_operands = 0 : i64, tpu.core_type = #tpu.core_type<tc>, window_params = [{pipeline_mode = #tpu.pipeline_mode<synchronous>, transform_indices = @transform_0, window_bounds = array<i64: 2, 56, 256>}, {pipeline_mode = #tpu.pipeline_mode<synchronous>, transform_indices = @transform_1, window_bounds = array<i64: 64, 256>}, {pipeline_mode = #tpu.pipeline_mode<synchronous>, transform_indices = @transform_2, window_bounds = array<i64: 56, 32>}, {pipeline_mode = #tpu.pipeline_mode<synchronous>, transform_indices = @transform_3, window_bounds = array<i64: 64, 32>}, {pipeline_mode = #tpu.pipeline_mode<synchronous>, transform_indices = @transform_4, window_bounds = array<i64: 2, 4, 32, 8>}, {pipeline_mode = #tpu.pipeline_mode<synchronous>, transform_indices = @transform_5, window_bounds = array<i64: 2, 4, 32, 8>}, {pipeline_mode = #tpu.pipeline_mode<synchronous>, transform_indices = @transform_6, window_bounds = array<i64: 2, 4, 32, 8>}, {pipeline_mode = #tpu.pipeline_mode<synchronous>, transform_indices = @transform_7, window_bounds = array<i64: 2, 4, 3, 8>}, {pipeline_mode = #tpu.pipeline_mode<synchronous>, transform_indices = @transform_8, window_bounds = array<i64: 2, 4, 8, 32>}, {pipeline_mode = #tpu.pipeline_mode<synchronous>, transform_indices = @transform_9, window_bounds = array<i64: 2, 32, 64>}, {pipeline_mode = #tpu.pipeline_mode<synchronous>, transform_indices = @transform_10, window_bounds = array<i64: 2, 64, 32>}, {pipeline_mode = #tpu.pipeline_mode<synchronous>, transform_indices = @transform_11, window_bounds = array<i64: 2, 8, 64>}, {pipeline_mode = #tpu.pipeline_mode<synchronous>, transform_indices = @transform_12, window_bounds = array<i64: 32, 128>}]} {
    %c0 = arith.constant 0 : index
    %c0_0 = arith.constant 0 : index
    %0 = vector.load %arg2[%c0, %c0_0] : memref<64x256xbf16, #tpu.memory_space<vmem>>, vector<64x256xbf16>
    %c0_1 = arith.constant 0 : index
    %c0_2 = arith.constant 0 : index
    %1 = vector.load %arg3[%c0_1, %c0_2] : memref<56x32xbf16, #tpu.memory_space<vmem>>, vector<56x32xbf16>
    %c0_3 = arith.constant 0 : index
    %c0_4 = arith.constant 0 : index
    %2 = vector.load %arg4[%c0_3, %c0_4] : memref<64x32xf32, #tpu.memory_space<vmem>>, vector<64x32xf32>
    %c0_5 = arith.constant 0 : index
    %c0_6 = arith.constant 0 : index
    %c0_7 = arith.constant 0 : index
    %3 = vector.load %arg1[%c0_5, %c0_6, %c0_7] : memref<2x56x256xbf16, #tpu.memory_space<vmem>>, vector<1x56x256xbf16>
    %4 = vector.shape_cast %3 : vector<1x56x256xbf16> to vector<56x256xbf16>
    %cst = arith.constant dense<0.000000e+00> : vector<64x56xf32>
    %5 = tpu.matmul %0, %4, %cst {dimension_numbers = #tpu.dot_dimension_numbers<[1], [1], [0], [0], [0, 0, 1, 0], [], []>} : vector<64x256xbf16>, vector<56x256xbf16>, vector<64x56xf32> -> vector<64x56xf32>
    %6 = arith.truncf %5 : vector<64x56xf32> to vector<64x56xbf16>
    %cst_8 = arith.constant dense<0.000000e+00> : vector<64x32xf32>
    %7 = tpu.matmul %6, %1, %cst_8 {dimension_numbers = #tpu.dot_dimension_numbers<[1], [0], [0], [1], [0, 0, 1, 1], [], []>} : vector<64x56xbf16>, vector<56x32xbf16>, vector<64x32xf32> -> vector<64x32xf32>
    %8 = arith.addf %7, %2 : vector<64x32xf32>
    %c1 = arith.constant 1 : index
    %c0_9 = arith.constant 0 : index
    %c0_10 = arith.constant 0 : index
    %9 = vector.load %arg1[%c1, %c0_9, %c0_10] : memref<2x56x256xbf16, #tpu.memory_space<vmem>>, vector<1x56x256xbf16>
    %10 = vector.shape_cast %9 : vector<1x56x256xbf16> to vector<56x256xbf16>
    %cst_11 = arith.constant dense<0.000000e+00> : vector<64x56xf32>
    %11 = tpu.matmul %0, %10, %cst_11 {dimension_numbers = #tpu.dot_dimension_numbers<[1], [1], [0], [0], [0, 0, 1, 0], [], []>} : vector<64x256xbf16>, vector<56x256xbf16>, vector<64x56xf32> -> vector<64x56xf32>
    %12 = arith.truncf %11 : vector<64x56xf32> to vector<64x56xbf16>
    %cst_12 = arith.constant dense<0.000000e+00> : vector<64x32xf32>
    %13 = tpu.matmul %12, %1, %cst_12 {dimension_numbers = #tpu.dot_dimension_numbers<[1], [0], [0], [1], [0, 0, 1, 1], [], []>} : vector<64x56xbf16>, vector<56x32xbf16>, vector<64x32xf32> -> vector<64x32xf32>
    %14 = arith.addf %13, %2 : vector<64x32xf32>
    %15 = tpu.concatenate %8, %14 in 0 : vector<64x32xf32>, vector<64x32xf32> -> vector<128x32xf32>
    %c0_i32 = arith.constant 0 : i32
    %c2_i32 = arith.constant 2 : i32
    %16 = arith.addi %c0_i32, %c2_i32 : i32
    %c1_i32 = arith.constant 1 : i32
    %17 = scf.for %arg14 = %c0_i32 to %16 step %c1_i32 iter_args(%arg15 = %15) -> (vector<128x32xf32>)  : i32 {
      %20 = arith.index_cast %arg14 : i32 to index
      %c0_16 = arith.constant 0 : index
      %c0_17 = arith.constant 0 : index
      %c0_18 = arith.constant 0 : index
      %21 = vector.load %arg5[%20, %c0_16, %c0_17, %c0_18] : memref<2x4x32x8xbf16, #tpu.memory_space<vmem>>, vector<1x4x32x8xbf16>
      %22 = vector.shape_cast %21 : vector<1x4x32x8xbf16> to vector<4x32x8xbf16>
      %23 = arith.index_cast %arg14 : i32 to index
      %c0_19 = arith.constant 0 : index
      %c0_20 = arith.constant 0 : index
      %c0_21 = arith.constant 0 : index
      %24 = vector.load %arg6[%23, %c0_19, %c0_20, %c0_21] : memref<2x4x32x8xbf16, #tpu.memory_space<vmem>>, vector<1x4x32x8xbf16>
      %25 = vector.shape_cast %24 : vector<1x4x32x8xbf16> to vector<4x32x8xbf16>
      %26 = arith.index_cast %arg14 : i32 to index
      %c0_22 = arith.constant 0 : index
      %c0_23 = arith.constant 0 : index
      %c0_24 = arith.constant 0 : index
      %27 = vector.load %arg7[%26, %c0_22, %c0_23, %c0_24] : memref<2x4x32x8xbf16, #tpu.memory_space<vmem>>, vector<1x4x32x8xbf16>
      %28 = vector.shape_cast %27 : vector<1x4x32x8xbf16> to vector<4x32x8xbf16>
      %29 = arith.index_cast %arg14 : i32 to index
      %c0_25 = arith.constant 0 : index
      %c0_26 = arith.constant 0 : index
      %c0_27 = arith.constant 0 : index
      %30 = vector.load %arg9[%29, %c0_25, %c0_26, %c0_27] : memref<2x4x8x32xbf16, #tpu.memory_space<vmem>>, vector<1x4x8x32xbf16>
      %31 = vector.shape_cast %30 : vector<1x4x8x32xbf16> to vector<4x8x32xbf16>
      %32 = arith.index_cast %arg14 : i32 to index
      %c0_28 = arith.constant 0 : index
      %c0_29 = arith.constant 0 : index
      %c0_30 = arith.constant 0 : index
      %33 = vector.load %arg8[%32, %c0_28, %c0_29, %c0_30] : memref<2x4x3x8xf32, #tpu.memory_space<vmem>>, vector<1x4x3x8xf32>
      %34 = vector.shape_cast %33 : vector<1x4x3x8xf32> to vector<4x3x8xf32>
      %35 = arith.index_cast %arg14 : i32 to index
      %c0_31 = arith.constant 0 : index
      %c0_32 = arith.constant 0 : index
      %36 = vector.load %arg12[%35, %c0_31, %c0_32] : memref<2x8x64xf32, #tpu.memory_space<vmem>>, vector<1x8x64xf32>
      %37 = vector.shape_cast %36 : vector<1x8x64xf32> to vector<8x64xf32>
      %38 = arith.truncf %arg15 : vector<128x32xf32> to vector<128x32xbf16>
      %cst_33 = arith.constant 0.000000e+00 : f32
      %39 = vector.broadcast %cst_33 : f32 to vector<128x32xf32>
      %40 = vector.extract_strided_slice %22 {offsets = [0, 0, 0], sizes = [1, 32, 8], strides = [1, 1, 1]} : vector<4x32x8xbf16> to vector<1x32x8xbf16>
      %41 = vector.shape_cast %40 : vector<1x32x8xbf16> to vector<32x8xbf16>
      %cst_34 = arith.constant dense<0.000000e+00> : vector<128x8xf32>
      %42 = tpu.matmul %38, %41, %cst_34 {dimension_numbers = #tpu.dot_dimension_numbers<[1], [0], [0], [1], [0, 0, 1, 1], [], []>} : vector<128x32xbf16>, vector<32x8xbf16>, vector<128x8xf32> -> vector<128x8xf32>
      %43 = vector.extract_strided_slice %34 {offsets = [0, 0, 0], sizes = [1, 1, 8], strides = [1, 1, 1]} : vector<4x3x8xf32> to vector<1x1x8xf32>
      %44 = vector.shape_cast %43 : vector<1x1x8xf32> to vector<8xf32>
      %45 = vector.shape_cast %44 : vector<8xf32> to vector<1x8xf32>
      %46 = vector.broadcast %45 : vector<1x8xf32> to vector<128x8xf32>
      %47 = arith.addf %42, %46 : vector<128x8xf32>
      %48 = vector.extract_strided_slice %25 {offsets = [0, 0, 0], sizes = [1, 32, 8], strides = [1, 1, 1]} : vector<4x32x8xbf16> to vector<1x32x8xbf16>
      %49 = vector.shape_cast %48 : vector<1x32x8xbf16> to vector<32x8xbf16>
      %cst_35 = arith.constant dense<0.000000e+00> : vector<128x8xf32>
      %50 = tpu.matmul %38, %49, %cst_35 {dimension_numbers = #tpu.dot_dimension_numbers<[1], [0], [0], [1], [0, 0, 1, 1], [], []>} : vector<128x32xbf16>, vector<32x8xbf16>, vector<128x8xf32> -> vector<128x8xf32>
      %51 = vector.extract_strided_slice %34 {offsets = [0, 1, 0], sizes = [1, 1, 8], strides = [1, 1, 1]} : vector<4x3x8xf32> to vector<1x1x8xf32>
      %52 = vector.shape_cast %51 : vector<1x1x8xf32> to vector<8xf32>
      %53 = vector.shape_cast %52 : vector<8xf32> to vector<1x8xf32>
      %54 = vector.broadcast %53 : vector<1x8xf32> to vector<128x8xf32>
      %55 = arith.addf %50, %54 : vector<128x8xf32>
      %56 = vector.extract_strided_slice %28 {offsets = [0, 0, 0], sizes = [1, 32, 8], strides = [1, 1, 1]} : vector<4x32x8xbf16> to vector<1x32x8xbf16>
      %57 = vector.shape_cast %56 : vector<1x32x8xbf16> to vector<32x8xbf16>
      %cst_36 = arith.constant dense<0.000000e+00> : vector<128x8xf32>
      %58 = tpu.matmul %38, %57, %cst_36 {dimension_numbers = #tpu.dot_dimension_numbers<[1], [0], [0], [1], [0, 0, 1, 1], [], []>} : vector<128x32xbf16>, vector<32x8xbf16>, vector<128x8xf32> -> vector<128x8xf32>
      %59 = vector.extract_strided_slice %34 {offsets = [0, 2, 0], sizes = [1, 1, 8], strides = [1, 1, 1]} : vector<4x3x8xf32> to vector<1x1x8xf32>
      %60 = vector.shape_cast %59 : vector<1x1x8xf32> to vector<8xf32>
      %61 = vector.shape_cast %60 : vector<8xf32> to vector<1x8xf32>
      %62 = vector.broadcast %61 : vector<1x8xf32> to vector<128x8xf32>
      %63 = arith.addf %58, %62 : vector<128x8xf32>
      %64 = vector.extract_strided_slice %47 {offsets = [0, 0], sizes = [64, 8], strides = [1, 1]} : vector<128x8xf32> to vector<64x8xf32>
      %65 = arith.truncf %64 : vector<64x8xf32> to vector<64x8xbf16>
      %66 = vector.extract_strided_slice %55 {offsets = [0, 0], sizes = [64, 8], strides = [1, 1]} : vector<128x8xf32> to vector<64x8xf32>
      %67 = arith.truncf %66 : vector<64x8xf32> to vector<64x8xbf16>
      %68 = vector.extract_strided_slice %63 {offsets = [0, 0], sizes = [64, 8], strides = [1, 1]} : vector<128x8xf32> to vector<64x8xf32>
      %69 = arith.truncf %68 : vector<64x8xf32> to vector<64x8xbf16>
      %cst_37 = arith.constant dense<0.000000e+00> : vector<64x64xf32>
      %70 = tpu.matmul %65, %67, %cst_37 {dimension_numbers = #tpu.dot_dimension_numbers<[1], [1], [0], [0], [0, 0, 1, 0], [], []>} : vector<64x8xbf16>, vector<64x8xbf16>, vector<64x64xf32> -> vector<64x64xf32>
      %cst_38 = arith.constant dense<0xFF800000> : vector<64xf32>
      %71 = vector.multi_reduction <maximumf>, %70, %cst_38 [1] : vector<64x64xf32> to vector<64xf32>
      %72 = vector.shape_cast %71 : vector<64xf32> to vector<64x1xf32>
      %73 = vector.broadcast %72 : vector<64x1xf32> to vector<64x64xf32>
      %74 = arith.subf %70, %73 : vector<64x64xf32>
      %75 = math.exp %74 : vector<64x64xf32>
      %cst_39 = arith.constant dense<0.000000e+00> : vector<64xf32>
      %76 = vector.multi_reduction <add>, %75, %cst_39 [1] : vector<64x64xf32> to vector<64xf32>
      %77 = vector.shape_cast %76 : vector<64xf32> to vector<64x1xf32>
      %78 = tpu.reciprocal %77 {approx = true} : vector<64x1xf32> -> vector<64x1xf32>
      %79 = vector.broadcast %78 : vector<64x1xf32> to vector<64x64xf32>
      %80 = arith.mulf %75, %79 : vector<64x64xf32>
      %81 = arith.truncf %80 : vector<64x64xf32> to vector<64x64xbf16>
      %cst_40 = arith.constant dense<0.000000e+00> : vector<64x8xf32>
      %82 = tpu.matmul %81, %69, %cst_40 {dimension_numbers = #tpu.dot_dimension_numbers<[1], [0], [0], [1], [0, 0, 1, 1], [], []>} : vector<64x64xbf16>, vector<64x8xbf16>, vector<64x8xf32> -> vector<64x8xf32>
      %83 = vector.extract_strided_slice %47 {offsets = [64, 0], sizes = [64, 8], strides = [1, 1]} : vector<128x8xf32> to vector<64x8xf32>
      %84 = arith.truncf %83 : vector<64x8xf32> to vector<64x8xbf16>
      %85 = vector.extract_strided_slice %55 {offsets = [64, 0], sizes = [64, 8], strides = [1, 1]} : vector<128x8xf32> to vector<64x8xf32>
      %86 = arith.truncf %85 : vector<64x8xf32> to vector<64x8xbf16>
      %87 = vector.extract_strided_slice %63 {offsets = [64, 0], sizes = [64, 8], strides = [1, 1]} : vector<128x8xf32> to vector<64x8xf32>
      %88 = arith.truncf %87 : vector<64x8xf32> to vector<64x8xbf16>
      %cst_41 = arith.constant dense<0.000000e+00> : vector<64x64xf32>
      %89 = tpu.matmul %84, %86, %cst_41 {dimension_numbers = #tpu.dot_dimension_numbers<[1], [1], [0], [0], [0, 0, 1, 0], [], []>} : vector<64x8xbf16>, vector<64x8xbf16>, vector<64x64xf32> -> vector<64x64xf32>
      %cst_42 = arith.constant dense<0xFF800000> : vector<64xf32>
      %90 = vector.multi_reduction <maximumf>, %89, %cst_42 [1] : vector<64x64xf32> to vector<64xf32>
      %91 = vector.shape_cast %90 : vector<64xf32> to vector<64x1xf32>
      %92 = vector.broadcast %91 : vector<64x1xf32> to vector<64x64xf32>
      %93 = arith.subf %89, %92 : vector<64x64xf32>
      %94 = math.exp %93 : vector<64x64xf32>
      %cst_43 = arith.constant dense<0.000000e+00> : vector<64xf32>
      %95 = vector.multi_reduction <add>, %94, %cst_43 [1] : vector<64x64xf32> to vector<64xf32>
      %96 = vector.shape_cast %95 : vector<64xf32> to vector<64x1xf32>
      %97 = tpu.reciprocal %96 {approx = true} : vector<64x1xf32> -> vector<64x1xf32>
      %98 = vector.broadcast %97 : vector<64x1xf32> to vector<64x64xf32>
      %99 = arith.mulf %94, %98 : vector<64x64xf32>
      %100 = arith.truncf %99 : vector<64x64xf32> to vector<64x64xbf16>
      %cst_44 = arith.constant dense<0.000000e+00> : vector<64x8xf32>
      %101 = tpu.matmul %100, %88, %cst_44 {dimension_numbers = #tpu.dot_dimension_numbers<[1], [0], [0], [1], [0, 0, 1, 1], [], []>} : vector<64x64xbf16>, vector<64x8xbf16>, vector<64x8xf32> -> vector<64x8xf32>
      %102 = tpu.concatenate %82, %101 in 0 : vector<64x8xf32>, vector<64x8xf32> -> vector<128x8xf32>
      %103 = arith.truncf %102 : vector<128x8xf32> to vector<128x8xbf16>
      %104 = vector.extract_strided_slice %31 {offsets = [0, 0, 0], sizes = [1, 8, 32], strides = [1, 1, 1]} : vector<4x8x32xbf16> to vector<1x8x32xbf16>
      %105 = vector.shape_cast %104 : vector<1x8x32xbf16> to vector<8x32xbf16>
      %cst_45 = arith.constant dense<0.000000e+00> : vector<128x32xf32>
      %106 = tpu.matmul %103, %105, %cst_45 {dimension_numbers = #tpu.dot_dimension_numbers<[1], [0], [0], [1], [0, 0, 1, 1], [], []>} : vector<128x8xbf16>, vector<8x32xbf16>, vector<128x32xf32> -> vector<128x32xf32>
      %107 = arith.addf %39, %106 : vector<128x32xf32>
      %108 = vector.extract_strided_slice %22 {offsets = [1, 0, 0], sizes = [1, 32, 8], strides = [1, 1, 1]} : vector<4x32x8xbf16> to vector<1x32x8xbf16>
      %109 = vector.shape_cast %108 : vector<1x32x8xbf16> to vector<32x8xbf16>
      %cst_46 = arith.constant dense<0.000000e+00> : vector<128x8xf32>
      %110 = tpu.matmul %38, %109, %cst_46 {dimension_numbers = #tpu.dot_dimension_numbers<[1], [0], [0], [1], [0, 0, 1, 1], [], []>} : vector<128x32xbf16>, vector<32x8xbf16>, vector<128x8xf32> -> vector<128x8xf32>
      %111 = vector.extract_strided_slice %34 {offsets = [1, 0, 0], sizes = [1, 1, 8], strides = [1, 1, 1]} : vector<4x3x8xf32> to vector<1x1x8xf32>
      %112 = vector.shape_cast %111 : vector<1x1x8xf32> to vector<8xf32>
      %113 = vector.shape_cast %112 : vector<8xf32> to vector<1x8xf32>
      %114 = vector.broadcast %113 : vector<1x8xf32> to vector<128x8xf32>
      %115 = arith.addf %110, %114 : vector<128x8xf32>
      %116 = vector.extract_strided_slice %25 {offsets = [1, 0, 0], sizes = [1, 32, 8], strides = [1, 1, 1]} : vector<4x32x8xbf16> to vector<1x32x8xbf16>
      %117 = vector.shape_cast %116 : vector<1x32x8xbf16> to vector<32x8xbf16>
      %cst_47 = arith.constant dense<0.000000e+00> : vector<128x8xf32>
      %118 = tpu.matmul %38, %117, %cst_47 {dimension_numbers = #tpu.dot_dimension_numbers<[1], [0], [0], [1], [0, 0, 1, 1], [], []>} : vector<128x32xbf16>, vector<32x8xbf16>, vector<128x8xf32> -> vector<128x8xf32>
      %119 = vector.extract_strided_slice %34 {offsets = [1, 1, 0], sizes = [1, 1, 8], strides = [1, 1, 1]} : vector<4x3x8xf32> to vector<1x1x8xf32>
      %120 = vector.shape_cast %119 : vector<1x1x8xf32> to vector<8xf32>
      %121 = vector.shape_cast %120 : vector<8xf32> to vector<1x8xf32>
      %122 = vector.broadcast %121 : vector<1x8xf32> to vector<128x8xf32>
      %123 = arith.addf %118, %122 : vector<128x8xf32>
      %124 = vector.extract_strided_slice %28 {offsets = [1, 0, 0], sizes = [1, 32, 8], strides = [1, 1, 1]} : vector<4x32x8xbf16> to vector<1x32x8xbf16>
      %125 = vector.shape_cast %124 : vector<1x32x8xbf16> to vector<32x8xbf16>
      %cst_48 = arith.constant dense<0.000000e+00> : vector<128x8xf32>
      %126 = tpu.matmul %38, %125, %cst_48 {dimension_numbers = #tpu.dot_dimension_numbers<[1], [0], [0], [1], [0, 0, 1, 1], [], []>} : vector<128x32xbf16>, vector<32x8xbf16>, vector<128x8xf32> -> vector<128x8xf32>
      %127 = vector.extract_strided_slice %34 {offsets = [1, 2, 0], sizes = [1, 1, 8], strides = [1, 1, 1]} : vector<4x3x8xf32> to vector<1x1x8xf32>
      %128 = vector.shape_cast %127 : vector<1x1x8xf32> to vector<8xf32>
      %129 = vector.shape_cast %128 : vector<8xf32> to vector<1x8xf32>
      %130 = vector.broadcast %129 : vector<1x8xf32> to vector<128x8xf32>
      %131 = arith.addf %126, %130 : vector<128x8xf32>
      %132 = vector.extract_strided_slice %115 {offsets = [0, 0], sizes = [64, 8], strides = [1, 1]} : vector<128x8xf32> to vector<64x8xf32>
      %133 = arith.truncf %132 : vector<64x8xf32> to vector<64x8xbf16>
      %134 = vector.extract_strided_slice %123 {offsets = [0, 0], sizes = [64, 8], strides = [1, 1]} : vector<128x8xf32> to vector<64x8xf32>
      %135 = arith.truncf %134 : vector<64x8xf32> to vector<64x8xbf16>
      %136 = vector.extract_strided_slice %131 {offsets = [0, 0], sizes = [64, 8], strides = [1, 1]} : vector<128x8xf32> to vector<64x8xf32>
      %137 = arith.truncf %136 : vector<64x8xf32> to vector<64x8xbf16>
      %cst_49 = arith.constant dense<0.000000e+00> : vector<64x64xf32>
      %138 = tpu.matmul %133, %135, %cst_49 {dimension_numbers = #tpu.dot_dimension_numbers<[1], [1], [0], [0], [0, 0, 1, 0], [], []>} : vector<64x8xbf16>, vector<64x8xbf16>, vector<64x64xf32> -> vector<64x64xf32>
      %cst_50 = arith.constant dense<0xFF800000> : vector<64xf32>
      %139 = vector.multi_reduction <maximumf>, %138, %cst_50 [1] : vector<64x64xf32> to vector<64xf32>
      %140 = vector.shape_cast %139 : vector<64xf32> to vector<64x1xf32>
      %141 = vector.broadcast %140 : vector<64x1xf32> to vector<64x64xf32>
      %142 = arith.subf %138, %141 : vector<64x64xf32>
      %143 = math.exp %142 : vector<64x64xf32>
      %cst_51 = arith.constant dense<0.000000e+00> : vector<64xf32>
      %144 = vector.multi_reduction <add>, %143, %cst_51 [1] : vector<64x64xf32> to vector<64xf32>
      %145 = vector.shape_cast %144 : vector<64xf32> to vector<64x1xf32>
      %146 = tpu.reciprocal %145 {approx = true} : vector<64x1xf32> -> vector<64x1xf32>
      %147 = vector.broadcast %146 : vector<64x1xf32> to vector<64x64xf32>
      %148 = arith.mulf %143, %147 : vector<64x64xf32>
      %149 = arith.truncf %148 : vector<64x64xf32> to vector<64x64xbf16>
      %cst_52 = arith.constant dense<0.000000e+00> : vector<64x8xf32>
      %150 = tpu.matmul %149, %137, %cst_52 {dimension_numbers = #tpu.dot_dimension_numbers<[1], [0], [0], [1], [0, 0, 1, 1], [], []>} : vector<64x64xbf16>, vector<64x8xbf16>, vector<64x8xf32> -> vector<64x8xf32>
      %151 = vector.extract_strided_slice %115 {offsets = [64, 0], sizes = [64, 8], strides = [1, 1]} : vector<128x8xf32> to vector<64x8xf32>
      %152 = arith.truncf %151 : vector<64x8xf32> to vector<64x8xbf16>
      %153 = vector.extract_strided_slice %123 {offsets = [64, 0], sizes = [64, 8], strides = [1, 1]} : vector<128x8xf32> to vector<64x8xf32>
      %154 = arith.truncf %153 : vector<64x8xf32> to vector<64x8xbf16>
      %155 = vector.extract_strided_slice %131 {offsets = [64, 0], sizes = [64, 8], strides = [1, 1]} : vector<128x8xf32> to vector<64x8xf32>
      %156 = arith.truncf %155 : vector<64x8xf32> to vector<64x8xbf16>
      %cst_53 = arith.constant dense<0.000000e+00> : vector<64x64xf32>
      %157 = tpu.matmul %152, %154, %cst_53 {dimension_numbers = #tpu.dot_dimension_numbers<[1], [1], [0], [0], [0, 0, 1, 0], [], []>} : vector<64x8xbf16>, vector<64x8xbf16>, vector<64x64xf32> -> vector<64x64xf32>
      %cst_54 = arith.constant dense<0xFF800000> : vector<64xf32>
      %158 = vector.multi_reduction <maximumf>, %157, %cst_54 [1] : vector<64x64xf32> to vector<64xf32>
      %159 = vector.shape_cast %158 : vector<64xf32> to vector<64x1xf32>
      %160 = vector.broadcast %159 : vector<64x1xf32> to vector<64x64xf32>
      %161 = arith.subf %157, %160 : vector<64x64xf32>
      %162 = math.exp %161 : vector<64x64xf32>
      %cst_55 = arith.constant dense<0.000000e+00> : vector<64xf32>
      %163 = vector.multi_reduction <add>, %162, %cst_55 [1] : vector<64x64xf32> to vector<64xf32>
      %164 = vector.shape_cast %163 : vector<64xf32> to vector<64x1xf32>
      %165 = tpu.reciprocal %164 {approx = true} : vector<64x1xf32> -> vector<64x1xf32>
      %166 = vector.broadcast %165 : vector<64x1xf32> to vector<64x64xf32>
      %167 = arith.mulf %162, %166 : vector<64x64xf32>
      %168 = arith.truncf %167 : vector<64x64xf32> to vector<64x64xbf16>
      %cst_56 = arith.constant dense<0.000000e+00> : vector<64x8xf32>
      %169 = tpu.matmul %168, %156, %cst_56 {dimension_numbers = #tpu.dot_dimension_numbers<[1], [0], [0], [1], [0, 0, 1, 1], [], []>} : vector<64x64xbf16>, vector<64x8xbf16>, vector<64x8xf32> -> vector<64x8xf32>
      %170 = tpu.concatenate %150, %169 in 0 : vector<64x8xf32>, vector<64x8xf32> -> vector<128x8xf32>
      %171 = arith.truncf %170 : vector<128x8xf32> to vector<128x8xbf16>
      %172 = vector.extract_strided_slice %31 {offsets = [1, 0, 0], sizes = [1, 8, 32], strides = [1, 1, 1]} : vector<4x8x32xbf16> to vector<1x8x32xbf16>
      %173 = vector.shape_cast %172 : vector<1x8x32xbf16> to vector<8x32xbf16>
      %cst_57 = arith.constant dense<0.000000e+00> : vector<128x32xf32>
      %174 = tpu.matmul %171, %173, %cst_57 {dimension_numbers = #tpu.dot_dimension_numbers<[1], [0], [0], [1], [0, 0, 1, 1], [], []>} : vector<128x8xbf16>, vector<8x32xbf16>, vector<128x32xf32> -> vector<128x32xf32>
      %175 = arith.addf %107, %174 : vector<128x32xf32>
      %176 = vector.extract_strided_slice %22 {offsets = [2, 0, 0], sizes = [1, 32, 8], strides = [1, 1, 1]} : vector<4x32x8xbf16> to vector<1x32x8xbf16>
      %177 = vector.shape_cast %176 : vector<1x32x8xbf16> to vector<32x8xbf16>
      %cst_58 = arith.constant dense<0.000000e+00> : vector<128x8xf32>
      %178 = tpu.matmul %38, %177, %cst_58 {dimension_numbers = #tpu.dot_dimension_numbers<[1], [0], [0], [1], [0, 0, 1, 1], [], []>} : vector<128x32xbf16>, vector<32x8xbf16>, vector<128x8xf32> -> vector<128x8xf32>
      %179 = vector.extract_strided_slice %34 {offsets = [2, 0, 0], sizes = [1, 1, 8], strides = [1, 1, 1]} : vector<4x3x8xf32> to vector<1x1x8xf32>
      %180 = vector.shape_cast %179 : vector<1x1x8xf32> to vector<8xf32>
      %181 = vector.shape_cast %180 : vector<8xf32> to vector<1x8xf32>
      %182 = vector.broadcast %181 : vector<1x8xf32> to vector<128x8xf32>
      %183 = arith.addf %178, %182 : vector<128x8xf32>
      %184 = vector.extract_strided_slice %25 {offsets = [2, 0, 0], sizes = [1, 32, 8], strides = [1, 1, 1]} : vector<4x32x8xbf16> to vector<1x32x8xbf16>
      %185 = vector.shape_cast %184 : vector<1x32x8xbf16> to vector<32x8xbf16>
      %cst_59 = arith.constant dense<0.000000e+00> : vector<128x8xf32>
      %186 = tpu.matmul %38, %185, %cst_59 {dimension_numbers = #tpu.dot_dimension_numbers<[1], [0], [0], [1], [0, 0, 1, 1], [], []>} : vector<128x32xbf16>, vector<32x8xbf16>, vector<128x8xf32> -> vector<128x8xf32>
      %187 = vector.extract_strided_slice %34 {offsets = [2, 1, 0], sizes = [1, 1, 8], strides = [1, 1, 1]} : vector<4x3x8xf32> to vector<1x1x8xf32>
      %188 = vector.shape_cast %187 : vector<1x1x8xf32> to vector<8xf32>
      %189 = vector.shape_cast %188 : vector<8xf32> to vector<1x8xf32>
      %190 = vector.broadcast %189 : vector<1x8xf32> to vector<128x8xf32>
      %191 = arith.addf %186, %190 : vector<128x8xf32>
      %192 = vector.extract_strided_slice %28 {offsets = [2, 0, 0], sizes = [1, 32, 8], strides = [1, 1, 1]} : vector<4x32x8xbf16> to vector<1x32x8xbf16>
      %193 = vector.shape_cast %192 : vector<1x32x8xbf16> to vector<32x8xbf16>
      %cst_60 = arith.constant dense<0.000000e+00> : vector<128x8xf32>
      %194 = tpu.matmul %38, %193, %cst_60 {dimension_numbers = #tpu.dot_dimension_numbers<[1], [0], [0], [1], [0, 0, 1, 1], [], []>} : vector<128x32xbf16>, vector<32x8xbf16>, vector<128x8xf32> -> vector<128x8xf32>
      %195 = vector.extract_strided_slice %34 {offsets = [2, 2, 0], sizes = [1, 1, 8], strides = [1, 1, 1]} : vector<4x3x8xf32> to vector<1x1x8xf32>
      %196 = vector.shape_cast %195 : vector<1x1x8xf32> to vector<8xf32>
      %197 = vector.shape_cast %196 : vector<8xf32> to vector<1x8xf32>
      %198 = vector.broadcast %197 : vector<1x8xf32> to vector<128x8xf32>
      %199 = arith.addf %194, %198 : vector<128x8xf32>
      %200 = vector.extract_strided_slice %183 {offsets = [0, 0], sizes = [64, 8], strides = [1, 1]} : vector<128x8xf32> to vector<64x8xf32>
      %201 = arith.truncf %200 : vector<64x8xf32> to vector<64x8xbf16>
      %202 = vector.extract_strided_slice %191 {offsets = [0, 0], sizes = [64, 8], strides = [1, 1]} : vector<128x8xf32> to vector<64x8xf32>
      %203 = arith.truncf %202 : vector<64x8xf32> to vector<64x8xbf16>
      %204 = vector.extract_strided_slice %199 {offsets = [0, 0], sizes = [64, 8], strides = [1, 1]} : vector<128x8xf32> to vector<64x8xf32>
      %205 = arith.truncf %204 : vector<64x8xf32> to vector<64x8xbf16>
      %cst_61 = arith.constant dense<0.000000e+00> : vector<64x64xf32>
      %206 = tpu.matmul %201, %203, %cst_61 {dimension_numbers = #tpu.dot_dimension_numbers<[1], [1], [0], [0], [0, 0, 1, 0], [], []>} : vector<64x8xbf16>, vector<64x8xbf16>, vector<64x64xf32> -> vector<64x64xf32>
      %cst_62 = arith.constant dense<0xFF800000> : vector<64xf32>
      %207 = vector.multi_reduction <maximumf>, %206, %cst_62 [1] : vector<64x64xf32> to vector<64xf32>
      %208 = vector.shape_cast %207 : vector<64xf32> to vector<64x1xf32>
      %209 = vector.broadcast %208 : vector<64x1xf32> to vector<64x64xf32>
      %210 = arith.subf %206, %209 : vector<64x64xf32>
      %211 = math.exp %210 : vector<64x64xf32>
      %cst_63 = arith.constant dense<0.000000e+00> : vector<64xf32>
      %212 = vector.multi_reduction <add>, %211, %cst_63 [1] : vector<64x64xf32> to vector<64xf32>
      %213 = vector.shape_cast %212 : vector<64xf32> to vector<64x1xf32>
      %214 = tpu.reciprocal %213 {approx = true} : vector<64x1xf32> -> vector<64x1xf32>
      %215 = vector.broadcast %214 : vector<64x1xf32> to vector<64x64xf32>
      %216 = arith.mulf %211, %215 : vector<64x64xf32>
      %217 = arith.truncf %216 : vector<64x64xf32> to vector<64x64xbf16>
      %cst_64 = arith.constant dense<0.000000e+00> : vector<64x8xf32>
      %218 = tpu.matmul %217, %205, %cst_64 {dimension_numbers = #tpu.dot_dimension_numbers<[1], [0], [0], [1], [0, 0, 1, 1], [], []>} : vector<64x64xbf16>, vector<64x8xbf16>, vector<64x8xf32> -> vector<64x8xf32>
      %219 = vector.extract_strided_slice %183 {offsets = [64, 0], sizes = [64, 8], strides = [1, 1]} : vector<128x8xf32> to vector<64x8xf32>
      %220 = arith.truncf %219 : vector<64x8xf32> to vector<64x8xbf16>
      %221 = vector.extract_strided_slice %191 {offsets = [64, 0], sizes = [64, 8], strides = [1, 1]} : vector<128x8xf32> to vector<64x8xf32>
      %222 = arith.truncf %221 : vector<64x8xf32> to vector<64x8xbf16>
      %223 = vector.extract_strided_slice %199 {offsets = [64, 0], sizes = [64, 8], strides = [1, 1]} : vector<128x8xf32> to vector<64x8xf32>
      %224 = arith.truncf %223 : vector<64x8xf32> to vector<64x8xbf16>
      %cst_65 = arith.constant dense<0.000000e+00> : vector<64x64xf32>
      %225 = tpu.matmul %220, %222, %cst_65 {dimension_numbers = #tpu.dot_dimension_numbers<[1], [1], [0], [0], [0, 0, 1, 0], [], []>} : vector<64x8xbf16>, vector<64x8xbf16>, vector<64x64xf32> -> vector<64x64xf32>
      %cst_66 = arith.constant dense<0xFF800000> : vector<64xf32>
      %226 = vector.multi_reduction <maximumf>, %225, %cst_66 [1] : vector<64x64xf32> to vector<64xf32>
      %227 = vector.shape_cast %226 : vector<64xf32> to vector<64x1xf32>
      %228 = vector.broadcast %227 : vector<64x1xf32> to vector<64x64xf32>
      %229 = arith.subf %225, %228 : vector<64x64xf32>
      %230 = math.exp %229 : vector<64x64xf32>
      %cst_67 = arith.constant dense<0.000000e+00> : vector<64xf32>
      %231 = vector.multi_reduction <add>, %230, %cst_67 [1] : vector<64x64xf32> to vector<64xf32>
      %232 = vector.shape_cast %231 : vector<64xf32> to vector<64x1xf32>
      %233 = tpu.reciprocal %232 {approx = true} : vector<64x1xf32> -> vector<64x1xf32>
      %234 = vector.broadcast %233 : vector<64x1xf32> to vector<64x64xf32>
      %235 = arith.mulf %230, %234 : vector<64x64xf32>
      %236 = arith.truncf %235 : vector<64x64xf32> to vector<64x64xbf16>
      %cst_68 = arith.constant dense<0.000000e+00> : vector<64x8xf32>
      %237 = tpu.matmul %236, %224, %cst_68 {dimension_numbers = #tpu.dot_dimension_numbers<[1], [0], [0], [1], [0, 0, 1, 1], [], []>} : vector<64x64xbf16>, vector<64x8xbf16>, vector<64x8xf32> -> vector<64x8xf32>
      %238 = tpu.concatenate %218, %237 in 0 : vector<64x8xf32>, vector<64x8xf32> -> vector<128x8xf32>
      %239 = arith.truncf %238 : vector<128x8xf32> to vector<128x8xbf16>
      %240 = vector.extract_strided_slice %31 {offsets = [2, 0, 0], sizes = [1, 8, 32], strides = [1, 1, 1]} : vector<4x8x32xbf16> to vector<1x8x32xbf16>
      %241 = vector.shape_cast %240 : vector<1x8x32xbf16> to vector<8x32xbf16>
      %cst_69 = arith.constant dense<0.000000e+00> : vector<128x32xf32>
      %242 = tpu.matmul %239, %241, %cst_69 {dimension_numbers = #tpu.dot_dimension_numbers<[1], [0], [0], [1], [0, 0, 1, 1], [], []>} : vector<128x8xbf16>, vector<8x32xbf16>, vector<128x32xf32> -> vector<128x32xf32>
      %243 = arith.addf %175, %242 : vector<128x32xf32>
      %244 = vector.extract_strided_slice %22 {offsets = [3, 0, 0], sizes = [1, 32, 8], strides = [1, 1, 1]} : vector<4x32x8xbf16> to vector<1x32x8xbf16>
      %245 = vector.shape_cast %244 : vector<1x32x8xbf16> to vector<32x8xbf16>
      %cst_70 = arith.constant dense<0.000000e+00> : vector<128x8xf32>
      %246 = tpu.matmul %38, %245, %cst_70 {dimension_numbers = #tpu.dot_dimension_numbers<[1], [0], [0], [1], [0, 0, 1, 1], [], []>} : vector<128x32xbf16>, vector<32x8xbf16>, vector<128x8xf32> -> vector<128x8xf32>
      %247 = vector.extract_strided_slice %34 {offsets = [3, 0, 0], sizes = [1, 1, 8], strides = [1, 1, 1]} : vector<4x3x8xf32> to vector<1x1x8xf32>
      %248 = vector.shape_cast %247 : vector<1x1x8xf32> to vector<8xf32>
      %249 = vector.shape_cast %248 : vector<8xf32> to vector<1x8xf32>
      %250 = vector.broadcast %249 : vector<1x8xf32> to vector<128x8xf32>
      %251 = arith.addf %246, %250 : vector<128x8xf32>
      %252 = vector.extract_strided_slice %25 {offsets = [3, 0, 0], sizes = [1, 32, 8], strides = [1, 1, 1]} : vector<4x32x8xbf16> to vector<1x32x8xbf16>
      %253 = vector.shape_cast %252 : vector<1x32x8xbf16> to vector<32x8xbf16>
      %cst_71 = arith.constant dense<0.000000e+00> : vector<128x8xf32>
      %254 = tpu.matmul %38, %253, %cst_71 {dimension_numbers = #tpu.dot_dimension_numbers<[1], [0], [0], [1], [0, 0, 1, 1], [], []>} : vector<128x32xbf16>, vector<32x8xbf16>, vector<128x8xf32> -> vector<128x8xf32>
      %255 = vector.extract_strided_slice %34 {offsets = [3, 1, 0], sizes = [1, 1, 8], strides = [1, 1, 1]} : vector<4x3x8xf32> to vector<1x1x8xf32>
      %256 = vector.shape_cast %255 : vector<1x1x8xf32> to vector<8xf32>
      %257 = vector.shape_cast %256 : vector<8xf32> to vector<1x8xf32>
      %258 = vector.broadcast %257 : vector<1x8xf32> to vector<128x8xf32>
      %259 = arith.addf %254, %258 : vector<128x8xf32>
      %260 = vector.extract_strided_slice %28 {offsets = [3, 0, 0], sizes = [1, 32, 8], strides = [1, 1, 1]} : vector<4x32x8xbf16> to vector<1x32x8xbf16>
      %261 = vector.shape_cast %260 : vector<1x32x8xbf16> to vector<32x8xbf16>
      %cst_72 = arith.constant dense<0.000000e+00> : vector<128x8xf32>
      %262 = tpu.matmul %38, %261, %cst_72 {dimension_numbers = #tpu.dot_dimension_numbers<[1], [0], [0], [1], [0, 0, 1, 1], [], []>} : vector<128x32xbf16>, vector<32x8xbf16>, vector<128x8xf32> -> vector<128x8xf32>
      %263 = vector.extract_strided_slice %34 {offsets = [3, 2, 0], sizes = [1, 1, 8], strides = [1, 1, 1]} : vector<4x3x8xf32> to vector<1x1x8xf32>
      %264 = vector.shape_cast %263 : vector<1x1x8xf32> to vector<8xf32>
      %265 = vector.shape_cast %264 : vector<8xf32> to vector<1x8xf32>
      %266 = vector.broadcast %265 : vector<1x8xf32> to vector<128x8xf32>
      %267 = arith.addf %262, %266 : vector<128x8xf32>
      %268 = vector.extract_strided_slice %251 {offsets = [0, 0], sizes = [64, 8], strides = [1, 1]} : vector<128x8xf32> to vector<64x8xf32>
      %269 = arith.truncf %268 : vector<64x8xf32> to vector<64x8xbf16>
      %270 = vector.extract_strided_slice %259 {offsets = [0, 0], sizes = [64, 8], strides = [1, 1]} : vector<128x8xf32> to vector<64x8xf32>
      %271 = arith.truncf %270 : vector<64x8xf32> to vector<64x8xbf16>
      %272 = vector.extract_strided_slice %267 {offsets = [0, 0], sizes = [64, 8], strides = [1, 1]} : vector<128x8xf32> to vector<64x8xf32>
      %273 = arith.truncf %272 : vector<64x8xf32> to vector<64x8xbf16>
      %cst_73 = arith.constant dense<0.000000e+00> : vector<64x64xf32>
      %274 = tpu.matmul %269, %271, %cst_73 {dimension_numbers = #tpu.dot_dimension_numbers<[1], [1], [0], [0], [0, 0, 1, 0], [], []>} : vector<64x8xbf16>, vector<64x8xbf16>, vector<64x64xf32> -> vector<64x64xf32>
      %cst_74 = arith.constant dense<0xFF800000> : vector<64xf32>
      %275 = vector.multi_reduction <maximumf>, %274, %cst_74 [1] : vector<64x64xf32> to vector<64xf32>
      %276 = vector.shape_cast %275 : vector<64xf32> to vector<64x1xf32>
      %277 = vector.broadcast %276 : vector<64x1xf32> to vector<64x64xf32>
      %278 = arith.subf %274, %277 : vector<64x64xf32>
      %279 = math.exp %278 : vector<64x64xf32>
      %cst_75 = arith.constant dense<0.000000e+00> : vector<64xf32>
      %280 = vector.multi_reduction <add>, %279, %cst_75 [1] : vector<64x64xf32> to vector<64xf32>
      %281 = vector.shape_cast %280 : vector<64xf32> to vector<64x1xf32>
      %282 = tpu.reciprocal %281 {approx = true} : vector<64x1xf32> -> vector<64x1xf32>
      %283 = vector.broadcast %282 : vector<64x1xf32> to vector<64x64xf32>
      %284 = arith.mulf %279, %283 : vector<64x64xf32>
      %285 = arith.truncf %284 : vector<64x64xf32> to vector<64x64xbf16>
      %cst_76 = arith.constant dense<0.000000e+00> : vector<64x8xf32>
      %286 = tpu.matmul %285, %273, %cst_76 {dimension_numbers = #tpu.dot_dimension_numbers<[1], [0], [0], [1], [0, 0, 1, 1], [], []>} : vector<64x64xbf16>, vector<64x8xbf16>, vector<64x8xf32> -> vector<64x8xf32>
      %287 = vector.extract_strided_slice %251 {offsets = [64, 0], sizes = [64, 8], strides = [1, 1]} : vector<128x8xf32> to vector<64x8xf32>
      %288 = arith.truncf %287 : vector<64x8xf32> to vector<64x8xbf16>
      %289 = vector.extract_strided_slice %259 {offsets = [64, 0], sizes = [64, 8], strides = [1, 1]} : vector<128x8xf32> to vector<64x8xf32>
      %290 = arith.truncf %289 : vector<64x8xf32> to vector<64x8xbf16>
      %291 = vector.extract_strided_slice %267 {offsets = [64, 0], sizes = [64, 8], strides = [1, 1]} : vector<128x8xf32> to vector<64x8xf32>
      %292 = arith.truncf %291 : vector<64x8xf32> to vector<64x8xbf16>
      %cst_77 = arith.constant dense<0.000000e+00> : vector<64x64xf32>
      %293 = tpu.matmul %288, %290, %cst_77 {dimension_numbers = #tpu.dot_dimension_numbers<[1], [1], [0], [0], [0, 0, 1, 0], [], []>} : vector<64x8xbf16>, vector<64x8xbf16>, vector<64x64xf32> -> vector<64x64xf32>
      %cst_78 = arith.constant dense<0xFF800000> : vector<64xf32>
      %294 = vector.multi_reduction <maximumf>, %293, %cst_78 [1] : vector<64x64xf32> to vector<64xf32>
      %295 = vector.shape_cast %294 : vector<64xf32> to vector<64x1xf32>
      %296 = vector.broadcast %295 : vector<64x1xf32> to vector<64x64xf32>
      %297 = arith.subf %293, %296 : vector<64x64xf32>
      %298 = math.exp %297 : vector<64x64xf32>
      %cst_79 = arith.constant dense<0.000000e+00> : vector<64xf32>
      %299 = vector.multi_reduction <add>, %298, %cst_79 [1] : vector<64x64xf32> to vector<64xf32>
      %300 = vector.shape_cast %299 : vector<64xf32> to vector<64x1xf32>
      %301 = tpu.reciprocal %300 {approx = true} : vector<64x1xf32> -> vector<64x1xf32>
      %302 = vector.broadcast %301 : vector<64x1xf32> to vector<64x64xf32>
      %303 = arith.mulf %298, %302 : vector<64x64xf32>
      %304 = arith.truncf %303 : vector<64x64xf32> to vector<64x64xbf16>
      %cst_80 = arith.constant dense<0.000000e+00> : vector<64x8xf32>
      %305 = tpu.matmul %304, %292, %cst_80 {dimension_numbers = #tpu.dot_dimension_numbers<[1], [0], [0], [1], [0, 0, 1, 1], [], []>} : vector<64x64xbf16>, vector<64x8xbf16>, vector<64x8xf32> -> vector<64x8xf32>
      %306 = tpu.concatenate %286, %305 in 0 : vector<64x8xf32>, vector<64x8xf32> -> vector<128x8xf32>
      %307 = arith.truncf %306 : vector<128x8xf32> to vector<128x8xbf16>
      %308 = vector.extract_strided_slice %31 {offsets = [3, 0, 0], sizes = [1, 8, 32], strides = [1, 1, 1]} : vector<4x8x32xbf16> to vector<1x8x32xbf16>
      %309 = vector.shape_cast %308 : vector<1x8x32xbf16> to vector<8x32xbf16>
      %cst_81 = arith.constant dense<0.000000e+00> : vector<128x32xf32>
      %310 = tpu.matmul %307, %309, %cst_81 {dimension_numbers = #tpu.dot_dimension_numbers<[1], [0], [0], [1], [0, 0, 1, 1], [], []>} : vector<128x8xbf16>, vector<8x32xbf16>, vector<128x32xf32> -> vector<128x32xf32>
      %311 = arith.addf %243, %310 : vector<128x32xf32>
      %312 = vector.extract_strided_slice %37 {offsets = [0, 0], sizes = [1, 32], strides = [1, 1]} : vector<8x64xf32> to vector<1x32xf32>
      %313 = vector.shape_cast %312 : vector<1x32xf32> to vector<32xf32>
      %314 = vector.shape_cast %313 : vector<32xf32> to vector<1x32xf32>
      %315 = vector.broadcast %314 : vector<1x32xf32> to vector<128x32xf32>
      %316 = arith.addf %311, %315 : vector<128x32xf32>
      %317 = arith.addf %arg15, %316 : vector<128x32xf32>
      %318 = vector.extract_strided_slice %37 {offsets = [1, 0], sizes = [1, 32], strides = [1, 1]} : vector<8x64xf32> to vector<1x32xf32>
      %319 = vector.shape_cast %318 : vector<1x32xf32> to vector<32xf32>
      %320 = vector.extract_strided_slice %37 {offsets = [2, 0], sizes = [1, 32], strides = [1, 1]} : vector<8x64xf32> to vector<1x32xf32>
      %321 = vector.shape_cast %320 : vector<1x32xf32> to vector<32xf32>
      %cst_82 = arith.constant dense<0.000000e+00> : vector<128xf32>
      %322 = vector.multi_reduction <add>, %317, %cst_82 [1] : vector<128x32xf32> to vector<128xf32>
      %323 = vector.shape_cast %322 : vector<128xf32> to vector<128x1xf32>
      %cst_83 = arith.constant 3.200000e+01 : f32
      %324 = vector.broadcast %cst_83 : f32 to vector<128x1xf32>
      %325 = arith.divf %323, %324 : vector<128x1xf32>
      %326 = vector.broadcast %325 : vector<128x1xf32> to vector<128x32xf32>
      %327 = arith.subf %317, %326 : vector<128x32xf32>
      %328 = arith.mulf %327, %327 : vector<128x32xf32>
      %cst_84 = arith.constant dense<0.000000e+00> : vector<128xf32>
      %329 = vector.multi_reduction <add>, %328, %cst_84 [1] : vector<128x32xf32> to vector<128xf32>
      %330 = vector.shape_cast %329 : vector<128xf32> to vector<128x1xf32>
      %cst_85 = arith.constant 3.200000e+01 : f32
      %331 = vector.broadcast %cst_85 : f32 to vector<128x1xf32>
      %332 = arith.divf %330, %331 : vector<128x1xf32>
      %cst_86 = arith.constant 9.99999974E-6 : f32
      %333 = vector.broadcast %cst_86 : f32 to vector<128x1xf32>
      %334 = arith.addf %332, %333 : vector<128x1xf32>
      %335 = math.rsqrt %334 : vector<128x1xf32>
      %336 = vector.broadcast %335 : vector<128x1xf32> to vector<128x32xf32>
      %337 = arith.mulf %327, %336 : vector<128x32xf32>
      %338 = vector.shape_cast %319 : vector<32xf32> to vector<1x32xf32>
      %339 = vector.broadcast %338 : vector<1x32xf32> to vector<128x32xf32>
      %340 = arith.mulf %337, %339 : vector<128x32xf32>
      %341 = vector.shape_cast %321 : vector<32xf32> to vector<1x32xf32>
      %342 = vector.broadcast %341 : vector<1x32xf32> to vector<128x32xf32>
      %343 = arith.addf %340, %342 : vector<128x32xf32>
      %344 = arith.truncf %343 : vector<128x32xf32> to vector<128x32xbf16>
      %345 = arith.index_cast %arg14 : i32 to index
      %c0_87 = arith.constant 0 : index
      %c0_88 = arith.constant 0 : index
      %346 = vector.load %arg10[%345, %c0_87, %c0_88] : memref<2x32x64xbf16, #tpu.memory_space<vmem>>, vector<1x32x64xbf16>
      %347 = vector.shape_cast %346 : vector<1x32x64xbf16> to vector<32x64xbf16>
      %cst_89 = arith.constant dense<0.000000e+00> : vector<128x64xf32>
      %348 = tpu.matmul %344, %347, %cst_89 {dimension_numbers = #tpu.dot_dimension_numbers<[1], [0], [0], [1], [0, 0, 1, 1], [], []>} : vector<128x32xbf16>, vector<32x64xbf16>, vector<128x64xf32> -> vector<128x64xf32>
      %349 = vector.extract_strided_slice %37 {offsets = [3, 0], sizes = [1, 64], strides = [1, 1]} : vector<8x64xf32> to vector<1x64xf32>
      %350 = vector.shape_cast %349 : vector<1x64xf32> to vector<64xf32>
      %351 = vector.shape_cast %350 : vector<64xf32> to vector<1x64xf32>
      %352 = vector.broadcast %351 : vector<1x64xf32> to vector<128x64xf32>
      %353 = arith.addf %348, %352 : vector<128x64xf32>
      %cst_90 = arith.constant 0.000000e+00 : f32
      %354 = vector.broadcast %cst_90 : f32 to vector<128x64xf32>
      %355 = arith.maximumf %353, %354 : vector<128x64xf32>
      %356 = arith.truncf %355 : vector<128x64xf32> to vector<128x64xbf16>
      %357 = arith.index_cast %arg14 : i32 to index
      %c0_91 = arith.constant 0 : index
      %c0_92 = arith.constant 0 : index
      %358 = vector.load %arg11[%357, %c0_91, %c0_92] : memref<2x64x32xbf16, #tpu.memory_space<vmem>>, vector<1x64x32xbf16>
      %359 = vector.shape_cast %358 : vector<1x64x32xbf16> to vector<64x32xbf16>
      %cst_93 = arith.constant dense<0.000000e+00> : vector<128x32xf32>
      %360 = tpu.matmul %356, %359, %cst_93 {dimension_numbers = #tpu.dot_dimension_numbers<[1], [0], [0], [1], [0, 0, 1, 1], [], []>} : vector<128x64xbf16>, vector<64x32xbf16>, vector<128x32xf32> -> vector<128x32xf32>
      %361 = vector.extract_strided_slice %37 {offsets = [4, 0], sizes = [1, 32], strides = [1, 1]} : vector<8x64xf32> to vector<1x32xf32>
      %362 = vector.shape_cast %361 : vector<1x32xf32> to vector<32xf32>
      %363 = vector.shape_cast %362 : vector<32xf32> to vector<1x32xf32>
      %364 = vector.broadcast %363 : vector<1x32xf32> to vector<128x32xf32>
      %365 = arith.addf %360, %364 : vector<128x32xf32>
      %366 = arith.addf %343, %365 : vector<128x32xf32>
      %367 = vector.extract_strided_slice %37 {offsets = [5, 0], sizes = [1, 32], strides = [1, 1]} : vector<8x64xf32> to vector<1x32xf32>
      %368 = vector.shape_cast %367 : vector<1x32xf32> to vector<32xf32>
      %369 = vector.extract_strided_slice %37 {offsets = [6, 0], sizes = [1, 32], strides = [1, 1]} : vector<8x64xf32> to vector<1x32xf32>
      %370 = vector.shape_cast %369 : vector<1x32xf32> to vector<32xf32>
      %cst_94 = arith.constant dense<0.000000e+00> : vector<128xf32>
      %371 = vector.multi_reduction <add>, %366, %cst_94 [1] : vector<128x32xf32> to vector<128xf32>
      %372 = vector.shape_cast %371 : vector<128xf32> to vector<128x1xf32>
      %cst_95 = arith.constant 3.200000e+01 : f32
      %373 = vector.broadcast %cst_95 : f32 to vector<128x1xf32>
      %374 = arith.divf %372, %373 : vector<128x1xf32>
      %375 = vector.broadcast %374 : vector<128x1xf32> to vector<128x32xf32>
      %376 = arith.subf %366, %375 : vector<128x32xf32>
      %377 = arith.mulf %376, %376 : vector<128x32xf32>
      %cst_96 = arith.constant dense<0.000000e+00> : vector<128xf32>
      %378 = vector.multi_reduction <add>, %377, %cst_96 [1] : vector<128x32xf32> to vector<128xf32>
      %379 = vector.shape_cast %378 : vector<128xf32> to vector<128x1xf32>
      %cst_97 = arith.constant 3.200000e+01 : f32
      %380 = vector.broadcast %cst_97 : f32 to vector<128x1xf32>
      %381 = arith.divf %379, %380 : vector<128x1xf32>
      %cst_98 = arith.constant 9.99999974E-6 : f32
      %382 = vector.broadcast %cst_98 : f32 to vector<128x1xf32>
      %383 = arith.addf %381, %382 : vector<128x1xf32>
      %384 = math.rsqrt %383 : vector<128x1xf32>
      %385 = vector.broadcast %384 : vector<128x1xf32> to vector<128x32xf32>
      %386 = arith.mulf %376, %385 : vector<128x32xf32>
      %387 = vector.shape_cast %368 : vector<32xf32> to vector<1x32xf32>
      %388 = vector.broadcast %387 : vector<1x32xf32> to vector<128x32xf32>
      %389 = arith.mulf %386, %388 : vector<128x32xf32>
      %390 = vector.shape_cast %370 : vector<32xf32> to vector<1x32xf32>
      %391 = vector.broadcast %390 : vector<1x32xf32> to vector<128x32xf32>
      %392 = arith.addf %389, %391 : vector<128x32xf32>
      scf.yield %392 : vector<128x32xf32>
    }
    %c2_i32_13 = arith.constant 2 : i32
    %18 = tpu.transpose %17, [1, 0] : vector<128x32xf32> -> vector<32x128xf32>
    %c0_14 = arith.constant 0 : index
    %c0_15 = arith.constant 0 : index
    %19 = vector.load %arg13[%c0_14, %c0_15] : memref<32x128xf32, #tpu.memory_space<vmem>>, vector<32x128xf32>
    tpu.vector_store %arg13[%c0_14, %c0_15], %18 {strides = array<i32>} : memref<32x128xf32, #tpu.memory_space<vmem>>, vector<32x128xf32>,
    return
  }
  func.func @transform_0(%arg0: i32) -> (i32, i32, i32) {
    %c0_i32 = arith.constant 0 : i32
    %c0_i32_0 = arith.constant 0 : i32
    %c0_i32_1 = arith.constant 0 : i32
    %c0_i32_2 = arith.constant 0 : i32
    return %c0_i32, %c0_i32_0, %c0_i32_1 : i32, i32, i32
  }
  func.func @transform_1(%arg0: i32) -> (i32, i32) {
    %c0_i32 = arith.constant 0 : i32
    %c0_i32_0 = arith.constant 0 : i32
    %c0_i32_1 = arith.constant 0 : i32
    return %c0_i32, %c0_i32_0 : i32, i32
  }
  func.func @transform_2(%arg0: i32) -> (i32, i32) {
    %c0_i32 = arith.constant 0 : i32
    %c0_i32_0 = arith.constant 0 : i32
    %c0_i32_1 = arith.constant 0 : i32
    return %c0_i32, %c0_i32_0 : i32, i32
  }
  func.func @transform_3(%arg0: i32) -> (i32, i32) {
    %c0_i32 = arith.constant 0 : i32
    %c0_i32_0 = arith.constant 0 : i32
    %c0_i32_1 = arith.constant 0 : i32
    return %c0_i32, %c0_i32_0 : i32, i32
  }
  func.func @transform_4(%arg0: i32) -> (i32, i32, i32, i32) {
    %c0_i32 = arith.constant 0 : i32
    %c0_i32_0 = arith.constant 0 : i32
    %c0_i32_1 = arith.constant 0 : i32
    %c0_i32_2 = arith.constant 0 : i32
    %c0_i32_3 = arith.constant 0 : i32
    return %c0_i32, %c0_i32_0, %c0_i32_1, %c0_i32_2 : i32, i32, i32, i32
  }
  func.func @transform_5(%arg0: i32) -> (i32, i32, i32, i32) {
    %c0_i32 = arith.constant 0 : i32
    %c0_i32_0 = arith.constant 0 : i32
    %c0_i32_1 = arith.constant 0 : i32
    %c0_i32_2 = arith.constant 0 : i32
    %c0_i32_3 = arith.constant 0 : i32
    return %c0_i32, %c0_i32_0, %c0_i32_1, %c0_i32_2 : i32, i32, i32, i32
  }
  func.func @transform_6(%arg0: i32) -> (i32, i32, i32, i32) {
    %c0_i32 = arith.constant 0 : i32
    %c0_i32_0 = arith.constant 0 : i32
    %c0_i32_1 = arith.constant 0 : i32
    %c0_i32_2 = arith.constant 0 : i32
    %c0_i32_3 = arith.constant 0 : i32
    return %c0_i32, %c0_i32_0, %c0_i32_1, %c0_i32_2 : i32, i32, i32, i32
  }
  func.func @transform_7(%arg0: i32) -> (i32, i32, i32, i32) {
    %c0_i32 = arith.constant 0 : i32
    %c0_i32_0 = arith.constant 0 : i32
    %c0_i32_1 = arith.constant 0 : i32
    %c0_i32_2 = arith.constant 0 : i32
    %c0_i32_3 = arith.constant 0 : i32
    return %c0_i32, %c0_i32_0, %c0_i32_1, %c0_i32_2 : i32, i32, i32, i32
  }
  func.func @transform_8(%arg0: i32) -> (i32, i32, i32, i32) {
    %c0_i32 = arith.constant 0 : i32
    %c0_i32_0 = arith.constant 0 : i32
    %c0_i32_1 = arith.constant 0 : i32
    %c0_i32_2 = arith.constant 0 : i32
    %c0_i32_3 = arith.constant 0 : i32
    return %c0_i32, %c0_i32_0, %c0_i32_1, %c0_i32_2 : i32, i32, i32, i32
  }
  func.func @transform_9(%arg0: i32) -> (i32, i32, i32) {
    %c0_i32 = arith.constant 0 : i32
    %c0_i32_0 = arith.constant 0 : i32
    %c0_i32_1 = arith.constant 0 : i32
    %c0_i32_2 = arith.constant 0 : i32
    return %c0_i32, %c0_i32_0, %c0_i32_1 : i32, i32, i32
  }
  func.func @transform_10(%arg0: i32) -> (i32, i32, i32) {
    %c0_i32 = arith.constant 0 : i32
    %c0_i32_0 = arith.constant 0 : i32
    %c0_i32_1 = arith.constant 0 : i32
    %c0_i32_2 = arith.constant 0 : i32
    return %c0_i32, %c0_i32_0, %c0_i32_1 : i32, i32, i32
  }
  func.func @transform_11(%arg0: i32) -> (i32, i32, i32) {
    %c0_i32 = arith.constant 0 : i32
    %c0_i32_0 = arith.constant 0 : i32
    %c0_i32_1 = arith.constant 0 : i32
    %c0_i32_2 = arith.constant 0 : i32
    return %c0_i32, %c0_i32_0, %c0_i32_1 : i32, i32, i32
  }
  func.func @transform_12(%arg0: i32) -> (i32, i32) {
    %c0_i32 = arith.constant 0 : i32
    %c0_i32_0 = arith.constant 0 : i32
    %c0_i32_1 = arith.constant 0 : i32
    return %c0_i32, %c0_i32_0 : i32, i32
  }
}

</mosaic_0001>

<llo_original>
// kernel: transformer_encoder_forward.1
$region0: #{transformer_encoder_forward.1}
  #allocation0 [shape = 'u32[]', space=smem, size = 0x4, offset = 0x4, fixed_abs, tag = 'smem constant byte address 0x4 - core index']
  #allocation1 [shape = 'u32[144,128]{1,0:T(1,128)}', space=vmem, size = 0x12000, scoped, tag = 'internal scratch']
  %s0 = inlined_call_operand.vmem [shape: bf16[2,56,256], index: 0, kind: input, shape index: {}]
  %s1 = inlined_call_operand.vmem [shape: bf16[64,256], index: 1, kind: input, shape index: {}]
  %s2 = inlined_call_operand.vmem [shape: bf16[56,32], index: 2, kind: input, shape index: {}]
  %s3 = inlined_call_operand.vmem [shape: f32[64,32], index: 3, kind: input, shape index: {}]
  %s4 = inlined_call_operand.vmem [shape: bf16[2,4,32,8], index: 4, kind: input, shape index: {}]
  %s5 = inlined_call_operand.vmem [shape: bf16[2,4,32,8], index: 5, kind: input, shape index: {}]
  %s6 = inlined_call_operand.vmem [shape: bf16[2,4,32,8], index: 6, kind: input, shape index: {}]
  %s7 = inlined_call_operand.vmem [shape: f32[2,4,3,8], index: 7, kind: input, shape index: {}]
  %s8 = inlined_call_operand.vmem [shape: bf16[2,4,8,32], index: 8, kind: input, shape index: {}]
  %s9 = inlined_call_operand.vmem [shape: bf16[2,32,64], index: 9, kind: input, shape index: {}]
  %s10 = inlined_call_operand.vmem [shape: bf16[2,64,32], index: 10, kind: input, shape index: {}]
  %s11 = inlined_call_operand.vmem [shape: f32[2,8,64], index: 11, kind: input, shape index: {}]
  %s12 = inlined_call_operand.vmem [shape: f32[32,128], index: 12, kind: output, shape index: {}]
  %s13 = sld [smem:[#allocation0]]
  $region65: #{transformer_encoder_forward.1} parent=0
    _
  %s15 = ssub.s32 1, %s13
  %s16 = scalar_select 0, %s15, %s13
  // Predicated region
  $region2: #{transformer_encoder_forward.1} parent=0 // pred_check
    _
  $region3: #{transformer_encoder_forward.1} parent=0 // pred_check_branch
    %18 = sbr.rel (0) target = $region5
  $region4: #{transformer_encoder_forward.1} parent=0 // pred_region
    _
  $region5: #{transformer_encoder_forward.1} parent=0 // pred_fallthru
    _
  // Predicated region
  $region6: #{transformer_encoder_forward.1} parent=0 // pred_check
    _
  $region7: #{transformer_encoder_forward.1} parent=0 // pred_check_branch
    %20 = sbr.rel (0) target = $region9
  $region8: #{transformer_encoder_forward.1} parent=0 // pred_region
    _
  $region9: #{transformer_encoder_forward.1} parent=0 // pred_fallthru
    _
  // Predicated region
  $region10: #{transformer_encoder_forward.1} parent=0 // pred_check
    _
  $region11: #{transformer_encoder_forward.1} parent=0 // pred_check_branch
    %22 = sbr.rel (0) target = $region13
  $region12: #{transformer_encoder_forward.1} parent=0 // pred_region
    _
  $region13: #{transformer_encoder_forward.1} parent=0 // pred_fallthru
    _
  // Predicated region
  $region14: #{transformer_encoder_forward.1} parent=0 // pred_check
    _
  $region15: #{transformer_encoder_forward.1} parent=0 // pred_check_branch
    %24 = sbr.rel (0) target = $region17
  $region16: #{transformer_encoder_forward.1} parent=0 // pred_region
    _
  $region17: #{transformer_encoder_forward.1} parent=0 // pred_fallthru
    _
  // Predicated region
  $region18: #{transformer_encoder_forward.1} parent=0 // pred_check
    _
  $region19: #{transformer_encoder_forward.1} parent=0 // pred_check_branch
    %26 = sbr.rel (0) target = $region21
  $region20: #{transformer_encoder_forward.1} parent=0 // pred_region
    _
  $region21: #{transformer_encoder_forward.1} parent=0 // pred_fallthru
    _
  // Predicated region
  $region22: #{transformer_encoder_forward.1} parent=0 // pred_check
    _
  $region23: #{transformer_encoder_forward.1} parent=0 // pred_check_branch
    %28 = sbr.rel (0) target = $region25
  $region24: #{transformer_encoder_forward.1} parent=0 // pred_region
    _
  $region25: #{transformer_encoder_forward.1} parent=0 // pred_fallthru
    _
  // Predicated region
  $region26: #{transformer_encoder_forward.1} parent=0 // pred_check
    _
  $region27: #{transformer_encoder_forward.1} parent=0 // pred_check_branch
    %30 = sbr.rel (0) target = $region29
  $region28: #{transformer_encoder_forward.1} parent=0 // pred_region
    _
  $region29: #{transformer_encoder_forward.1} parent=0 // pred_fallthru
    _
  // Predicated region
  $region30: #{transformer_encoder_forward.1} parent=0 // pred_check
    _
  $region31: #{transformer_encoder_forward.1} parent=0 // pred_check_branch
    %32 = sbr.rel (0) target = $region33
  $region32: #{transformer_encoder_forward.1} parent=0 // pred_region
    _
  $region33: #{transformer_encoder_forward.1} parent=0 // pred_fallthru
    _
  // Predicated region
  $region34: #{transformer_encoder_forward.1} parent=0 // pred_check
    _
  $region35: #{transformer_encoder_forward.1} parent=0 // pred_check_branch
    %34 = sbr.rel (0) target = $region37
  $region36: #{transformer_encoder_forward.1} parent=0 // pred_region
    _
  $region37: #{transformer_encoder_forward.1} parent=0 // pred_fallthru
    _
  // Predicated region
  $region38: #{transformer_encoder_forward.1} parent=0 // pred_check
    _
  $region39: #{transformer_encoder_forward.1} parent=0 // pred_check_branch
    %36 = sbr.rel (0) target = $region41
  $region40: #{transformer_encoder_forward.1} parent=0 // pred_region
    _
  $region41: #{transformer_encoder_forward.1} parent=0 // pred_fallthru
    _
  // Predicated region
  $region42: #{transformer_encoder_forward.1} parent=0 // pred_check
    _
  $region43: #{transformer_encoder_forward.1} parent=0 // pred_check_branch
    %38 = sbr.rel (0) target = $region45
  $region44: #{transformer_encoder_forward.1} parent=0 // pred_region
    _
  $region45: #{transformer_encoder_forward.1} parent=0 // pred_fallthru
    _
  // Predicated region
  $region46: #{transformer_encoder_forward.1} parent=0 // pred_check
    _
  $region47: #{transformer_encoder_forward.1} parent=0 // pred_check_branch
    %40 = sbr.rel (0) target = $region49
  $region48: #{transformer_encoder_forward.1} parent=0 // pred_region
    _
  $region49: #{transformer_encoder_forward.1} parent=0 // pred_fallthru
    _
  %v42 = vld [vmem:[%s1] sm:$0xff]
  %v43 = vld [vmem:[%s1 + $0x8] sm:$0xff]
  %v44 = vld [vmem:[%s1 + $0x10] sm:$0xff]
  %v45 = vld [vmem:[%s1 + $0x18] sm:$0xff]
  %v46 = vld [vmem:[%s1 + $0x20] sm:$0xff]
  %v47 = vld [vmem:[%s1 + $0x28] sm:$0xff]
  %v48 = vld [vmem:[%s1 + $0x30] sm:$0xff]
  %v49 = vld [vmem:[%s1 + $0x38] sm:$0xff]
  %v50 = vld [vmem:[%s2] sm:$0xf]
  %v51 = vld [vmem:[%s2 + $0x4] sm:$0xf]
  %v52 = vld [vmem:[%s2 + $0x8] sm:$0xf]
  %v53 = vld [vmem:[%s2 + $0xc] sm:$0xf]
  %v54 = vld [vmem:[%s2 + $0x10] sm:$0xf]
  %v55 = vld [vmem:[%s2 + $0x14] sm:$0xf]
  %v56 = vld [vmem:[%s2 + $0x18] sm:$0xf]
  %v57 = vld [vmem:[%s3] sm:$0xff]
  %v58 = vld [vmem:[%s3 + $0x8] sm:$0xff]
  %v59 = vld [vmem:[%s3 + $0x10] sm:$0xff]
  %v60 = vld [vmem:[%s3 + $0x18] sm:$0xff]
  %v61 = vld [vmem:[%s3 + $0x20] sm:$0xff]
  %v62 = vld [vmem:[%s3 + $0x28] sm:$0xff]
  %v63 = vld [vmem:[%s3 + $0x30] sm:$0xff]
  %v64 = vld [vmem:[%s3 + $0x38] sm:$0xff]
  %v65 = vld [vmem:[%s0] sm:$0xff]
  %v66 = vld [vmem:[%s0 + $0x8] sm:$0xff]
  %v67 = vld [vmem:[%s0 + $0x10] sm:$0xff]
  %v68 = vld [vmem:[%s0 + $0x18] sm:$0xff]
  %v69 = vld [vmem:[%s0 + $0x20] sm:$0xff]
  %v70 = vld [vmem:[%s0 + $0x28] sm:$0xff]
  %v71 = vld [vmem:[%s0 + $0x30] sm:$0xff]
  %v80 = vunpack.c.l.b16 %v42
  %v81 = vunpack.c.h.b16 %v42
  %v82 = vunpack.c.l.b16 %v43
  %v83 = vunpack.c.h.b16 %v43
  %v84 = vunpack.c.l.b16 %v44
  %v85 = vunpack.c.h.b16 %v44
  %v86 = vunpack.c.l.b16 %v45
  %v87 = vunpack.c.h.b16 %v45
  %v88 = vunpack.c.l.b16 %v46
  %v89 = vunpack.c.h.b16 %v46
  %v90 = vunpack.c.l.b16 %v47
  %v91 = vunpack.c.h.b16 %v47
  %v92 = vunpack.c.l.b16 %v48
  %v93 = vunpack.c.h.b16 %v48
  %v94 = vunpack.c.l.b16 %v49
  %v95 = vunpack.c.h.b16 %v49
  %v96 = vpack.c.b16 %v82, %v80
  %v97 = vpack.c.b16 %v83, %v81
  %v98 = vpack.c.b16 %v86, %v84
  %v99 = vpack.c.b16 %v87, %v85
  %v100 = vpack.c.b16 %v90, %v88
  %v101 = vpack.c.b16 %v91, %v89
  %v102 = vpack.c.b16 %v94, %v92
  %v103 = vpack.c.b16 %v95, %v93
  %v119 = vunpack.c.l.b16 %v65
  %v120 = vunpack.c.h.b16 %v65
  %v121 = vunpack.c.l.b16 %v66
  %v122 = vunpack.c.h.b16 %v66
  %v123 = vunpack.c.l.b16 %v67
  %v124 = vunpack.c.h.b16 %v67
  %v125 = vunpack.c.l.b16 %v68
  %v126 = vunpack.c.h.b16 %v68
  %v127 = vunpack.c.l.b16 %v69
  %v128 = vunpack.c.h.b16 %v69
  %v129 = vunpack.c.l.b16 %v70
  %v130 = vunpack.c.h.b16 %v70
  %v131 = vunpack.c.l.b16 %v71
  %v132 = vunpack.c.h.b16 %v71
  %v133 = vpack.c.b16 %v121, %v119
  %v134 = vpack.c.b16 %v122, %v120
  %v135 = vpack.c.b16 %v125, %v123
  %v136 = vpack.c.b16 %v126, %v124
  %v137 = vpack.c.b16 %v129, %v127
  %v138 = vpack.c.b16 %v130, %v128
  %v139 = vpack.c.b16 %v131, %v131
  %v140 = vpack.c.b16 %v132, %v132
  %149 = vmatprep.subr.bf16.mxu0 %v134
  %150 = vmatpush1.bf16.xpose.msra.mxu0 %v133
  %151 = vmatprep.subr.bf16.mxu0 %v136
  %152 = vmatpush1.bf16.xpose.msra.mxu0 %v135
  %153 = vmatprep.subr.bf16.mxu0 %v138
  %154 = vmatpush1.bf16.xpose.msra.mxu0 %v137
  %155 = vmatprep.subr.bf16.mxu0 %v140
  %156 = vmatpush1.bf16.xpose.msra.mxu0 %v139
  %157 = vmatprep.subr.bf16.mxu0 0
  %158 = vmatpush1.bf16.xpose.msra.mxu0 0
  %159 = vmatprep.subr.bf16.mxu0 0
  %160 = vmatpush1.bf16.xpose.msra.mxu0 0
  %161 = vmatprep.subr.bf16.mxu0 0
  %162 = vmatpush1.bf16.xpose.msra.mxu0 0
  %163 = vmatprep.subr.bf16.mxu0 0
  %164 = vmatpush1.bf16.xpose.msra.mxu0 0
  %165 = vmatprep.subr.bf16.mxu0 0
  %166 = vmatpush1.bf16.xpose.msra.mxu0 0
  %167 = vmatprep.subr.bf16.mxu0 0
  %168 = vmatpush1.bf16.xpose.msra.mxu0 0
  %169 = vmatprep.subr.bf16.mxu0 0
  %170 = vmatpush1.bf16.xpose.msra.mxu0 0
  %171 = vmatprep.subr.bf16.mxu0 0
  %172 = vmatpush1.bf16.xpose.msra.mxu0 0
  %173 = vmatprep.subr.bf16.mxu0 0
  %174 = vmatpush1.bf16.xpose.msra.mxu0 0
  %175 = vmatprep.subr.bf16.mxu0 0
  %176 = vmatpush1.bf16.xpose.msra.mxu0 0
  %177 = vmatprep.subr.bf16.mxu0 0
  %178 = vmatpush1.bf16.xpose.msra.mxu0 0
  %179 = vmatprep.subr.bf16.mxu0 0
  %180 = vmatpush1.bf16.xpose.msra.mxu0 0
  %181 = vmatprep.mubr.bf16.mxu0 %v97
  %182 = vmatmul.mubr.bf16.gmra.mrb[0].mxu0 %v96
  %v183 = vpop.f32.mrb[0].mxu0
  %v184 = vadd.f32 0.0, %v183
  %v185 = vpop.f32.mrb[0].mxu0
  %v186 = vpop.f32.mrb[0].mxu0
  %v187 = vadd.f32 0.0, %v186
  %v188 = vpop.f32.mrb[0].mxu0
  %189 = vmatprep.mubr.bf16.mxu0 %v99
  %190 = vmatmul.mubr.bf16.gmra.mrb[0].mxu0 %v98
  %v191 = vpop.f32.mrb[0].mxu0
  %v192 = vadd.f32 0.0, %v191
  %v193 = vpop.f32.mrb[0].mxu0
  %v194 = vpop.f32.mrb[0].mxu0
  %v195 = vadd.f32 0.0, %v194
  %v196 = vpop.f32.mrb[0].mxu0
  %197 = vmatprep.mubr.bf16.mxu0 %v101
  %198 = vmatmul.mubr.bf16.gmra.mrb[0].mxu0 %v100
  %v199 = vpop.f32.mrb[0].mxu0
  %v200 = vadd.f32 0.0, %v199
  %v201 = vpop.f32.mrb[0].mxu0
  %v202 = vpop.f32.mrb[0].mxu0
  %v203 = vadd.f32 0.0, %v202
  %v204 = vpop.f32.mrb[0].mxu0
  %205 = vmatprep.mubr.bf16.mxu0 %v103
  %206 = vmatmul.mubr.bf16.gmra.mrb[0].mxu0 %v102
  %v207 = vpop.f32.mrb[0].mxu0
  %v208 = vadd.f32 0.0, %v207
  %v209 = vpop.f32.mrb[0].mxu0
  %v210 = vpop.f32.mrb[0].mxu0
  %v211 = vadd.f32 0.0, %v210
  %v212 = vpop.f32.mrb[0].mxu0
  %213 = vdwg.mxu0
  %v214 = vpack.c.bf16 %v187, %v184
  %v215 = vpack.c.bf16 %v195, %v192
  %v216 = vpack.c.bf16 %v203, %v200
  %v217 = vpack.c.bf16 %v211, %v208
  %v225 = vunpack.c.l.b16 %v50
  %v226 = vunpack.c.l.b16 %v51
  %v227 = vunpack.c.l.b16 %v52
  %v228 = vunpack.c.l.b16 %v53
  %v229 = vunpack.c.l.b16 %v54
  %v230 = vunpack.c.l.b16 %v55
  %v231 = vunpack.c.l.b16 %v56
  %v232 = vpack.c.b16 %v226, %v225
  %v233 = vpack.c.b16 %v228, %v227
  %v234 = vpack.c.b16 %v230, %v229
  %v235 = vpack.c.b16 %v231, %v231
  %vm239 = vcmask 457728
  %v241 = vsel %vm239, %v214, 0
  %v244 = vsel %vm239, %v215, 0
  %v247 = vsel %vm239, %v216, 0
  %v250 = vsel %vm239, %v217, 0
  %vm252 = vcmask 1043456
  %v254 = vsel %vm252, %v235, 0
  %256 = vmatprep.subr.bf16.mxu0 0
  %257 = vmatpush1.bf16.msra.mxu0 %v232
  %258 = vmatprep.subr.bf16.mxu0 0
  %259 = vmatpush1.bf16.msra.mxu0 %v233
  %260 = vmatprep.subr.bf16.mxu0 0
  %261 = vmatpush1.bf16.msra.mxu0 %v234
  %262 = vmatprep.subr.bf16.mxu0 0
  %263 = vmatpush1.bf16.msra.mxu0 %v254
  %264 = vmatprep.subr.bf16.mxu0 0
  %265 = vmatpush1.bf16.msra.mxu0 0
  %266 = vmatprep.subr.bf16.mxu0 0
  %267 = vmatpush1.bf16.msra.mxu0 0
  %268 = vmatprep.subr.bf16.mxu0 0
  %269 = vmatpush1.bf16.msra.mxu0 0
  %270 = vmatprep.subr.bf16.mxu0 0
  %271 = vmatpush1.bf16.msra.mxu0 0
  %272 = vmatprep.subr.bf16.mxu0 0
  %273 = vmatpush1.bf16.msra.mxu0 0
  %274 = vmatprep.subr.bf16.mxu0 0
  %275 = vmatpush1.bf16.msra.mxu0 0
  %276 = vmatprep.subr.bf16.mxu0 0
  %277 = vmatpush1.bf16.msra.mxu0 0
  %278 = vmatprep.subr.bf16.mxu0 0
  %279 = vmatpush1.bf16.msra.mxu0 0
  %280 = vmatprep.subr.bf16.mxu0 0
  %281 = vmatpush1.bf16.msra.mxu0 0
  %282 = vmatprep.subr.bf16.mxu0 0
  %283 = vmatpush1.bf16.msra.mxu0 0
  %284 = vmatprep.subr.bf16.mxu0 0
  %285 = vmatpush1.bf16.msra.mxu0 0
  %286 = vmatprep.subr.bf16.mxu0 0
  %287 = vmatpush1.bf16.msra.mxu0 0
  %288 = vmatprep.mubr.bf16.mxu0 0
  %289 = vmatmul.mubr.bf16.gmra.mrb[0].mxu0 %v241
  %v290 = vpop.f32.mrb[0].mxu0
  %v291 = vadd.f32 %v57, %v290
  %v292 = vpop.f32.mrb[0].mxu0
  %v293 = vpop.f32.mrb[0].mxu0
  %v294 = vadd.f32 %v58, %v293
  %v295 = vpop.f32.mrb[0].mxu0
  %296 = vmatprep.mubr.bf16.mxu0 0
  %297 = vmatmul.mubr.bf16.gmra.mrb[0].mxu0 %v244
  %v298 = vpop.f32.mrb[0].mxu0
  %v299 = vadd.f32 %v59, %v298
  %v300 = vpop.f32.mrb[0].mxu0
  %v301 = vpop.f32.mrb[0].mxu0
  %v302 = vadd.f32 %v60, %v301
  %v303 = vpop.f32.mrb[0].mxu0
  %304 = vmatprep.mubr.bf16.mxu0 0
  %305 = vmatmul.mubr.bf16.gmra.mrb[0].mxu0 %v247
  %v306 = vpop.f32.mrb[0].mxu0
  %v307 = vadd.f32 %v61, %v306
  %v308 = vpop.f32.mrb[0].mxu0
  %v309 = vpop.f32.mrb[0].mxu0
  %v310 = vadd.f32 %v62, %v309
  %v311 = vpop.f32.mrb[0].mxu0
  %312 = vmatprep.mubr.bf16.mxu0 0
  %313 = vmatmul.mubr.bf16.gmra.mrb[0].mxu0 %v250
  %v314 = vpop.f32.mrb[0].mxu0
  %v315 = vadd.f32 %v63, %v314
  %v316 = vpop.f32.mrb[0].mxu0
  %v317 = vpop.f32.mrb[0].mxu0
  %v318 = vadd.f32 %v64, %v317
  %v319 = vpop.f32.mrb[0].mxu0
  %320 = vdwg.mxu0
  %s321 = scalar_lea.vmem %s0, 56
  %v322 = vld [vmem:[%s321] sm:$0xff]
  %v323 = vld [vmem:[%s321 + $0x8] sm:$0xff]
  %v324 = vld [vmem:[%s321 + $0x10] sm:$0xff]
  %v325 = vld [vmem:[%s321 + $0x18] sm:$0xff]
  %v326 = vld [vmem:[%s321 + $0x20] sm:$0xff]
  %v327 = vld [vmem:[%s321 + $0x28] sm:$0xff]
  %v328 = vld [vmem:[%s321 + $0x30] sm:$0xff]
  %v336 = vunpack.c.l.b16 %v322
  %v337 = vunpack.c.h.b16 %v322
  %v338 = vunpack.c.l.b16 %v323
  %v339 = vunpack.c.h.b16 %v323
  %v340 = vunpack.c.l.b16 %v324
  %v341 = vunpack.c.h.b16 %v324
  %v342 = vunpack.c.l.b16 %v325
  %v343 = vunpack.c.h.b16 %v325
  %v344 = vunpack.c.l.b16 %v326
  %v345 = vunpack.c.h.b16 %v326
  %v346 = vunpack.c.l.b16 %v327
  %v347 = vunpack.c.h.b16 %v327
  %v348 = vunpack.c.l.b16 %v328
  %v349 = vunpack.c.h.b16 %v328
  %v350 = vpack.c.b16 %v338, %v336
  %v351 = vpack.c.b16 %v339, %v337
  %v352 = vpack.c.b16 %v342, %v340
  %v353 = vpack.c.b16 %v343, %v341
  %v354 = vpack.c.b16 %v346, %v344
  %v355 = vpack.c.b16 %v347, %v345
  %v356 = vpack.c.b16 %v348, %v348
  %v357 = vpack.c.b16 %v349, %v349
  %366 = vmatprep.subr.bf16.mxu0 %v351
  %367 = vmatpush1.bf16.xpose.msra.mxu0 %v350
  %368 = vmatprep.subr.bf16.mxu0 %v353
  %369 = vmatpush1.bf16.xpose.msra.mxu0 %v352
  %370 = vmatprep.subr.bf16.mxu0 %v355
  %371 = vmatpush1.bf16.xpose.msra.mxu0 %v354
  %372 = vmatprep.subr.bf16.mxu0 %v357
  %373 = vmatpush1.bf16.xpose.msra.mxu0 %v356
  %374 = vmatprep.subr.bf16.mxu0 0
  %375 = vmatpush1.bf16.xpose.msra.mxu0 0
  %376 = vmatprep.subr.bf16.mxu0 0
  %377 = vmatpush1.bf16.xpose.msra.mxu0 0
  %378 = vmatprep.subr.bf16.mxu0 0
  %379 = vmatpush1.bf16.xpose.msra.mxu0 0
  %380 = vmatprep.subr.bf16.mxu0 0
  %381 = vmatpush1.bf16.xpose.msra.mxu0 0
  %382 = vmatprep.subr.bf16.mxu0 0
  %383 = vmatpush1.bf16.xpose.msra.mxu0 0
  %384 = vmatprep.subr.bf16.mxu0 0
  %385 = vmatpush1.bf16.xpose.msra.mxu0 0
  %386 = vmatprep.subr.bf16.mxu0 0
  %387 = vmatpush1.bf16.xpose.msra.mxu0 0
  %388 = vmatprep.subr.bf16.mxu0 0
  %389 = vmatpush1.bf16.xpose.msra.mxu0 0
  %390 = vmatprep.subr.bf16.mxu0 0
  %391 = vmatpush1.bf16.xpose.msra.mxu0 0
  %392 = vmatprep.subr.bf16.mxu0 0
  %393 = vmatpush1.bf16.xpose.msra.mxu0 0
  %394 = vmatprep.subr.bf16.mxu0 0
  %395 = vmatpush1.bf16.xpose.msra.mxu0 0
  %396 = vmatprep.subr.bf16.mxu0 0
  %397 = vmatpush1.bf16.xpose.msra.mxu0 0
  %398 = vmatprep.mubr.bf16.mxu0 %v97
  %399 = vmatmul.mubr.bf16.gmra.mrb[0].mxu0 %v96
  %v400 = vpop.f32.mrb[0].mxu0
  %v401 = vadd.f32 0.0, %v400
  %v402 = vpop.f32.mrb[0].mxu0
  %v403 = vpop.f32.mrb[0].mxu0
  %v404 = vadd.f32 0.0, %v403
  %v405 = vpop.f32.mrb[0].mxu0
  %406 = vmatprep.mubr.bf16.mxu0 %v99
  %407 = vmatmul.mubr.bf16.gmra.mrb[0].mxu0 %v98
  %v408 = vpop.f32.mrb[0].mxu0
  %v409 = vadd.f32 0.0, %v408
  %v410 = vpop.f32.mrb[0].mxu0
  %v411 = vpop.f32.mrb[0].mxu0
  %v412 = vadd.f32 0.0, %v411
  %v413 = vpop.f32.mrb[0].mxu0
  %414 = vmatprep.mubr.bf16.mxu0 %v101
  %415 = vmatmul.mubr.bf16.gmra.mrb[0].mxu0 %v100
  %v416 = vpop.f32.mrb[0].mxu0
  %v417 = vadd.f32 0.0, %v416
  %v418 = vpop.f32.mrb[0].mxu0
  %v419 = vpop.f32.mrb[0].mxu0
  %v420 = vadd.f32 0.0, %v419
  %v421 = vpop.f32.mrb[0].mxu0
  %422 = vmatprep.mubr.bf16.mxu0 %v103
  %423 = vmatmul.mubr.bf16.gmra.mrb[0].mxu0 %v102
  %v424 = vpop.f32.mrb[0].mxu0
  %v425 = vadd.f32 0.0, %v424
  %v426 = vpop.f32.mrb[0].mxu0
  %v427 = vpop.f32.mrb[0].mxu0
  %v428 = vadd.f32 0.0, %v427
  %v429 = vpop.f32.mrb[0].mxu0
  %430 = vdwg.mxu0
  %v431 = vpack.c.bf16 %v404, %v401
  %v432 = vpack.c.bf16 %v412, %v409
  %v433 = vpack.c.bf16 %v420, %v417
  %v434 = vpack.c.bf16 %v428, %v425
  %v436 = vsel %vm239, %v431, 0
  %v439 = vsel %vm239, %v432, 0
  %v442 = vsel %vm239, %v433, 0
  %v445 = vsel %vm239, %v434, 0
  %447 = vmatprep.subr.bf16.mxu0 0
  %448 = vmatpush1.bf16.msra.mxu0 %v232
  %449 = vmatprep.subr.bf16.mxu0 0
  %450 = vmatpush1.bf16.msra.mxu0 %v233
  %451 = vmatprep.subr.bf16.mxu0 0
  %452 = vmatpush1.bf16.msra.mxu0 %v234
  %453 = vmatprep.subr.bf16.mxu0 0
  %454 = vmatpush1.bf16.msra.mxu0 %v254
  %455 = vmatprep.subr.bf16.mxu0 0
  %456 = vmatpush1.bf16.msra.mxu0 0
  %457 = vmatprep.subr.bf16.mxu0 0
  %458 = vmatpush1.bf16.msra.mxu0 0
  %459 = vmatprep.subr.bf16.mxu0 0
  %460 = vmatpush1.bf16.msra.mxu0 0
  %461 = vmatprep.subr.bf16.mxu0 0
  %462 = vmatpush1.bf16.msra.mxu0 0
  %463 = vmatprep.subr.bf16.mxu0 0
  %464 = vmatpush1.bf16.msra.mxu0 0
  %465 = vmatprep.subr.bf16.mxu0 0
  %466 = vmatpush1.bf16.msra.mxu0 0
  %467 = vmatprep.subr.bf16.mxu0 0
  %468 = vmatpush1.bf16.msra.mxu0 0
  %469 = vmatprep.subr.bf16.mxu0 0
  %470 = vmatpush1.bf16.msra.mxu0 0
  %471 = vmatprep.subr.bf16.mxu0 0
  %472 = vmatpush1.bf16.msra.mxu0 0
  %473 = vmatprep.subr.bf16.mxu0 0
  %474 = vmatpush1.bf16.msra.mxu0 0
  %475 = vmatprep.subr.bf16.mxu0 0
  %476 = vmatpush1.bf16.msra.mxu0 0
  %477 = vmatprep.subr.bf16.mxu0 0
  %478 = vmatpush1.bf16.msra.mxu0 0
  %479 = vmatprep.mubr.bf16.mxu0 0
  %480 = vmatmul.mubr.bf16.gmra.mrb[0].mxu0 %v436
  %v481 = vpop.f32.mrb[0].mxu0
  %v482 = vadd.f32 %v57, %v481
  %v483 = vpop.f32.mrb[0].mxu0
  %v484 = vpop.f32.mrb[0].mxu0
  %v485 = vadd.f32 %v58, %v484
  %v486 = vpop.f32.mrb[0].mxu0
  %487 = vmatprep.mubr.bf16.mxu0 0
  %488 = vmatmul.mubr.bf16.gmra.mrb[0].mxu0 %v439
  %v489 = vpop.f32.mrb[0].mxu0
  %v490 = vadd.f32 %v59, %v489
  %v491 = vpop.f32.mrb[0].mxu0
  %v492 = vpop.f32.mrb[0].mxu0
  %v493 = vadd.f32 %v60, %v492
  %v494 = vpop.f32.mrb[0].mxu0
  %495 = vmatprep.mubr.bf16.mxu0 0
  %496 = vmatmul.mubr.bf16.gmra.mrb[0].mxu0 %v442
  %v497 = vpop.f32.mrb[0].mxu0
  %v498 = vadd.f32 %v61, %v497
  %v499 = vpop.f32.mrb[0].mxu0
  %v500 = vpop.f32.mrb[0].mxu0
  %v501 = vadd.f32 %v62, %v500
  %v502 = vpop.f32.mrb[0].mxu0
  %503 = vmatprep.mubr.bf16.mxu0 0
  %504 = vmatmul.mubr.bf16.gmra.mrb[0].mxu0 %v445
  %v505 = vpop.f32.mrb[0].mxu0
  %v506 = vadd.f32 %v63, %v505
  %v507 = vpop.f32.mrb[0].mxu0
  %v508 = vpop.f32.mrb[0].mxu0
  %v509 = vadd.f32 %v64, %v508
  %v510 = vpop.f32.mrb[0].mxu0
  %511 = vdwg.mxu0
  loop: start=0, step=1, limit=2
  $region50: #{transformer_encoder_forward.1} parent=0 // loop_pre_header
    _
  $region51: #{transformer_encoder_forward.1} parent=0 // loop_header
    %s513 = sphi 0, %s517
    %p514 = scmp.ge.s32.totalorder %s513, 2
    %v518 = vphi %v291, %v5582
    %v519 = vphi %v294, %v5583
    %v520 = vphi %v299, %v5584
    %v521 = vphi %v302, %v5585
    %v522 = vphi %v307, %v5586
    %v523 = vphi %v310, %v5587
    %v524 = vphi %v315, %v5588
    %v525 = vphi %v318, %v5589
    %v526 = vphi %v482, %v5590
    %v527 = vphi %v485, %v5591
    %v528 = vphi %v490, %v5592
    %v529 = vphi %v493, %v5593
    %v530 = vphi %v498, %v5594
    %v531 = vphi %v501, %v5595
    %v532 = vphi %v506, %v5596
    %v533 = vphi %v509, %v5597
  $region52: #{transformer_encoder_forward.1} parent=0 // loop_header_branch
    %516 = sbr.rel (%p514) target = $region56
  $region53: #{transformer_encoder_forward.1} parent=0 // loop_body
    %s534 = smul.u32 %s513, 16
    %s535 = smul.addr %s534, 4
    %s536 = scalar_lea.vmem %s4, %s535
    %v537 = vld [vmem:[%s536] sm:$0xf]
    %v538 = vld [vmem:[%s536 + $0x4] sm:$0xf]
    %v539 = vld [vmem:[%s536 + $0x8] sm:$0xf]
    %v540 = vld [vmem:[%s536 + $0xc] sm:$0xf]
    %v541 = vld [vmem:[%s536 + $0x10] sm:$0xf]
    %v542 = vld [vmem:[%s536 + $0x14] sm:$0xf]
    %v543 = vld [vmem:[%s536 + $0x18] sm:$0xf]
    %v544 = vld [vmem:[%s536 + $0x1c] sm:$0xf]
    %v545 = vld [vmem:[%s536 + $0x20] sm:$0xf]
    %v546 = vld [vmem:[%s536 + $0x24] sm:$0xf]
    %v547 = vld [vmem:[%s536 + $0x28] sm:$0xf]
    %v548 = vld [vmem:[%s536 + $0x2c] sm:$0xf]
    %v549 = vld [vmem:[%s536 + $0x30] sm:$0xf]
    %v550 = vld [vmem:[%s536 + $0x34] sm:$0xf]
    %v551 = vld [vmem:[%s536 + $0x38] sm:$0xf]
    %v552 = vld [vmem:[%s536 + $0x3c] sm:$0xf]
    %s553 = smul.addr %s534, 4
    %s554 = scalar_lea.vmem %s5, %s553
    %v555 = vld [vmem:[%s554] sm:$0xf]
    %v556 = vld [vmem:[%s554 + $0x4] sm:$0xf]
    %v557 = vld [vmem:[%s554 + $0x8] sm:$0xf]
    %v558 = vld [vmem:[%s554 + $0xc] sm:$0xf]
    %v559 = vld [vmem:[%s554 + $0x10] sm:$0xf]
    %v560 = vld [vmem:[%s554 + $0x14] sm:$0xf]
    %v561 = vld [vmem:[%s554 + $0x18] sm:$0xf]
    %v562 = vld [vmem:[%s554 + $0x1c] sm:$0xf]
    %v563 = vld [vmem:[%s554 + $0x20] sm:$0xf]
    %v564 = vld [vmem:[%s554 + $0x24] sm:$0xf]
    %v565 = vld [vmem:[%s554 + $0x28] sm:$0xf]
    %v566 = vld [vmem:[%s554 + $0x2c] sm:$0xf]
    %v567 = vld [vmem:[%s554 + $0x30] sm:$0xf]
    %v568 = vld [vmem:[%s554 + $0x34] sm:$0xf]
    %v569 = vld [vmem:[%s554 + $0x38] sm:$0xf]
    %v570 = vld [vmem:[%s554 + $0x3c] sm:$0xf]
    %s571 = smul.addr %s534, 4
    %s572 = scalar_lea.vmem %s6, %s571
    %v573 = vld [vmem:[%s572] sm:$0xf]
    %v574 = vld [vmem:[%s572 + $0x4] sm:$0xf]
    %v575 = vld [vmem:[%s572 + $0x8] sm:$0xf]
    %v576 = vld [vmem:[%s572 + $0xc] sm:$0xf]
    %v577 = vld [vmem:[%s572 + $0x10] sm:$0xf]
    %v578 = vld [vmem:[%s572 + $0x14] sm:$0xf]
    %v579 = vld [vmem:[%s572 + $0x18] sm:$0xf]
    %v580 = vld [vmem:[%s572 + $0x1c] sm:$0xf]
    %v581 = vld [vmem:[%s572 + $0x20] sm:$0xf]
    %v582 = vld [vmem:[%s572 + $0x24] sm:$0xf]
    %v583 = vld [vmem:[%s572 + $0x28] sm:$0xf]
    %v584 = vld [vmem:[%s572 + $0x2c] sm:$0xf]
    %v585 = vld [vmem:[%s572 + $0x30] sm:$0xf]
    %v586 = vld [vmem:[%s572 + $0x34] sm:$0xf]
    %v587 = vld [vmem:[%s572 + $0x38] sm:$0xf]
    %v588 = vld [vmem:[%s572 + $0x3c] sm:$0xf]
    %s589 = smul.u32 %s513, 4
    %s590 = smul.addr %s589, 4
    %s591 = scalar_lea.vmem %s8, %s590
    %v592 = vld [vmem:[%s591] sm:$0xf]
    %v593 = vld [vmem:[%s591 + $0x4] sm:$0xf]
    %v594 = vld [vmem:[%s591 + $0x8] sm:$0xf]
    %v595 = vld [vmem:[%s591 + $0xc] sm:$0xf]
    %s596 = scalar_lea.vmem %s7, %s534
    %v597 = vld [vmem:[%s596] sm:$0x7]
    %v598 = vld [vmem:[%s596 + $0x4] sm:$0x7]
    %v599 = vld [vmem:[%s596 + $0x8] sm:$0x7]
    %v600 = vld [vmem:[%s596 + $0xc] sm:$0x7]
    %s601 = smul.u32 %s513, 8
    %s602 = scalar_lea.vmem %s11, %s601
    %v603 = vld [vmem:[%s602] sm:$0xff]
    %v604 = vpack.c.bf16 %v519, %v518
    %v605 = vpack.c.bf16 %v521, %v520
    %v606 = vpack.c.bf16 %v523, %v522
    %v607 = vpack.c.bf16 %v525, %v524
    %v608 = vpack.c.bf16 %v527, %v526
    %v609 = vpack.c.bf16 %v529, %v528
    %v610 = vpack.c.bf16 %v531, %v530
    %v611 = vpack.c.bf16 %v533, %v532
    %v612 = vlaneseq
    %v613 = vshrl.u32 %v612, 7
    %v614 = vsub.s32 0, %v613
    %v615 = vrot.slane %v597, %v614
    %v620 = vunpack.c.l.b16 %v537
    %v621 = vunpack.c.l.b16 %v538
    %v622 = vunpack.c.l.b16 %v539
    %v623 = vunpack.c.l.b16 %v540
    %v624 = vpack.c.b16 %v621, %v620
    %v625 = vpack.c.b16 %v623, %v622
    %vm628 = vcmask 261120
    %v630 = vsel %vm628, %v604, 0
    %v633 = vsel %vm628, %v605, 0
    %v636 = vsel %vm628, %v606, 0
    %v639 = vsel %vm628, %v607, 0
    %v642 = vsel %vm628, %v608, 0
    %v645 = vsel %vm628, %v609, 0
    %v648 = vsel %vm628, %v610, 0
    %v651 = vsel %vm628, %v611, 0
    %653 = vmatprep.subr.bf16.mxu0 0
    %654 = vmatpush1.bf16.msra.mxu0 %v624
    %655 = vmatprep.subr.bf16.mxu0 0
    %656 = vmatpush1.bf16.msra.mxu0 %v625
    %657 = vmatprep.subr.bf16.mxu0 0
    %658 = vmatpush1.bf16.msra.mxu0 0
    %659 = vmatprep.subr.bf16.mxu0 0
    %660 = vmatpush1.bf16.msra.mxu0 0
    %661 = vmatprep.subr.bf16.mxu0 0
    %662 = vmatpush1.bf16.msra.mxu0 0
    %663 = vmatprep.subr.bf16.mxu0 0
    %664 = vmatpush1.bf16.msra.mxu0 0
    %665 = vmatprep.subr.bf16.mxu0 0
    %666 = vmatpush1.bf16.msra.mxu0 0
    %667 = vmatprep.subr.bf16.mxu0 0
    %668 = vmatpush1.bf16.msra.mxu0 0
    %669 = vmatprep.subr.bf16.mxu0 0
    %670 = vmatpush1.bf16.msra.mxu0 0
    %671 = vmatprep.subr.bf16.mxu0 0
    %672 = vmatpush1.bf16.msra.mxu0 0
    %673 = vmatprep.subr.bf16.mxu0 0
    %674 = vmatpush1.bf16.msra.mxu0 0
    %675 = vmatprep.subr.bf16.mxu0 0
    %676 = vmatpush1.bf16.msra.mxu0 0
    %677 = vmatprep.subr.bf16.mxu0 0
    %678 = vmatpush1.bf16.msra.mxu0 0
    %679 = vmatprep.subr.bf16.mxu0 0
    %680 = vmatpush1.bf16.msra.mxu0 0
    %681 = vmatprep.subr.bf16.mxu0 0
    %682 = vmatpush1.bf16.msra.mxu0 0
    %683 = vmatprep.subr.bf16.mxu0 0
    %684 = vmatpush1.bf16.msra.mxu0 0
    %685 = vmatprep.mubr.bf16.mxu0 0
    %686 = vmatmul.mubr.bf16.gmra.mrb[0].mxu0 %v630
    %v687 = vpop.f32.mrb[0].mxu0
    %v688 = vadd.f32 %v615, %v687
    %v689 = vpop.f32.mrb[0].mxu0
    %v690 = vpop.f32.mrb[0].mxu0
    %v691 = vadd.f32 %v615, %v690
    %v692 = vpop.f32.mrb[0].mxu0
    %693 = vmatprep.mubr.bf16.mxu0 0
    %694 = vmatmul.mubr.bf16.gmra.mrb[0].mxu0 %v633
    %v695 = vpop.f32.mrb[0].mxu0
    %v696 = vadd.f32 %v615, %v695
    %v697 = vpop.f32.mrb[0].mxu0
    %v698 = vpop.f32.mrb[0].mxu0
    %v699 = vadd.f32 %v615, %v698
    %v700 = vpop.f32.mrb[0].mxu0
    %701 = vmatprep.mubr.bf16.mxu0 0
    %702 = vmatmul.mubr.bf16.gmra.mrb[0].mxu0 %v636
    %v703 = vpop.f32.mrb[0].mxu0
    %v704 = vadd.f32 %v615, %v703
    %v705 = vpop.f32.mrb[0].mxu0
    %v706 = vpop.f32.mrb[0].mxu0
    %v707 = vadd.f32 %v615, %v706
    %v708 = vpop.f32.mrb[0].mxu0
    %709 = vmatprep.mubr.bf16.mxu0 0
    %710 = vmatmul.mubr.bf16.gmra.mrb[0].mxu0 %v639
    %v711 = vpop.f32.mrb[0].mxu0
    %v712 = vadd.f32 %v615, %v711
    %v713 = vpop.f32.mrb[0].mxu0
    %v714 = vpop.f32.mrb[0].mxu0
    %v715 = vadd.f32 %v615, %v714
    %v716 = vpop.f32.mrb[0].mxu0
    %717 = vmatprep.mubr.bf16.mxu0 0
    %718 = vmatmul.mubr.bf16.gmra.mrb[0].mxu0 %v642
    %v719 = vpop.f32.mrb[0].mxu0
    %v720 = vadd.f32 %v615, %v719
    %v721 = vpop.f32.mrb[0].mxu0
    %v722 = vpop.f32.mrb[0].mxu0
    %v723 = vadd.f32 %v615, %v722
    %v724 = vpop.f32.mrb[0].mxu0
    %725 = vmatprep.mubr.bf16.mxu0 0
    %726 = vmatmul.mubr.bf16.gmra.mrb[0].mxu0 %v645
    %v727 = vpop.f32.mrb[0].mxu0
    %v728 = vadd.f32 %v615, %v727
    %v729 = vpop.f32.mrb[0].mxu0
    %v730 = vpop.f32.mrb[0].mxu0
    %v731 = vadd.f32 %v615, %v730
    %v732 = vpop.f32.mrb[0].mxu0
    %733 = vmatprep.mubr.bf16.mxu0 0
    %734 = vmatmul.mubr.bf16.gmra.mrb[0].mxu0 %v648
    %v735 = vpop.f32.mrb[0].mxu0
    %v736 = vadd.f32 %v615, %v735
    %v737 = vpop.f32.mrb[0].mxu0
    %v738 = vpop.f32.mrb[0].mxu0
    %v739 = vadd.f32 %v615, %v738
    %v740 = vpop.f32.mrb[0].mxu0
    %741 = vmatprep.mubr.bf16.mxu0 0
    %742 = vmatmul.mubr.bf16.gmra.mrb[0].mxu0 %v651
    %v743 = vpop.f32.mrb[0].mxu0
    %v744 = vadd.f32 %v615, %v743
    %v745 = vpop.f32.mrb[0].mxu0
    %v746 = vpop.f32.mrb[0].mxu0
    %v747 = vadd.f32 %v615, %v746
    %v748 = vpop.f32.mrb[0].mxu0
    %749 = vdwg.mxu0
    %v750 = vlaneseq
    %v751 = vshrl.u32 %v750, 7
    %v752 = vsub.s32 1, %v751
    %v753 = vrot.slane %v597, %v752
    %v758 = vunpack.c.l.b16 %v555
    %v759 = vunpack.c.l.b16 %v556
    %v760 = vunpack.c.l.b16 %v557
    %v761 = vunpack.c.l.b16 %v558
    %v762 = vpack.c.b16 %v759, %v758
    %v763 = vpack.c.b16 %v761, %v760
    %766 = vmatprep.subr.bf16.mxu0 0
    %767 = vmatpush1.bf16.msra.mxu0 %v762
    %768 = vmatprep.subr.bf16.mxu0 0
    %769 = vmatpush1.bf16.msra.mxu0 %v763
    %770 = vmatprep.subr.bf16.mxu0 0
    %771 = vmatpush1.bf16.msra.mxu0 0
    %772 = vmatprep.subr.bf16.mxu0 0
    %773 = vmatpush1.bf16.msra.mxu0 0
    %774 = vmatprep.subr.bf16.mxu0 0
    %775 = vmatpush1.bf16.msra.mxu0 0
    %776 = vmatprep.subr.bf16.mxu0 0
    %777 = vmatpush1.bf16.msra.mxu0 0
    %778 = vmatprep.subr.bf16.mxu0 0
    %779 = vmatpush1.bf16.msra.mxu0 0
    %780 = vmatprep.subr.bf16.mxu0 0
    %781 = vmatpush1.bf16.msra.mxu0 0
    %782 = vmatprep.subr.bf16.mxu0 0
    %783 = vmatpush1.bf16.msra.mxu0 0
    %784 = vmatprep.subr.bf16.mxu0 0
    %785 = vmatpush1.bf16.msra.mxu0 0
    %786 = vmatprep.subr.bf16.mxu0 0
    %787 = vmatpush1.bf16.msra.mxu0 0
    %788 = vmatprep.subr.bf16.mxu0 0
    %789 = vmatpush1.bf16.msra.mxu0 0
    %790 = vmatprep.subr.bf16.mxu0 0
    %791 = vmatpush1.bf16.msra.mxu0 0
    %792 = vmatprep.subr.bf16.mxu0 0
    %793 = vmatpush1.bf16.msra.mxu0 0
    %794 = vmatprep.subr.bf16.mxu0 0
    %795 = vmatpush1.bf16.msra.mxu0 0
    %796 = vmatprep.subr.bf16.mxu0 0
    %797 = vmatpush1.bf16.msra.mxu0 0
    %798 = vmatprep.mubr.bf16.mxu0 0
    %799 = vmatmul.mubr.bf16.gmra.mrb[0].mxu0 %v630
    %v800 = vpop.f32.mrb[0].mxu0
    %v801 = vadd.f32 %v753, %v800
    %v802 = vpop.f32.mrb[0].mxu0
    %v803 = vpop.f32.mrb[0].mxu0
    %v804 = vadd.f32 %v753, %v803
    %v805 = vpop.f32.mrb[0].mxu0
    %806 = vmatprep.mubr.bf16.mxu0 0
    %807 = vmatmul.mubr.bf16.gmra.mrb[0].mxu0 %v633
    %v808 = vpop.f32.mrb[0].mxu0
    %v809 = vadd.f32 %v753, %v808
    %v810 = vpop.f32.mrb[0].mxu0
    %v811 = vpop.f32.mrb[0].mxu0
    %v812 = vadd.f32 %v753, %v811
    %v813 = vpop.f32.mrb[0].mxu0
    %814 = vmatprep.mubr.bf16.mxu0 0
    %815 = vmatmul.mubr.bf16.gmra.mrb[0].mxu0 %v636
    %v816 = vpop.f32.mrb[0].mxu0
    %v817 = vadd.f32 %v753, %v816
    %v818 = vpop.f32.mrb[0].mxu0
    %v819 = vpop.f32.mrb[0].mxu0
    %v820 = vadd.f32 %v753, %v819
    %v821 = vpop.f32.mrb[0].mxu0
    %822 = vmatprep.mubr.bf16.mxu0 0
    %823 = vmatmul.mubr.bf16.gmra.mrb[0].mxu0 %v639
    %v824 = vpop.f32.mrb[0].mxu0
    %v825 = vadd.f32 %v753, %v824
    %v826 = vpop.f32.mrb[0].mxu0
    %v827 = vpop.f32.mrb[0].mxu0
    %v828 = vadd.f32 %v753, %v827
    %v829 = vpop.f32.mrb[0].mxu0
    %830 = vmatprep.mubr.bf16.mxu0 0
    %831 = vmatmul.mubr.bf16.gmra.mrb[0].mxu0 %v642
    %v832 = vpop.f32.mrb[0].mxu0
    %v833 = vadd.f32 %v753, %v832
    %v834 = vpop.f32.mrb[0].mxu0
    %v835 = vpop.f32.mrb[0].mxu0
    %v836 = vadd.f32 %v753, %v835
    %v837 = vpop.f32.mrb[0].mxu0
    %838 = vmatprep.mubr.bf16.mxu0 0
    %839 = vmatmul.mubr.bf16.gmra.mrb[0].mxu0 %v645
    %v840 = vpop.f32.mrb[0].mxu0
    %v841 = vadd.f32 %v753, %v840
    %v842 = vpop.f32.mrb[0].mxu0
    %v843 = vpop.f32.mrb[0].mxu0
    %v844 = vadd.f32 %v753, %v843
    %v845 = vpop.f32.mrb[0].mxu0
    %846 = vmatprep.mubr.bf16.mxu0 0
    %847 = vmatmul.mubr.bf16.gmra.mrb[0].mxu0 %v648
    %v848 = vpop.f32.mrb[0].mxu0
    %v849 = vadd.f32 %v753, %v848
    %v850 = vpop.f32.mrb[0].mxu0
    %v851 = vpop.f32.mrb[0].mxu0
    %v852 = vadd.f32 %v753, %v851
    %v853 = vpop.f32.mrb[0].mxu0
    %854 = vmatprep.mubr.bf16.mxu0 0
    %855 = vmatmul.mubr.bf16.gmra.mrb[0].mxu0 %v651
    %v856 = vpop.f32.mrb[0].mxu0
    %v857 = vadd.f32 %v753, %v856
    %v858 = vpop.f32.mrb[0].mxu0
    %v859 = vpop.f32.mrb[0].mxu0
    %v860 = vadd.f32 %v753, %v859
    %v861 = vpop.f32.mrb[0].mxu0
    %862 = vdwg.mxu0
    %v863 = vlaneseq
    %v864 = vshrl.u32 %v863, 7
    %v865 = vsub.s32 2, %v864
    %v866 = vrot.slane %v597, %v865
    %v871 = vunpack.c.l.b16 %v573
    %v872 = vunpack.c.l.b16 %v574
    %v873 = vunpack.c.l.b16 %v575
    %v874 = vunpack.c.l.b16 %v576
    %v875 = vpack.c.b16 %v872, %v871
    %v876 = vpack.c.b16 %v874, %v873
    %879 = vmatprep.subr.bf16.mxu0 0
    %880 = vmatpush1.bf16.msra.mxu0 %v875
    %881 = vmatprep.subr.bf16.mxu0 0
    %882 = vmatpush1.bf16.msra.mxu0 %v876
    %883 = vmatprep.subr.bf16.mxu0 0
    %884 = vmatpush1.bf16.msra.mxu0 0
    %885 = vmatprep.subr.bf16.mxu0 0
    %886 = vmatpush1.bf16.msra.mxu0 0
    %887 = vmatprep.subr.bf16.mxu0 0
    %888 = vmatpush1.bf16.msra.mxu0 0
    %889 = vmatprep.subr.bf16.mxu0 0
    %890 = vmatpush1.bf16.msra.mxu0 0
    %891 = vmatprep.subr.bf16.mxu0 0
    %892 = vmatpush1.bf16.msra.mxu0 0
    %893 = vmatprep.subr.bf16.mxu0 0
    %894 = vmatpush1.bf16.msra.mxu0 0
    %895 = vmatprep.subr.bf16.mxu0 0
    %896 = vmatpush1.bf16.msra.mxu0 0
    %897 = vmatprep.subr.bf16.mxu0 0
    %898 = vmatpush1.bf16.msra.mxu0 0
    %899 = vmatprep.subr.bf16.mxu0 0
    %900 = vmatpush1.bf16.msra.mxu0 0
    %901 = vmatprep.subr.bf16.mxu0 0
    %902 = vmatpush1.bf16.msra.mxu0 0
    %903 = vmatprep.subr.bf16.mxu0 0
    %904 = vmatpush1.bf16.msra.mxu0 0
    %905 = vmatprep.subr.bf16.mxu0 0
    %906 = vmatpush1.bf16.msra.mxu0 0
    %907 = vmatprep.subr.bf16.mxu0 0
    %908 = vmatpush1.bf16.msra.mxu0 0
    %909 = vmatprep.subr.bf16.mxu0 0
    %910 = vmatpush1.bf16.msra.mxu0 0
    %911 = vmatprep.mubr.bf16.mxu0 0
    %912 = vmatmul.mubr.bf16.gmra.mrb[0].mxu0 %v630
    %v913 = vpop.f32.mrb[0].mxu0
    %v914 = vadd.f32 %v866, %v913
    %v915 = vpop.f32.mrb[0].mxu0
    %v916 = vpop.f32.mrb[0].mxu0
    %v917 = vadd.f32 %v866, %v916
    %v918 = vpop.f32.mrb[0].mxu0
    %919 = vmatprep.mubr.bf16.mxu0 0
    %920 = vmatmul.mubr.bf16.gmra.mrb[0].mxu0 %v633
    %v921 = vpop.f32.mrb[0].mxu0
    %v922 = vadd.f32 %v866, %v921
    %v923 = vpop.f32.mrb[0].mxu0
    %v924 = vpop.f32.mrb[0].mxu0
    %v925 = vadd.f32 %v866, %v924
    %v926 = vpop.f32.mrb[0].mxu0
    %927 = vmatprep.mubr.bf16.mxu0 0
    %928 = vmatmul.mubr.bf16.gmra.mrb[0].mxu0 %v636
    %v929 = vpop.f32.mrb[0].mxu0
    %v930 = vadd.f32 %v866, %v929
    %v931 = vpop.f32.mrb[0].mxu0
    %v932 = vpop.f32.mrb[0].mxu0
    %v933 = vadd.f32 %v866, %v932
    %v934 = vpop.f32.mrb[0].mxu0
    %935 = vmatprep.mubr.bf16.mxu0 0
    %936 = vmatmul.mubr.bf16.gmra.mrb[0].mxu0 %v639
    %v937 = vpop.f32.mrb[0].mxu0
    %v938 = vadd.f32 %v866, %v937
    %v939 = vpop.f32.mrb[0].mxu0
    %v940 = vpop.f32.mrb[0].mxu0
    %v941 = vadd.f32 %v866, %v940
    %v942 = vpop.f32.mrb[0].mxu0
    %943 = vmatprep.mubr.bf16.mxu0 0
    %944 = vmatmul.mubr.bf16.gmra.mrb[0].mxu0 %v642
    %v945 = vpop.f32.mrb[0].mxu0
    %v946 = vadd.f32 %v866, %v945
    %v947 = vpop.f32.mrb[0].mxu0
    %v948 = vpop.f32.mrb[0].mxu0
    %v949 = vadd.f32 %v866, %v948
    %v950 = vpop.f32.mrb[0].mxu0
    %951 = vmatprep.mubr.bf16.mxu0 0
    %952 = vmatmul.mubr.bf16.gmra.mrb[0].mxu0 %v645
    %v953 = vpop.f32.mrb[0].mxu0
    %v954 = vadd.f32 %v866, %v953
    %v955 = vpop.f32.mrb[0].mxu0
    %v956 = vpop.f32.mrb[0].mxu0
    %v957 = vadd.f32 %v866, %v956
    %v958 = vpop.f32.mrb[0].mxu0
    %959 = vmatprep.mubr.bf16.mxu0 0
    %960 = vmatmul.mubr.bf16.gmra.mrb[0].mxu0 %v648
    %v961 = vpop.f32.mrb[0].mxu0
    %v962 = vadd.f32 %v866, %v961
    %v963 = vpop.f32.mrb[0].mxu0
    %v964 = vpop.f32.mrb[0].mxu0
    %v965 = vadd.f32 %v866, %v964
    %v966 = vpop.f32.mrb[0].mxu0
    %967 = vmatprep.mubr.bf16.mxu0 0
    %968 = vmatmul.mubr.bf16.gmra.mrb[0].mxu0 %v651
    %v969 = vpop.f32.mrb[0].mxu0
    %v970 = vadd.f32 %v866, %v969
    %v971 = vpop.f32.mrb[0].mxu0
    %v972 = vpop.f32.mrb[0].mxu0
    %v973 = vadd.f32 %v866, %v972
    %v974 = vpop.f32.mrb[0].mxu0
    %975 = vdwg.mxu0
    %v976 = vpack.c.bf16 %v691, %v688
    %v977 = vpack.c.bf16 %v699, %v696
    %v978 = vpack.c.bf16 %v707, %v704
    %v979 = vpack.c.bf16 %v715, %v712
    %v980 = vpack.c.bf16 %v804, %v801
    %v981 = vpack.c.bf16 %v812, %v809
    %v982 = vpack.c.bf16 %v820, %v817
    %v983 = vpack.c.bf16 %v828, %v825
    %v984 = vpack.c.bf16 %v917, %v914
    %v985 = vpack.c.bf16 %v925, %v922
    %v986 = vpack.c.bf16 %v933, %v930
    %v987 = vpack.c.bf16 %v941, %v938
    %vm988 = vcmask 64512
    %v990 = vsel %vm988, %v976, 0
    %v993 = vsel %vm988, %v977, 0
    %v996 = vsel %vm988, %v978, 0
    %v999 = vsel %vm988, %v979, 0
    %v1002 = vsel %vm988, %v980, 0
    %v1005 = vsel %vm988, %v981, 0
    %v1008 = vsel %vm988, %v982, 0
    %v1011 = vsel %vm988, %v983, 0
    %1013 = vmatprep.subr.bf16.mxu0 0
    %1014 = vmatpush1.bf16.xpose.msra.mxu0 %v1002
    %1015 = vmatprep.subr.bf16.mxu0 0
    %1016 = vmatpush1.bf16.xpose.msra.mxu0 %v1005
    %1017 = vmatprep.subr.bf16.mxu0 0
    %1018 = vmatpush1.bf16.xpose.msra.mxu0 %v1008
    %1019 = vmatprep.subr.bf16.mxu0 0
    %1020 = vmatpush1.bf16.xpose.msra.mxu0 %v1011
    %1021 = vmatprep.subr.bf16.mxu0 0
    %1022 = vmatpush1.bf16.xpose.msra.mxu0 0
    %1023 = vmatprep.subr.bf16.mxu0 0
    %1024 = vmatpush1.bf16.xpose.msra.mxu0 0
    %1025 = vmatprep.subr.bf16.mxu0 0
    %1026 = vmatpush1.bf16.xpose.msra.mxu0 0
    %1027 = vmatprep.subr.bf16.mxu0 0
    %1028 = vmatpush1.bf16.xpose.msra.mxu0 0
    %1029 = vmatprep.subr.bf16.mxu0 0
    %1030 = vmatpush1.bf16.xpose.msra.mxu0 0
    %1031 = vmatprep.subr.bf16.mxu0 0
    %1032 = vmatpush1.bf16.xpose.msra.mxu0 0
    %1033 = vmatprep.subr.bf16.mxu0 0
    %1034 = vmatpush1.bf16.xpose.msra.mxu0 0
    %1035 = vmatprep.subr.bf16.mxu0 0
    %1036 = vmatpush1.bf16.xpose.msra.mxu0 0
    %1037 = vmatprep.subr.bf16.mxu0 0
    %1038 = vmatpush1.bf16.xpose.msra.mxu0 0
    %1039 = vmatprep.subr.bf16.mxu0 0
    %1040 = vmatpush1.bf16.xpose.msra.mxu0 0
    %1041 = vmatprep.subr.bf16.mxu0 0
    %1042 = vmatpush1.bf16.xpose.msra.mxu0 0
    %1043 = vmatprep.subr.bf16.mxu0 0
    %1044 = vmatpush1.bf16.xpose.msra.mxu0 0
    %1045 = vmatprep.mubr.bf16.mxu0 0
    %1046 = vmatmul.mubr.bf16.gmra.mrb[0].mxu0 %v990
    %v1047 = vpop.f32.mrb[0].mxu0
    %v1048 = vadd.f32 0.0, %v1047
    %v1049 = vpop.f32.mrb[0].mxu0
    %v1050 = vpop.f32.mrb[0].mxu0
    %v1051 = vadd.f32 0.0, %v1050
    %v1052 = vpop.f32.mrb[0].mxu0
    %1053 = vmatprep.mubr.bf16.mxu0 0
    %1054 = vmatmul.mubr.bf16.gmra.mrb[0].mxu0 %v993
    %v1055 = vpop.f32.mrb[0].mxu0
    %v1056 = vadd.f32 0.0, %v1055
    %v1057 = vpop.f32.mrb[0].mxu0
    %v1058 = vpop.f32.mrb[0].mxu0
    %v1059 = vadd.f32 0.0, %v1058
    %v1060 = vpop.f32.mrb[0].mxu0
    %1061 = vmatprep.mubr.bf16.mxu0 0
    %1062 = vmatmul.mubr.bf16.gmra.mrb[0].mxu0 %v996
    %v1063 = vpop.f32.mrb[0].mxu0
    %v1064 = vadd.f32 0.0, %v1063
    %v1065 = vpop.f32.mrb[0].mxu0
    %v1066 = vpop.f32.mrb[0].mxu0
    %v1067 = vadd.f32 0.0, %v1066
    %v1068 = vpop.f32.mrb[0].mxu0
    %1069 = vmatprep.mubr.bf16.mxu0 0
    %1070 = vmatmul.mubr.bf16.gmra.mrb[0].mxu0 %v999
    %v1071 = vpop.f32.mrb[0].mxu0
    %v1072 = vadd.f32 0.0, %v1071
    %v1073 = vpop.f32.mrb[0].mxu0
    %v1074 = vpop.f32.mrb[0].mxu0
    %v1075 = vadd.f32 0.0, %v1074
    %v1076 = vpop.f32.mrb[0].mxu0
    %1077 = vdwg.mxu0
    %vm1078 = vcmask 523264
    %v1079 = vsel %vm1078, %v1048, -inf
    %1080 = vmax.xlane.f32.xlu0 %v1079
    %v1081 = vpop.xlane.xlu0 %1080
    %v1082 = vsel %vm1078, %v1051, -inf
    %1083 = vmax.xlane.f32.xlu0 %v1082
    %v1084 = vpop.xlane.xlu0 %1083
    %v1085 = vsel %vm1078, %v1056, -inf
    %1086 = vmax.xlane.f32.xlu0 %v1085
    %v1087 = vpop.xlane.xlu0 %1086
    %v1088 = vsel %vm1078, %v1059, -inf
    %1089 = vmax.xlane.f32.xlu0 %v1088
    %v1090 = vpop.xlane.xlu0 %1089
    %v1091 = vsel %vm1078, %v1064, -inf
    %1092 = vmax.xlane.f32.xlu0 %v1091
    %v1093 = vpop.xlane.xlu0 %1092
    %v1094 = vsel %vm1078, %v1067, -inf
    %1095 = vmax.xlane.f32.xlu0 %v1094
    %v1096 = vpop.xlane.xlu0 %1095
    %v1097 = vsel %vm1078, %v1072, -inf
    %1098 = vmax.xlane.f32.xlu0 %v1097
    %v1099 = vpop.xlane.xlu0 %1098
    %v1100 = vsel %vm1078, %v1075, -inf
    %1101 = vmax.xlane.f32.xlu0 %v1100
    %v1102 = vpop.xlane.xlu0 %1101
    %v1103 = vsub.f32 %v1048, %v1081
    %v1104 = vsub.f32 %v1051, %v1084
    %v1105 = vsub.f32 %v1056, %v1087
    %v1106 = vsub.f32 %v1059, %v1090
    %v1107 = vsub.f32 %v1064, %v1093
    %v1108 = vsub.f32 %v1067, %v1096
    %v1109 = vsub.f32 %v1072, %v1099
    %v1110 = vsub.f32 %v1075, %v1102
    %v1111 = vmul.f32 %v1103, 1.442695
    %v1112 = vpow.pop %v1111
    %v1113 = vmul.f32 %v1104, 1.442695
    %v1114 = vpow.pop %v1113
    %v1115 = vmul.f32 %v1105, 1.442695
    %v1116 = vpow.pop %v1115
    %v1117 = vmul.f32 %v1106, 1.442695
    %v1118 = vpow.pop %v1117
    %v1119 = vmul.f32 %v1107, 1.442695
    %v1120 = vpow.pop %v1119
    %v1121 = vmul.f32 %v1108, 1.442695
    %v1122 = vpow.pop %v1121
    %v1123 = vmul.f32 %v1109, 1.442695
    %v1124 = vpow.pop %v1123
    %v1125 = vmul.f32 %v1110, 1.442695
    %v1126 = vpow.pop %v1125
    %v1127 = vsel %vm1078, %v1112, 0.0
    %1128 = vadd.xlane.f32.xlu0 %v1127
    %v1129 = vpop.xlane.xlu0 %1128
    %v1130 = vsel %vm1078, %v1114, 0.0
    %1131 = vadd.xlane.f32.xlu0 %v1130
    %v1132 = vpop.xlane.xlu0 %1131
    %v1133 = vsel %vm1078, %v1116, 0.0
    %1134 = vadd.xlane.f32.xlu0 %v1133
    %v1135 = vpop.xlane.xlu0 %1134
    %v1136 = vsel %vm1078, %v1118, 0.0
    %1137 = vadd.xlane.f32.xlu0 %v1136
    %v1138 = vpop.xlane.xlu0 %1137
    %v1139 = vsel %vm1078, %v1120, 0.0
    %1140 = vadd.xlane.f32.xlu0 %v1139
    %v1141 = vpop.xlane.xlu0 %1140
    %v1142 = vsel %vm1078, %v1122, 0.0
    %1143 = vadd.xlane.f32.xlu0 %v1142
    %v1144 = vpop.xlane.xlu0 %1143
    %v1145 = vsel %vm1078, %v1124, 0.0
    %1146 = vadd.xlane.f32.xlu0 %v1145
    %v1147 = vpop.xlane.xlu0 %1146
    %v1148 = vsel %vm1078, %v1126, 0.0
    %1149 = vadd.xlane.f32.xlu0 %v1148
    %v1150 = vpop.xlane.xlu0 %1149
    %v1151 = vrcp.pop %v1129
    %v1152 = vrcp.pop %v1132
    %v1153 = vrcp.pop %v1135
    %v1154 = vrcp.pop %v1138
    %v1155 = vrcp.pop %v1141
    %v1156 = vrcp.pop %v1144
    %v1157 = vrcp.pop %v1147
    %v1158 = vrcp.pop %v1150
    %v1159 = vmul.f32 %v1112, %v1151
    %v1160 = vmul.f32 %v1114, %v1152
    %v1161 = vmul.f32 %v1116, %v1153
    %v1162 = vmul.f32 %v1118, %v1154
    %v1163 = vmul.f32 %v1120, %v1155
    %v1164 = vmul.f32 %v1122, %v1156
    %v1165 = vmul.f32 %v1124, %v1157
    %v1166 = vmul.f32 %v1126, %v1158
    %v1167 = vpack.c.bf16 %v1160, %v1159
    %v1168 = vpack.c.bf16 %v1162, %v1161
    %v1169 = vpack.c.bf16 %v1164, %v1163
    %v1170 = vpack.c.bf16 %v1166, %v1165
    %v1172 = vsel %vm1078, %v1167, 0
    %v1175 = vsel %vm1078, %v1168, 0
    %v1178 = vsel %vm1078, %v1169, 0
    %v1181 = vsel %vm1078, %v1170, 0
    %1183 = vmatprep.subr.bf16.mxu0 0
    %1184 = vmatpush1.bf16.msra.mxu0 %v984
    %1185 = vmatprep.subr.bf16.mxu0 0
    %1186 = vmatpush1.bf16.msra.mxu0 %v985
    %1187 = vmatprep.subr.bf16.mxu0 0
    %1188 = vmatpush1.bf16.msra.mxu0 %v986
    %1189 = vmatprep.subr.bf16.mxu0 0
    %1190 = vmatpush1.bf16.msra.mxu0 %v987
    %1191 = vmatprep.subr.bf16.mxu0 0
    %1192 = vmatpush1.bf16.msra.mxu0 0
    %1193 = vmatprep.subr.bf16.mxu0 0
    %1194 = vmatpush1.bf16.msra.mxu0 0
    %1195 = vmatprep.subr.bf16.mxu0 0
    %1196 = vmatpush1.bf16.msra.mxu0 0
    %1197 = vmatprep.subr.bf16.mxu0 0
    %1198 = vmatpush1.bf16.msra.mxu0 0
    %1199 = vmatprep.subr.bf16.mxu0 0
    %1200 = vmatpush1.bf16.msra.mxu0 0
    %1201 = vmatprep.subr.bf16.mxu0 0
    %1202 = vmatpush1.bf16.msra.mxu0 0
    %1203 = vmatprep.subr.bf16.mxu0 0
    %1204 = vmatpush1.bf16.msra.mxu0 0
    %1205 = vmatprep.subr.bf16.mxu0 0
    %1206 = vmatpush1.bf16.msra.mxu0 0
    %1207 = vmatprep.subr.bf16.mxu0 0
    %1208 = vmatpush1.bf16.msra.mxu0 0
    %1209 = vmatprep.subr.bf16.mxu0 0
    %1210 = vmatpush1.bf16.msra.mxu0 0
    %1211 = vmatprep.subr.bf16.mxu0 0
    %1212 = vmatpush1.bf16.msra.mxu0 0
    %1213 = vmatprep.subr.bf16.mxu0 0
    %1214 = vmatpush1.bf16.msra.mxu0 0
    %1215 = vmatprep.mubr.bf16.mxu0 0
    %1216 = vmatmul.mubr.bf16.gmra.mrb[0].mxu0 %v1172
    %v1217 = vpop.f32.mrb[0].mxu0
    %v1218 = vadd.f32 0.0, %v1217
    %v1219 = vpop.f32.mrb[0].mxu0
    %v1220 = vpop.f32.mrb[0].mxu0
    %v1221 = vadd.f32 0.0, %v1220
    %v1222 = vpop.f32.mrb[0].mxu0
    %1223 = vmatprep.mubr.bf16.mxu0 0
    %1224 = vmatmul.mubr.bf16.gmra.mrb[0].mxu0 %v1175
    %v1225 = vpop.f32.mrb[0].mxu0
    %v1226 = vadd.f32 0.0, %v1225
    %v1227 = vpop.f32.mrb[0].mxu0
    %v1228 = vpop.f32.mrb[0].mxu0
    %v1229 = vadd.f32 0.0, %v1228
    %v1230 = vpop.f32.mrb[0].mxu0
    %1231 = vmatprep.mubr.bf16.mxu0 0
    %1232 = vmatmul.mubr.bf16.gmra.mrb[0].mxu0 %v1178
    %v1233 = vpop.f32.mrb[0].mxu0
    %v1234 = vadd.f32 0.0, %v1233
    %v1235 = vpop.f32.mrb[0].mxu0
    %v1236 = vpop.f32.mrb[0].mxu0
    %v1237 = vadd.f32 0.0, %v1236
    %v1238 = vpop.f32.mrb[0].mxu0
    %1239 = vmatprep.mubr.bf16.mxu0 0
    %1240 = vmatmul.mubr.bf16.gmra.mrb[0].mxu0 %v1181
    %v1241 = vpop.f32.mrb[0].mxu0
    %v1242 = vadd.f32 0.0, %v1241
    %v1243 = vpop.f32.mrb[0].mxu0
    %v1244 = vpop.f32.mrb[0].mxu0
    %v1245 = vadd.f32 0.0, %v1244
    %v1246 = vpop.f32.mrb[0].mxu0
    %1247 = vdwg.mxu0
    %v1248 = vpack.c.bf16 %v723, %v720
    %v1249 = vpack.c.bf16 %v731, %v728
    %v1250 = vpack.c.bf16 %v739, %v736
    %v1251 = vpack.c.bf16 %v747, %v744
    %v1252 = vpack.c.bf16 %v836, %v833
    %v1253 = vpack.c.bf16 %v844, %v841
    %v1254 = vpack.c.bf16 %v852, %v849
    %v1255 = vpack.c.bf16 %v860, %v857
    %v1256 = vpack.c.bf16 %v949, %v946
    %v1257 = vpack.c.bf16 %v957, %v954
    %v1258 = vpack.c.bf16 %v965, %v962
    %v1259 = vpack.c.bf16 %v973, %v970
    %v1261 = vsel %vm988, %v1248, 0
    %v1264 = vsel %vm988, %v1249, 0
    %v1267 = vsel %vm988, %v1250, 0
    %v1270 = vsel %vm988, %v1251, 0
    %v1273 = vsel %vm988, %v1252, 0
    %v1276 = vsel %vm988, %v1253, 0
    %v1279 = vsel %vm988, %v1254, 0
    %v1282 = vsel %vm988, %v1255, 0
    %1284 = vmatprep.subr.bf16.mxu0 0
    %1285 = vmatpush1.bf16.xpose.msra.mxu0 %v1273
    %1286 = vmatprep.subr.bf16.mxu0 0
    %1287 = vmatpush1.bf16.xpose.msra.mxu0 %v1276
    %1288 = vmatprep.subr.bf16.mxu0 0
    %1289 = vmatpush1.bf16.xpose.msra.mxu0 %v1279
    %1290 = vmatprep.subr.bf16.mxu0 0
    %1291 = vmatpush1.bf16.xpose.msra.mxu0 %v1282
    %1292 = vmatprep.subr.bf16.mxu0 0
    %1293 = vmatpush1.bf16.xpose.msra.mxu0 0
    %1294 = vmatprep.subr.bf16.mxu0 0
    %1295 = vmatpush1.bf16.xpose.msra.mxu0 0
    %1296 = vmatprep.subr.bf16.mxu0 0
    %1297 = vmatpush1.bf16.xpose.msra.mxu0 0
    %1298 = vmatprep.subr.bf16.mxu0 0
    %1299 = vmatpush1.bf16.xpose.msra.mxu0 0
    %1300 = vmatprep.subr.bf16.mxu0 0
    %1301 = vmatpush1.bf16.xpose.msra.mxu0 0
    %1302 = vmatprep.subr.bf16.mxu0 0
    %1303 = vmatpush1.bf16.xpose.msra.mxu0 0
    %1304 = vmatprep.subr.bf16.mxu0 0
    %1305 = vmatpush1.bf16.xpose.msra.mxu0 0
    %1306 = vmatprep.subr.bf16.mxu0 0
    %1307 = vmatpush1.bf16.xpose.msra.mxu0 0
    %1308 = vmatprep.subr.bf16.mxu0 0
    %1309 = vmatpush1.bf16.xpose.msra.mxu0 0
    %1310 = vmatprep.subr.bf16.mxu0 0
    %1311 = vmatpush1.bf16.xpose.msra.mxu0 0
    %1312 = vmatprep.subr.bf16.mxu0 0
    %1313 = vmatpush1.bf16.xpose.msra.mxu0 0
    %1314 = vmatprep.subr.bf16.mxu0 0
    %1315 = vmatpush1.bf16.xpose.msra.mxu0 0
    %1316 = vmatprep.mubr.bf16.mxu0 0
    %1317 = vmatmul.mubr.bf16.gmra.mrb[0].mxu0 %v1261
    %v1318 = vpop.f32.mrb[0].mxu0
    %v1319 = vadd.f32 0.0, %v1318
    %v1320 = vpop.f32.mrb[0].mxu0
    %v1321 = vpop.f32.mrb[0].mxu0
    %v1322 = vadd.f32 0.0, %v1321
    %v1323 = vpop.f32.mrb[0].mxu0
    %1324 = vmatprep.mubr.bf16.mxu0 0
    %1325 = vmatmul.mubr.bf16.gmra.mrb[0].mxu0 %v1264
    %v1326 = vpop.f32.mrb[0].mxu0
    %v1327 = vadd.f32 0.0, %v1326
    %v1328 = vpop.f32.mrb[0].mxu0
    %v1329 = vpop.f32.mrb[0].mxu0
    %v1330 = vadd.f32 0.0, %v1329
    %v1331 = vpop.f32.mrb[0].mxu0
    %1332 = vmatprep.mubr.bf16.mxu0 0
    %1333 = vmatmul.mubr.bf16.gmra.mrb[0].mxu0 %v1267
    %v1334 = vpop.f32.mrb[0].mxu0
    %v1335 = vadd.f32 0.0, %v1334
    %v1336 = vpop.f32.mrb[0].mxu0
    %v1337 = vpop.f32.mrb[0].mxu0
    %v1338 = vadd.f32 0.0, %v1337
    %v1339 = vpop.f32.mrb[0].mxu0
    %1340 = vmatprep.mubr.bf16.mxu0 0
    %1341 = vmatmul.mubr.bf16.gmra.mrb[0].mxu0 %v1270
    %v1342 = vpop.f32.mrb[0].mxu0
    %v1343 = vadd.f32 0.0, %v1342
    %v1344 = vpop.f32.mrb[0].mxu0
    %v1345 = vpop.f32.mrb[0].mxu0
    %v1346 = vadd.f32 0.0, %v1345
    %v1347 = vpop.f32.mrb[0].mxu0
    %1348 = vdwg.mxu0
    %v1349 = vsel %vm1078, %v1319, -inf
    %1350 = vmax.xlane.f32.xlu0 %v1349
    %v1351 = vpop.xlane.xlu0 %1350
    %v1352 = vsel %vm1078, %v1322, -inf
    %1353 = vmax.xlane.f32.xlu0 %v1352
    %v1354 = vpop.xlane.xlu0 %1353
    %v1355 = vsel %vm1078, %v1327, -inf
    %1356 = vmax.xlane.f32.xlu0 %v1355
    %v1357 = vpop.xlane.xlu0 %1356
    %v1358 = vsel %vm1078, %v1330, -inf
    %1359 = vmax.xlane.f32.xlu0 %v1358
    %v1360 = vpop.xlane.xlu0 %1359
    %v1361 = vsel %vm1078, %v1335, -inf
    %1362 = vmax.xlane.f32.xlu0 %v1361
    %v1363 = vpop.xlane.xlu0 %1362
    %v1364 = vsel %vm1078, %v1338, -inf
    %1365 = vmax.xlane.f32.xlu0 %v1364
    %v1366 = vpop.xlane.xlu0 %1365
    %v1367 = vsel %vm1078, %v1343, -inf
    %1368 = vmax.xlane.f32.xlu0 %v1367
    %v1369 = vpop.xlane.xlu0 %1368
    %v1370 = vsel %vm1078, %v1346, -inf
    %1371 = vmax.xlane.f32.xlu0 %v1370
    %v1372 = vpop.xlane.xlu0 %1371
    %v1373 = vsub.f32 %v1319, %v1351
    %v1374 = vsub.f32 %v1322, %v1354
    %v1375 = vsub.f32 %v1327, %v1357
    %v1376 = vsub.f32 %v1330, %v1360
    %v1377 = vsub.f32 %v1335, %v1363
    %v1378 = vsub.f32 %v1338, %v1366
    %v1379 = vsub.f32 %v1343, %v1369
    %v1380 = vsub.f32 %v1346, %v1372
    %v1381 = vmul.f32 %v1373, 1.442695
    %v1382 = vpow.pop %v1381
    %v1383 = vmul.f32 %v1374, 1.442695
    %v1384 = vpow.pop %v1383
    %v1385 = vmul.f32 %v1375, 1.442695
    %v1386 = vpow.pop %v1385
    %v1387 = vmul.f32 %v1376, 1.442695
    %v1388 = vpow.pop %v1387
    %v1389 = vmul.f32 %v1377, 1.442695
    %v1390 = vpow.pop %v1389
    %v1391 = vmul.f32 %v1378, 1.442695
    %v1392 = vpow.pop %v1391
    %v1393 = vmul.f32 %v1379, 1.442695
    %v1394 = vpow.pop %v1393
    %v1395 = vmul.f32 %v1380, 1.442695
    %v1396 = vpow.pop %v1395
    %v1397 = vsel %vm1078, %v1382, 0.0
    %1398 = vadd.xlane.f32.xlu0 %v1397
    %v1399 = vpop.xlane.xlu0 %1398
    %v1400 = vsel %vm1078, %v1384, 0.0
    %1401 = vadd.xlane.f32.xlu0 %v1400
    %v1402 = vpop.xlane.xlu0 %1401
    %v1403 = vsel %vm1078, %v1386, 0.0
    %1404 = vadd.xlane.f32.xlu0 %v1403
    %v1405 = vpop.xlane.xlu0 %1404
    %v1406 = vsel %vm1078, %v1388, 0.0
    %1407 = vadd.xlane.f32.xlu0 %v1406
    %v1408 = vpop.xlane.xlu0 %1407
    %v1409 = vsel %vm1078, %v1390, 0.0
    %1410 = vadd.xlane.f32.xlu0 %v1409
    %v1411 = vpop.xlane.xlu0 %1410
    %v1412 = vsel %vm1078, %v1392, 0.0
    %1413 = vadd.xlane.f32.xlu0 %v1412
    %v1414 = vpop.xlane.xlu0 %1413
    %v1415 = vsel %vm1078, %v1394, 0.0
    %1416 = vadd.xlane.f32.xlu0 %v1415
    %v1417 = vpop.xlane.xlu0 %1416
    %v1418 = vsel %vm1078, %v1396, 0.0
    %1419 = vadd.xlane.f32.xlu0 %v1418
    %v1420 = vpop.xlane.xlu0 %1419
    %v1421 = vrcp.pop %v1399
    %v1422 = vrcp.pop %v1402
    %v1423 = vrcp.pop %v1405
    %v1424 = vrcp.pop %v1408
    %v1425 = vrcp.pop %v1411
    %v1426 = vrcp.pop %v1414
    %v1427 = vrcp.pop %v1417
    %v1428 = vrcp.pop %v1420
    %v1429 = vmul.f32 %v1382, %v1421
    %v1430 = vmul.f32 %v1384, %v1422
    %v1431 = vmul.f32 %v1386, %v1423
    %v1432 = vmul.f32 %v1388, %v1424
    %v1433 = vmul.f32 %v1390, %v1425
    %v1434 = vmul.f32 %v1392, %v1426
    %v1435 = vmul.f32 %v1394, %v1427
    %v1436 = vmul.f32 %v1396, %v1428
    %v1437 = vpack.c.bf16 %v1430, %v1429
    %v1438 = vpack.c.bf16 %v1432, %v1431
    %v1439 = vpack.c.bf16 %v1434, %v1433
    %v1440 = vpack.c.bf16 %v1436, %v1435
    %v1442 = vsel %vm1078, %v1437, 0
    %v1445 = vsel %vm1078, %v1438, 0
    %v1448 = vsel %vm1078, %v1439, 0
    %v1451 = vsel %vm1078, %v1440, 0
    %1453 = vmatprep.subr.bf16.mxu0 0
    %1454 = vmatpush1.bf16.msra.mxu0 %v1256
    %1455 = vmatprep.subr.bf16.mxu0 0
    %1456 = vmatpush1.bf16.msra.mxu0 %v1257
    %1457 = vmatprep.subr.bf16.mxu0 0
    %1458 = vmatpush1.bf16.msra.mxu0 %v1258
    %1459 = vmatprep.subr.bf16.mxu0 0
    %1460 = vmatpush1.bf16.msra.mxu0 %v1259
    %1461 = vmatprep.subr.bf16.mxu0 0
    %1462 = vmatpush1.bf16.msra.mxu0 0
    %1463 = vmatprep.subr.bf16.mxu0 0
    %1464 = vmatpush1.bf16.msra.mxu0 0
    %1465 = vmatprep.subr.bf16.mxu0 0
    %1466 = vmatpush1.bf16.msra.mxu0 0
    %1467 = vmatprep.subr.bf16.mxu0 0
    %1468 = vmatpush1.bf16.msra.mxu0 0
    %1469 = vmatprep.subr.bf16.mxu0 0
    %1470 = vmatpush1.bf16.msra.mxu0 0
    %1471 = vmatprep.subr.bf16.mxu0 0
    %1472 = vmatpush1.bf16.msra.mxu0 0
    %1473 = vmatprep.subr.bf16.mxu0 0
    %1474 = vmatpush1.bf16.msra.mxu0 0
    %1475 = vmatprep.subr.bf16.mxu0 0
    %1476 = vmatpush1.bf16.msra.mxu0 0
    %1477 = vmatprep.subr.bf16.mxu0 0
    %1478 = vmatpush1.bf16.msra.mxu0 0
    %1479 = vmatprep.subr.bf16.mxu0 0
    %1480 = vmatpush1.bf16.msra.mxu0 0
    %1481 = vmatprep.subr.bf16.mxu0 0
    %1482 = vmatpush1.bf16.msra.mxu0 0
    %1483 = vmatprep.subr.bf16.mxu0 0
    %1484 = vmatpush1.bf16.msra.mxu0 0
    %1485 = vmatprep.mubr.bf16.mxu0 0
    %1486 = vmatmul.mubr.bf16.gmra.mrb[0].mxu0 %v1442
    %v1487 = vpop.f32.mrb[0].mxu0
    %v1488 = vadd.f32 0.0, %v1487
    %v1489 = vpop.f32.mrb[0].mxu0
    %v1490 = vpop.f32.mrb[0].mxu0
    %v1491 = vadd.f32 0.0, %v1490
    %v1492 = vpop.f32.mrb[0].mxu0
    %1493 = vmatprep.mubr.bf16.mxu0 0
    %1494 = vmatmul.mubr.bf16.gmra.mrb[0].mxu0 %v1445
    %v1495 = vpop.f32.mrb[0].mxu0
    %v1496 = vadd.f32 0.0, %v1495
    %v1497 = vpop.f32.mrb[0].mxu0
    %v1498 = vpop.f32.mrb[0].mxu0
    %v1499 = vadd.f32 0.0, %v1498
    %v1500 = vpop.f32.mrb[0].mxu0
    %1501 = vmatprep.mubr.bf16.mxu0 0
    %1502 = vmatmul.mubr.bf16.gmra.mrb[0].mxu0 %v1448
    %v1503 = vpop.f32.mrb[0].mxu0
    %v1504 = vadd.f32 0.0, %v1503
    %v1505 = vpop.f32.mrb[0].mxu0
    %v1506 = vpop.f32.mrb[0].mxu0
    %v1507 = vadd.f32 0.0, %v1506
    %v1508 = vpop.f32.mrb[0].mxu0
    %1509 = vmatprep.mubr.bf16.mxu0 0
    %1510 = vmatmul.mubr.bf16.gmra.mrb[0].mxu0 %v1451
    %v1511 = vpop.f32.mrb[0].mxu0
    %v1512 = vadd.f32 0.0, %v1511
    %v1513 = vpop.f32.mrb[0].mxu0
    %v1514 = vpop.f32.mrb[0].mxu0
    %v1515 = vadd.f32 0.0, %v1514
    %v1516 = vpop.f32.mrb[0].mxu0
    %1517 = vdwg.mxu0
    %v1518 = vpack.c.bf16 %v1221, %v1218
    %v1519 = vpack.c.bf16 %v1229, %v1226
    %v1520 = vpack.c.bf16 %v1237, %v1234
    %v1521 = vpack.c.bf16 %v1245, %v1242
    %v1522 = vpack.c.bf16 %v1491, %v1488
    %v1523 = vpack.c.bf16 %v1499, %v1496
    %v1524 = vpack.c.bf16 %v1507, %v1504
    %v1525 = vpack.c.bf16 %v1515, %v1512
    %v1526 = vlaneseq
    %v1527 = vshrl.u32 %v1526, 7
    %v1528 = vsub.s32 0, %v1527
    %v1529 = vrot.slane %v598, %v1528
    %v1534 = vunpack.c.l.b16 %v541
    %v1535 = vunpack.c.l.b16 %v542
    %v1536 = vunpack.c.l.b16 %v543
    %v1537 = vunpack.c.l.b16 %v544
    %v1538 = vpack.c.b16 %v1535, %v1534
    %v1539 = vpack.c.b16 %v1537, %v1536
    %1542 = vmatprep.subr.bf16.mxu0 0
    %1543 = vmatpush1.bf16.msra.mxu0 %v1538
    %1544 = vmatprep.subr.bf16.mxu0 0
    %1545 = vmatpush1.bf16.msra.mxu0 %v1539
    %1546 = vmatprep.subr.bf16.mxu0 0
    %1547 = vmatpush1.bf16.msra.mxu0 0
    %1548 = vmatprep.subr.bf16.mxu0 0
    %1549 = vmatpush1.bf16.msra.mxu0 0
    %1550 = vmatprep.subr.bf16.mxu0 0
    %1551 = vmatpush1.bf16.msra.mxu0 0
    %1552 = vmatprep.subr.bf16.mxu0 0
    %1553 = vmatpush1.bf16.msra.mxu0 0
    %1554 = vmatprep.subr.bf16.mxu0 0
    %1555 = vmatpush1.bf16.msra.mxu0 0
    %1556 = vmatprep.subr.bf16.mxu0 0
    %1557 = vmatpush1.bf16.msra.mxu0 0
    %1558 = vmatprep.subr.bf16.mxu0 0
    %1559 = vmatpush1.bf16.msra.mxu0 0
    %1560 = vmatprep.subr.bf16.mxu0 0
    %1561 = vmatpush1.bf16.msra.mxu0 0
    %1562 = vmatprep.subr.bf16.mxu0 0
    %1563 = vmatpush1.bf16.msra.mxu0 0
    %1564 = vmatprep.subr.bf16.mxu0 0
    %1565 = vmatpush1.bf16.msra.mxu0 0
    %1566 = vmatprep.subr.bf16.mxu0 0
    %1567 = vmatpush1.bf16.msra.mxu0 0
    %1568 = vmatprep.subr.bf16.mxu0 0
    %1569 = vmatpush1.bf16.msra.mxu0 0
    %1570 = vmatprep.subr.bf16.mxu0 0
    %1571 = vmatpush1.bf16.msra.mxu0 0
    %1572 = vmatprep.subr.bf16.mxu0 0
    %1573 = vmatpush1.bf16.msra.mxu0 0
    %1574 = vmatprep.mubr.bf16.mxu0 0
    %1575 = vmatmul.mubr.bf16.gmra.mrb[0].mxu0 %v630
    %v1576 = vpop.f32.mrb[0].mxu0
    %v1577 = vadd.f32 %v1529, %v1576
    %v1578 = vpop.f32.mrb[0].mxu0
    %v1579 = vpop.f32.mrb[0].mxu0
    %v1580 = vadd.f32 %v1529, %v1579
    %v1581 = vpop.f32.mrb[0].mxu0
    %1582 = vmatprep.mubr.bf16.mxu0 0
    %1583 = vmatmul.mubr.bf16.gmra.mrb[0].mxu0 %v633
    %v1584 = vpop.f32.mrb[0].mxu0
    %v1585 = vadd.f32 %v1529, %v1584
    %v1586 = vpop.f32.mrb[0].mxu0
    %v1587 = vpop.f32.mrb[0].mxu0
    %v1588 = vadd.f32 %v1529, %v1587
    %v1589 = vpop.f32.mrb[0].mxu0
    %1590 = vmatprep.mubr.bf16.mxu0 0
    %1591 = vmatmul.mubr.bf16.gmra.mrb[0].mxu0 %v636
    %v1592 = vpop.f32.mrb[0].mxu0
    %v1593 = vadd.f32 %v1529, %v1592
    %v1594 = vpop.f32.mrb[0].mxu0
    %v1595 = vpop.f32.mrb[0].mxu0
    %v1596 = vadd.f32 %v1529, %v1595
    %v1597 = vpop.f32.mrb[0].mxu0
    %1598 = vmatprep.mubr.bf16.mxu0 0
    %1599 = vmatmul.mubr.bf16.gmra.mrb[0].mxu0 %v639
    %v1600 = vpop.f32.mrb[0].mxu0
    %v1601 = vadd.f32 %v1529, %v1600
    %v1602 = vpop.f32.mrb[0].mxu0
    %v1603 = vpop.f32.mrb[0].mxu0
    %v1604 = vadd.f32 %v1529, %v1603
    %v1605 = vpop.f32.mrb[0].mxu0
    %1606 = vmatprep.mubr.bf16.mxu0 0
    %1607 = vmatmul.mubr.bf16.gmra.mrb[0].mxu0 %v642
    %v1608 = vpop.f32.mrb[0].mxu0
    %v1609 = vadd.f32 %v1529, %v1608
    %v1610 = vpop.f32.mrb[0].mxu0
    %v1611 = vpop.f32.mrb[0].mxu0
    %v1612 = vadd.f32 %v1529, %v1611
    %v1613 = vpop.f32.mrb[0].mxu0
    %1614 = vmatprep.mubr.bf16.mxu0 0
    %1615 = vmatmul.mubr.bf16.gmra.mrb[0].mxu0 %v645
    %v1616 = vpop.f32.mrb[0].mxu0
    %v1617 = vadd.f32 %v1529, %v1616
    %v1618 = vpop.f32.mrb[0].mxu0
    %v1619 = vpop.f32.mrb[0].mxu0
    %v1620 = vadd.f32 %v1529, %v1619
    %v1621 = vpop.f32.mrb[0].mxu0
    %1622 = vmatprep.mubr.bf16.mxu0 0
    %1623 = vmatmul.mubr.bf16.gmra.mrb[0].mxu0 %v648
    %v1624 = vpop.f32.mrb[0].mxu0
    %v1625 = vadd.f32 %v1529, %v1624
    %v1626 = vpop.f32.mrb[0].mxu0
    %v1627 = vpop.f32.mrb[0].mxu0
    %v1628 = vadd.f32 %v1529, %v1627
    %v1629 = vpop.f32.mrb[0].mxu0
    %1630 = vmatprep.mubr.bf16.mxu0 0
    %1631 = vmatmul.mubr.bf16.gmra.mrb[0].mxu0 %v651
    %v1632 = vpop.f32.mrb[0].mxu0
    %v1633 = vadd.f32 %v1529, %v1632
    %v1634 = vpop.f32.mrb[0].mxu0
    %v1635 = vpop.f32.mrb[0].mxu0
    %v1636 = vadd.f32 %v1529, %v1635
    %v1637 = vpop.f32.mrb[0].mxu0
    %1638 = vdwg.mxu0
    %v1639 = vlaneseq
    %v1640 = vshrl.u32 %v1639, 7
    %v1641 = vsub.s32 1, %v1640
    %v1642 = vrot.slane %v598, %v1641
    %v1647 = vunpack.c.l.b16 %v559
    %v1648 = vunpack.c.l.b16 %v560
    %v1649 = vunpack.c.l.b16 %v561
    %v1650 = vunpack.c.l.b16 %v562
    %v1651 = vpack.c.b16 %v1648, %v1647
    %v1652 = vpack.c.b16 %v1650, %v1649
    %1655 = vmatprep.subr.bf16.mxu0 0
    %1656 = vmatpush1.bf16.msra.mxu0 %v1651
    %1657 = vmatprep.subr.bf16.mxu0 0
    %1658 = vmatpush1.bf16.msra.mxu0 %v1652
    %1659 = vmatprep.subr.bf16.mxu0 0
    %1660 = vmatpush1.bf16.msra.mxu0 0
    %1661 = vmatprep.subr.bf16.mxu0 0
    %1662 = vmatpush1.bf16.msra.mxu0 0
    %1663 = vmatprep.subr.bf16.mxu0 0
    %1664 = vmatpush1.bf16.msra.mxu0 0
    %1665 = vmatprep.subr.bf16.mxu0 0
    %1666 = vmatpush1.bf16.msra.mxu0 0
    %1667 = vmatprep.subr.bf16.mxu0 0
    %1668 = vmatpush1.bf16.msra.mxu0 0
    %1669 = vmatprep.subr.bf16.mxu0 0
    %1670 = vmatpush1.bf16.msra.mxu0 0
    %1671 = vmatprep.subr.bf16.mxu0 0
    %1672 = vmatpush1.bf16.msra.mxu0 0
    %1673 = vmatprep.subr.bf16.mxu0 0
    %1674 = vmatpush1.bf16.msra.mxu0 0
    %1675 = vmatprep.subr.bf16.mxu0 0
    %1676 = vmatpush1.bf16.msra.mxu0 0
    %1677 = vmatprep.subr.bf16.mxu0 0
    %1678 = vmatpush1.bf16.msra.mxu0 0
    %1679 = vmatprep.subr.bf16.mxu0 0
    %1680 = vmatpush1.bf16.msra.mxu0 0
    %1681 = vmatprep.subr.bf16.mxu0 0
    %1682 = vmatpush1.bf16.msra.mxu0 0
    %1683 = vmatprep.subr.bf16.mxu0 0
    %1684 = vmatpush1.bf16.msra.mxu0 0
    %1685 = vmatprep.subr.bf16.mxu0 0
    %1686 = vmatpush1.bf16.msra.mxu0 0
    %1687 = vmatprep.mubr.bf16.mxu0 0
    %1688 = vmatmul.mubr.bf16.gmra.mrb[0].mxu0 %v630
    %v1689 = vpop.f32.mrb[0].mxu0
    %v1690 = vadd.f32 %v1642, %v1689
    %v1691 = vpop.f32.mrb[0].mxu0
    %v1692 = vpop.f32.mrb[0].mxu0
    %v1693 = vadd.f32 %v1642, %v1692
    %v1694 = vpop.f32.mrb[0].mxu0
    %1695 = vmatprep.mubr.bf16.mxu0 0
    %1696 = vmatmul.mubr.bf16.gmra.mrb[0].mxu0 %v633
    %v1697 = vpop.f32.mrb[0].mxu0
    %v1698 = vadd.f32 %v1642, %v1697
    %v1699 = vpop.f32.mrb[0].mxu0
    %v1700 = vpop.f32.mrb[0].mxu0
    %v1701 = vadd.f32 %v1642, %v1700
    %v1702 = vpop.f32.mrb[0].mxu0
    %1703 = vmatprep.mubr.bf16.mxu0 0
    %1704 = vmatmul.mubr.bf16.gmra.mrb[0].mxu0 %v636
    %v1705 = vpop.f32.mrb[0].mxu0
    %v1706 = vadd.f32 %v1642, %v1705
    %v1707 = vpop.f32.mrb[0].mxu0
    %v1708 = vpop.f32.mrb[0].mxu0
    %v1709 = vadd.f32 %v1642, %v1708
    %v1710 = vpop.f32.mrb[0].mxu0
    %1711 = vmatprep.mubr.bf16.mxu0 0
    %1712 = vmatmul.mubr.bf16.gmra.mrb[0].mxu0 %v639
    %v1713 = vpop.f32.mrb[0].mxu0
    %v1714 = vadd.f32 %v1642, %v1713
    %v1715 = vpop.f32.mrb[0].mxu0
    %v1716 = vpop.f32.mrb[0].mxu0
    %v1717 = vadd.f32 %v1642, %v1716
    %v1718 = vpop.f32.mrb[0].mxu0
    %1719 = vmatprep.mubr.bf16.mxu0 0
    %1720 = vmatmul.mubr.bf16.gmra.mrb[0].mxu0 %v642
    %v1721 = vpop.f32.mrb[0].mxu0
    %v1722 = vadd.f32 %v1642, %v1721
    %v1723 = vpop.f32.mrb[0].mxu0
    %v1724 = vpop.f32.mrb[0].mxu0
    %v1725 = vadd.f32 %v1642, %v1724
    %v1726 = vpop.f32.mrb[0].mxu0
    %1727 = vmatprep.mubr.bf16.mxu0 0
    %1728 = vmatmul.mubr.bf16.gmra.mrb[0].mxu0 %v645
    %v1729 = vpop.f32.mrb[0].mxu0
    %v1730 = vadd.f32 %v1642, %v1729
    %v1731 = vpop.f32.mrb[0].mxu0
    %v1732 = vpop.f32.mrb[0].mxu0
    %v1733 = vadd.f32 %v1642, %v1732
    %v1734 = vpop.f32.mrb[0].mxu0
    %1735 = vmatprep.mubr.bf16.mxu0 0
    %1736 = vmatmul.mubr.bf16.gmra.mrb[0].mxu0 %v648
    %v1737 = vpop.f32.mrb[0].mxu0
    %v1738 = vadd.f32 %v1642, %v1737
    %v1739 = vpop.f32.mrb[0].mxu0
    %v1740 = vpop.f32.mrb[0].mxu0
    %v1741 = vadd.f32 %v1642, %v1740
    %v1742 = vpop.f32.mrb[0].mxu0
    %1743 = vmatprep.mubr.bf16.mxu0 0
    %1744 = vmatmul.mubr.bf16.gmra.mrb[0].mxu0 %v651
    %v1745 = vpop.f32.mrb[0].mxu0
    %v1746 = vadd.f32 %v1642, %v1745
    %v1747 = vpop.f32.mrb[0].mxu0
    %v1748 = vpop.f32.mrb[0].mxu0
    %v1749 = vadd.f32 %v1642, %v1748
    %v1750 = vpop.f32.mrb[0].mxu0
    %1751 = vdwg.mxu0
    %v1752 = vlaneseq
    %v1753 = vshrl.u32 %v1752, 7
    %v1754 = vsub.s32 2, %v1753
    %v1755 = vrot.slane %v598, %v1754
    %v1760 = vunpack.c.l.b16 %v577
    %v1761 = vunpack.c.l.b16 %v578
    %v1762 = vunpack.c.l.b16 %v579
    %v1763 = vunpack.c.l.b16 %v580
    %v1764 = vpack.c.b16 %v1761, %v1760
    %v1765 = vpack.c.b16 %v1763, %v1762
    %1768 = vmatprep.subr.bf16.mxu0 0
    %1769 = vmatpush1.bf16.msra.mxu0 %v1764
    %1770 = vmatprep.subr.bf16.mxu0 0
    %1771 = vmatpush1.bf16.msra.mxu0 %v1765
    %1772 = vmatprep.subr.bf16.mxu0 0
    %1773 = vmatpush1.bf16.msra.mxu0 0
    %1774 = vmatprep.subr.bf16.mxu0 0
    %1775 = vmatpush1.bf16.msra.mxu0 0
    %1776 = vmatprep.subr.bf16.mxu0 0
    %1777 = vmatpush1.bf16.msra.mxu0 0
    %1778 = vmatprep.subr.bf16.mxu0 0
    %1779 = vmatpush1.bf16.msra.mxu0 0
    %1780 = vmatprep.subr.bf16.mxu0 0
    %1781 = vmatpush1.bf16.msra.mxu0 0
    %1782 = vmatprep.subr.bf16.mxu0 0
    %1783 = vmatpush1.bf16.msra.mxu0 0
    %1784 = vmatprep.subr.bf16.mxu0 0
    %1785 = vmatpush1.bf16.msra.mxu0 0
    %1786 = vmatprep.subr.bf16.mxu0 0
    %1787 = vmatpush1.bf16.msra.mxu0 0
    %1788 = vmatprep.subr.bf16.mxu0 0
    %1789 = vmatpush1.bf16.msra.mxu0 0
    %1790 = vmatprep.subr.bf16.mxu0 0
    %1791 = vmatpush1.bf16.msra.mxu0 0
    %1792 = vmatprep.subr.bf16.mxu0 0
    %1793 = vmatpush1.bf16.msra.mxu0 0
    %1794 = vmatprep.subr.bf16.mxu0 0
    %1795 = vmatpush1.bf16.msra.mxu0 0
    %1796 = vmatprep.subr.bf16.mxu0 0
    %1797 = vmatpush1.bf16.msra.mxu0 0
    %1798 = vmatprep.subr.bf16.mxu0 0
    %1799 = vmatpush1.bf16.msra.mxu0 0
    %1800 = vmatprep.mubr.bf16.mxu0 0
    %1801 = vmatmul.mubr.bf16.gmra.mrb[0].mxu0 %v630
    %v1802 = vpop.f32.mrb[0].mxu0
    %v1803 = vadd.f32 %v1755, %v1802
    %v1804 = vpop.f32.mrb[0].mxu0
    %v1805 = vpop.f32.mrb[0].mxu0
    %v1806 = vadd.f32 %v1755, %v1805
    %v1807 = vpop.f32.mrb[0].mxu0
    %1808 = vmatprep.mubr.bf16.mxu0 0
    %1809 = vmatmul.mubr.bf16.gmra.mrb[0].mxu0 %v633
    %v1810 = vpop.f32.mrb[0].mxu0
    %v1811 = vadd.f32 %v1755, %v1810
    %v1812 = vpop.f32.mrb[0].mxu0
    %v1813 = vpop.f32.mrb[0].mxu0
    %v1814 = vadd.f32 %v1755, %v1813
    %v1815 = vpop.f32.mrb[0].mxu0
    %1816 = vmatprep.mubr.bf16.mxu0 0
    %1817 = vmatmul.mubr.bf16.gmra.mrb[0].mxu0 %v636
    %v1818 = vpop.f32.mrb[0].mxu0
    %v1819 = vadd.f32 %v1755, %v1818
    %v1820 = vpop.f32.mrb[0].mxu0
    %v1821 = vpop.f32.mrb[0].mxu0
    %v1822 = vadd.f32 %v1755, %v1821
    %v1823 = vpop.f32.mrb[0].mxu0
    %1824 = vmatprep.mubr.bf16.mxu0 0
    %1825 = vmatmul.mubr.bf16.gmra.mrb[0].mxu0 %v639
    %v1826 = vpop.f32.mrb[0].mxu0
    %v1827 = vadd.f32 %v1755, %v1826
    %v1828 = vpop.f32.mrb[0].mxu0
    %v1829 = vpop.f32.mrb[0].mxu0
    %v1830 = vadd.f32 %v1755, %v1829
    %v1831 = vpop.f32.mrb[0].mxu0
    %1832 = vmatprep.mubr.bf16.mxu0 0
    %1833 = vmatmul.mubr.bf16.gmra.mrb[0].mxu0 %v642
    %v1834 = vpop.f32.mrb[0].mxu0
    %v1835 = vadd.f32 %v1755, %v1834
    %v1836 = vpop.f32.mrb[0].mxu0
    %v1837 = vpop.f32.mrb[0].mxu0
    %v1838 = vadd.f32 %v1755, %v1837
    %v1839 = vpop.f32.mrb[0].mxu0
    %1840 = vmatprep.mubr.bf16.mxu0 0
    %1841 = vmatmul.mubr.bf16.gmra.mrb[0].mxu0 %v645
    %v1842 = vpop.f32.mrb[0].mxu0
    %v1843 = vadd.f32 %v1755, %v1842
    %v1844 = vpop.f32.mrb[0].mxu0
    %v1845 = vpop.f32.mrb[0].mxu0
    %v1846 = vadd.f32 %v1755, %v1845
    %v1847 = vpop.f32.mrb[0].mxu0
    %1848 = vmatprep.mubr.bf16.mxu0 0
    %1849 = vmatmul.mubr.bf16.gmra.mrb[0].mxu0 %v648
    %v1850 = vpop.f32.mrb[0].mxu0
    %v1851 = vadd.f32 %v1755, %v1850
    %v1852 = vpop.f32.mrb[0].mxu0
    %v1853 = vpop.f32.mrb[0].mxu0
    %v1854 = vadd.f32 %v1755, %v1853
    %v1855 = vpop.f32.mrb[0].mxu0
    %1856 = vmatprep.mubr.bf16.mxu0 0
    %1857 = vmatmul.mubr.bf16.gmra.mrb[0].mxu0 %v651
    %v1858 = vpop.f32.mrb[0].mxu0
    %v1859 = vadd.f32 %v1755, %v1858
    %v1860 = vpop.f32.mrb[0].mxu0
    %v1861 = vpop.f32.mrb[0].mxu0
    %v1862 = vadd.f32 %v1755, %v1861
    %v1863 = vpop.f32.mrb[0].mxu0
    %1864 = vdwg.mxu0
    %v1865 = vpack.c.bf16 %v1580, %v1577
    %v1866 = vpack.c.bf16 %v1588, %v1585
    %v1867 = vpack.c.bf16 %v1596, %v1593
    %v1868 = vpack.c.bf16 %v1604, %v1601
    %v1869 = vpack.c.bf16 %v1693, %v1690
    %v1870 = vpack.c.bf16 %v1701, %v1698
    %v1871 = vpack.c.bf16 %v1709, %v1706
    %v1872 = vpack.c.bf16 %v1717, %v1714
    %v1873 = vpack.c.bf16 %v1806, %v1803
    %v1874 = vpack.c.bf16 %v1814, %v1811
    %v1875 = vpack.c.bf16 %v1822, %v1819
    %v1876 = vpack.c.bf16 %v1830, %v1827
    %v1878 = vsel %vm988, %v1865, 0
    %v1881 = vsel %vm988, %v1866, 0
    %v1884 = vsel %vm988, %v1867, 0
    %v1887 = vsel %vm988, %v1868, 0
    %v1890 = vsel %vm988, %v1869, 0
    %v1893 = vsel %vm988, %v1870, 0
    %v1896 = vsel %vm988, %v1871, 0
    %v1899 = vsel %vm988, %v1872, 0
    %1901 = vmatprep.subr.bf16.mxu0 0
    %1902 = vmatpush1.bf16.xpose.msra.mxu0 %v1890
    %1903 = vmatprep.subr.bf16.mxu0 0
    %1904 = vmatpush1.bf16.xpose.msra.mxu0 %v1893
    %1905 = vmatprep.subr.bf16.mxu0 0
    %1906 = vmatpush1.bf16.xpose.msra.mxu0 %v1896
    %1907 = vmatprep.subr.bf16.mxu0 0
    %1908 = vmatpush1.bf16.xpose.msra.mxu0 %v1899
    %1909 = vmatprep.subr.bf16.mxu0 0
    %1910 = vmatpush1.bf16.xpose.msra.mxu0 0
    %1911 = vmatprep.subr.bf16.mxu0 0
    %1912 = vmatpush1.bf16.xpose.msra.mxu0 0
    %1913 = vmatprep.subr.bf16.mxu0 0
    %1914 = vmatpush1.bf16.xpose.msra.mxu0 0
    %1915 = vmatprep.subr.bf16.mxu0 0
    %1916 = vmatpush1.bf16.xpose.msra.mxu0 0
    %1917 = vmatprep.subr.bf16.mxu0 0
    %1918 = vmatpush1.bf16.xpose.msra.mxu0 0
    %1919 = vmatprep.subr.bf16.mxu0 0
    %1920 = vmatpush1.bf16.xpose.msra.mxu0 0
    %1921 = vmatprep.subr.bf16.mxu0 0
    %1922 = vmatpush1.bf16.xpose.msra.mxu0 0
    %1923 = vmatprep.subr.bf16.mxu0 0
    %1924 = vmatpush1.bf16.xpose.msra.mxu0 0
    %1925 = vmatprep.subr.bf16.mxu0 0
    %1926 = vmatpush1.bf16.xpose.msra.mxu0 0
    %1927 = vmatprep.subr.bf16.mxu0 0
    %1928 = vmatpush1.bf16.xpose.msra.mxu0 0
    %1929 = vmatprep.subr.bf16.mxu0 0
    %1930 = vmatpush1.bf16.xpose.msra.mxu0 0
    %1931 = vmatprep.subr.bf16.mxu0 0
    %1932 = vmatpush1.bf16.xpose.msra.mxu0 0
    %1933 = vmatprep.mubr.bf16.mxu0 0
    %1934 = vmatmul.mubr.bf16.gmra.mrb[0].mxu0 %v1878
    %v1935 = vpop.f32.mrb[0].mxu0
    %v1936 = vadd.f32 0.0, %v1935
    %v1937 = vpop.f32.mrb[0].mxu0
    %v1938 = vpop.f32.mrb[0].mxu0
    %v1939 = vadd.f32 0.0, %v1938
    %v1940 = vpop.f32.mrb[0].mxu0
    %1941 = vmatprep.mubr.bf16.mxu0 0
    %1942 = vmatmul.mubr.bf16.gmra.mrb[0].mxu0 %v1881
    %v1943 = vpop.f32.mrb[0].mxu0
    %v1944 = vadd.f32 0.0, %v1943
    %v1945 = vpop.f32.mrb[0].mxu0
    %v1946 = vpop.f32.mrb[0].mxu0
    %v1947 = vadd.f32 0.0, %v1946
    %v1948 = vpop.f32.mrb[0].mxu0
    %1949 = vmatprep.mubr.bf16.mxu0 0
    %1950 = vmatmul.mubr.bf16.gmra.mrb[0].mxu0 %v1884
    %v1951 = vpop.f32.mrb[0].mxu0
    %v1952 = vadd.f32 0.0, %v1951
    %v1953 = vpop.f32.mrb[0].mxu0
    %v1954 = vpop.f32.mrb[0].mxu0
    %v1955 = vadd.f32 0.0, %v1954
    %v1956 = vpop.f32.mrb[0].mxu0
    %1957 = vmatprep.mubr.bf16.mxu0 0
    %1958 = vmatmul.mubr.bf16.gmra.mrb[0].mxu0 %v1887
    %v1959 = vpop.f32.mrb[0].mxu0
    %v1960 = vadd.f32 0.0, %v1959
    %v1961 = vpop.f32.mrb[0].mxu0
    %v1962 = vpop.f32.mrb[0].mxu0
    %v1963 = vadd.f32 0.0, %v1962
    %v1964 = vpop.f32.mrb[0].mxu0
    %1965 = vdwg.mxu0
    %v1966 = vsel %vm1078, %v1936, -inf
    %1967 = vmax.xlane.f32.xlu0 %v1966
    %v1968 = vpop.xlane.xlu0 %1967
    %v1969 = vsel %vm1078, %v1939, -inf
    %1970 = vmax.xlane.f32.xlu0 %v1969
    %v1971 = vpop.xlane.xlu0 %1970
    %v1972 = vsel %vm1078, %v1944, -inf
    %1973 = vmax.xlane.f32.xlu0 %v1972
    %v1974 = vpop.xlane.xlu0 %1973
    %v1975 = vsel %vm1078, %v1947, -inf
    %1976 = vmax.xlane.f32.xlu0 %v1975
    %v1977 = vpop.xlane.xlu0 %1976
    %v1978 = vsel %vm1078, %v1952, -inf
    %1979 = vmax.xlane.f32.xlu0 %v1978
    %v1980 = vpop.xlane.xlu0 %1979
    %v1981 = vsel %vm1078, %v1955, -inf
    %1982 = vmax.xlane.f32.xlu0 %v1981
    %v1983 = vpop.xlane.xlu0 %1982
    %v1984 = vsel %vm1078, %v1960, -inf
    %1985 = vmax.xlane.f32.xlu0 %v1984
    %v1986 = vpop.xlane.xlu0 %1985
    %v1987 = vsel %vm1078, %v1963, -inf
    %1988 = vmax.xlane.f32.xlu0 %v1987
    %v1989 = vpop.xlane.xlu0 %1988
    %v1990 = vsub.f32 %v1936, %v1968
    %v1991 = vsub.f32 %v1939, %v1971
    %v1992 = vsub.f32 %v1944, %v1974
    %v1993 = vsub.f32 %v1947, %v1977
    %v1994 = vsub.f32 %v1952, %v1980
    %v1995 = vsub.f32 %v1955, %v1983
    %v1996 = vsub.f32 %v1960, %v1986
    %v1997 = vsub.f32 %v1963, %v1989
    %v1998 = vmul.f32 %v1990, 1.442695
    %v1999 = vpow.pop %v1998
    %v2000 = vmul.f32 %v1991, 1.442695
    %v2001 = vpow.pop %v2000
    %v2002 = vmul.f32 %v1992, 1.442695
    %v2003 = vpow.pop %v2002
    %v2004 = vmul.f32 %v1993, 1.442695
    %v2005 = vpow.pop %v2004
    %v2006 = vmul.f32 %v1994, 1.442695
    %v2007 = vpow.pop %v2006
    %v2008 = vmul.f32 %v1995, 1.442695
    %v2009 = vpow.pop %v2008
    %v2010 = vmul.f32 %v1996, 1.442695
    %v2011 = vpow.pop %v2010
    %v2012 = vmul.f32 %v1997, 1.442695
    %v2013 = vpow.pop %v2012
    %v2014 = vsel %vm1078, %v1999, 0.0
    %2015 = vadd.xlane.f32.xlu0 %v2014
    %v2016 = vpop.xlane.xlu0 %2015
    %v2017 = vsel %vm1078, %v2001, 0.0
    %2018 = vadd.xlane.f32.xlu0 %v2017
    %v2019 = vpop.xlane.xlu0 %2018
    %v2020 = vsel %vm1078, %v2003, 0.0
    %2021 = vadd.xlane.f32.xlu0 %v2020
    %v2022 = vpop.xlane.xlu0 %2021
    %v2023 = vsel %vm1078, %v2005, 0.0
    %2024 = vadd.xlane.f32.xlu0 %v2023
    %v2025 = vpop.xlane.xlu0 %2024
    %v2026 = vsel %vm1078, %v2007, 0.0
    %2027 = vadd.xlane.f32.xlu0 %v2026
    %v2028 = vpop.xlane.xlu0 %2027
    %v2029 = vsel %vm1078, %v2009, 0.0
    %2030 = vadd.xlane.f32.xlu0 %v2029
    %v2031 = vpop.xlane.xlu0 %2030
    %v2032 = vsel %vm1078, %v2011, 0.0
    %2033 = vadd.xlane.f32.xlu0 %v2032
    %v2034 = vpop.xlane.xlu0 %2033
    %v2035 = vsel %vm1078, %v2013, 0.0
    %2036 = vadd.xlane.f32.xlu0 %v2035
    %v2037 = vpop.xlane.xlu0 %2036
    %v2038 = vrcp.pop %v2016
    %v2039 = vrcp.pop %v2019
    %v2040 = vrcp.pop %v2022
    %v2041 = vrcp.pop %v2025
    %v2042 = vrcp.pop %v2028
    %v2043 = vrcp.pop %v2031
    %v2044 = vrcp.pop %v2034
    %v2045 = vrcp.pop %v2037
    %v2046 = vmul.f32 %v1999, %v2038
    %v2047 = vmul.f32 %v2001, %v2039
    %v2048 = vmul.f32 %v2003, %v2040
    %v2049 = vmul.f32 %v2005, %v2041
    %v2050 = vmul.f32 %v2007, %v2042
    %v2051 = vmul.f32 %v2009, %v2043
    %v2052 = vmul.f32 %v2011, %v2044
    %v2053 = vmul.f32 %v2013, %v2045
    %v2054 = vpack.c.bf16 %v2047, %v2046
    %v2055 = vpack.c.bf16 %v2049, %v2048
    %v2056 = vpack.c.bf16 %v2051, %v2050
    %v2057 = vpack.c.bf16 %v2053, %v2052
    %v2059 = vsel %vm1078, %v2054, 0
    %v2062 = vsel %vm1078, %v2055, 0
    %v2065 = vsel %vm1078, %v2056, 0
    %v2068 = vsel %vm1078, %v2057, 0
    %2070 = vmatprep.subr.bf16.mxu0 0
    %2071 = vmatpush1.bf16.msra.mxu0 %v1873
    %2072 = vmatprep.subr.bf16.mxu0 0
    %2073 = vmatpush1.bf16.msra.mxu0 %v1874
    %2074 = vmatprep.subr.bf16.mxu0 0
    %2075 = vmatpush1.bf16.msra.mxu0 %v1875
    %2076 = vmatprep.subr.bf16.mxu0 0
    %2077 = vmatpush1.bf16.msra.mxu0 %v1876
    %2078 = vmatprep.subr.bf16.mxu0 0
    %2079 = vmatpush1.bf16.msra.mxu0 0
    %2080 = vmatprep.subr.bf16.mxu0 0
    %2081 = vmatpush1.bf16.msra.mxu0 0
    %2082 = vmatprep.subr.bf16.mxu0 0
    %2083 = vmatpush1.bf16.msra.mxu0 0
    %2084 = vmatprep.subr.bf16.mxu0 0
    %2085 = vmatpush1.bf16.msra.mxu0 0
    %2086 = vmatprep.subr.bf16.mxu0 0
    %2087 = vmatpush1.bf16.msra.mxu0 0
    %2088 = vmatprep.subr.bf16.mxu0 0
    %2089 = vmatpush1.bf16.msra.mxu0 0
    %2090 = vmatprep.subr.bf16.mxu0 0
    %2091 = vmatpush1.bf16.msra.mxu0 0
    %2092 = vmatprep.subr.bf16.mxu0 0
    %2093 = vmatpush1.bf16.msra.mxu0 0
    %2094 = vmatprep.subr.bf16.mxu0 0
    %2095 = vmatpush1.bf16.msra.mxu0 0
    %2096 = vmatprep.subr.bf16.mxu0 0
    %2097 = vmatpush1.bf16.msra.mxu0 0
    %2098 = vmatprep.subr.bf16.mxu0 0
    %2099 = vmatpush1.bf16.msra.mxu0 0
    %2100 = vmatprep.subr.bf16.mxu0 0
    %2101 = vmatpush1.bf16.msra.mxu0 0
    %2102 = vmatprep.mubr.bf16.mxu0 0
    %2103 = vmatmul.mubr.bf16.gmra.mrb[0].mxu0 %v2059
    %v2104 = vpop.f32.mrb[0].mxu0
    %v2105 = vadd.f32 0.0, %v2104
    %v2106 = vpop.f32.mrb[0].mxu0
    %v2107 = vpop.f32.mrb[0].mxu0
    %v2108 = vadd.f32 0.0, %v2107
    %v2109 = vpop.f32.mrb[0].mxu0
    %2110 = vmatprep.mubr.bf16.mxu0 0
    %2111 = vmatmul.mubr.bf16.gmra.mrb[0].mxu0 %v2062
    %v2112 = vpop.f32.mrb[0].mxu0
    %v2113 = vadd.f32 0.0, %v2112
    %v2114 = vpop.f32.mrb[0].mxu0
    %v2115 = vpop.f32.mrb[0].mxu0
    %v2116 = vadd.f32 0.0, %v2115
    %v2117 = vpop.f32.mrb[0].mxu0
    %2118 = vmatprep.mubr.bf16.mxu0 0
    %2119 = vmatmul.mubr.bf16.gmra.mrb[0].mxu0 %v2065
    %v2120 = vpop.f32.mrb[0].mxu0
    %v2121 = vadd.f32 0.0, %v2120
    %v2122 = vpop.f32.mrb[0].mxu0
    %v2123 = vpop.f32.mrb[0].mxu0
    %v2124 = vadd.f32 0.0, %v2123
    %v2125 = vpop.f32.mrb[0].mxu0
    %2126 = vmatprep.mubr.bf16.mxu0 0
    %2127 = vmatmul.mubr.bf16.gmra.mrb[0].mxu0 %v2068
    %v2128 = vpop.f32.mrb[0].mxu0
    %v2129 = vadd.f32 0.0, %v2128
    %v2130 = vpop.f32.mrb[0].mxu0
    %v2131 = vpop.f32.mrb[0].mxu0
    %v2132 = vadd.f32 0.0, %v2131
    %v2133 = vpop.f32.mrb[0].mxu0
    %2134 = vdwg.mxu0
    %v2135 = vpack.c.bf16 %v1612, %v1609
    %v2136 = vpack.c.bf16 %v1620, %v1617
    %v2137 = vpack.c.bf16 %v1628, %v1625
    %v2138 = vpack.c.bf16 %v1636, %v1633
    %v2139 = vpack.c.bf16 %v1725, %v1722
    %v2140 = vpack.c.bf16 %v1733, %v1730
    %v2141 = vpack.c.bf16 %v1741, %v1738
    %v2142 = vpack.c.bf16 %v1749, %v1746
    %v2143 = vpack.c.bf16 %v1838, %v1835
    %v2144 = vpack.c.bf16 %v1846, %v1843
    %v2145 = vpack.c.bf16 %v1854, %v1851
    %v2146 = vpack.c.bf16 %v1862, %v1859
    %v2148 = vsel %vm988, %v2135, 0
    %v2151 = vsel %vm988, %v2136, 0
    %v2154 = vsel %vm988, %v2137, 0
    %v2157 = vsel %vm988, %v2138, 0
    %v2160 = vsel %vm988, %v2139, 0
    %v2163 = vsel %vm988, %v2140, 0
    %v2166 = vsel %vm988, %v2141, 0
    %v2169 = vsel %vm988, %v2142, 0
    %2171 = vmatprep.subr.bf16.mxu0 0
    %2172 = vmatpush1.bf16.xpose.msra.mxu0 %v2160
    %2173 = vmatprep.subr.bf16.mxu0 0
    %2174 = vmatpush1.bf16.xpose.msra.mxu0 %v2163
    %2175 = vmatprep.subr.bf16.mxu0 0
    %2176 = vmatpush1.bf16.xpose.msra.mxu0 %v2166
    %2177 = vmatprep.subr.bf16.mxu0 0
    %2178 = vmatpush1.bf16.xpose.msra.mxu0 %v2169
    %2179 = vmatprep.subr.bf16.mxu0 0
    %2180 = vmatpush1.bf16.xpose.msra.mxu0 0
    %2181 = vmatprep.subr.bf16.mxu0 0
    %2182 = vmatpush1.bf16.xpose.msra.mxu0 0
    %2183 = vmatprep.subr.bf16.mxu0 0
    %2184 = vmatpush1.bf16.xpose.msra.mxu0 0
    %2185 = vmatprep.subr.bf16.mxu0 0
    %2186 = vmatpush1.bf16.xpose.msra.mxu0 0
    %2187 = vmatprep.subr.bf16.mxu0 0
    %2188 = vmatpush1.bf16.xpose.msra.mxu0 0
    %2189 = vmatprep.subr.bf16.mxu0 0
    %2190 = vmatpush1.bf16.xpose.msra.mxu0 0
    %2191 = vmatprep.subr.bf16.mxu0 0
    %2192 = vmatpush1.bf16.xpose.msra.mxu0 0
    %2193 = vmatprep.subr.bf16.mxu0 0
    %2194 = vmatpush1.bf16.xpose.msra.mxu0 0
    %2195 = vmatprep.subr.bf16.mxu0 0
    %2196 = vmatpush1.bf16.xpose.msra.mxu0 0
    %2197 = vmatprep.subr.bf16.mxu0 0
    %2198 = vmatpush1.bf16.xpose.msra.mxu0 0
    %2199 = vmatprep.subr.bf16.mxu0 0
    %2200 = vmatpush1.bf16.xpose.msra.mxu0 0
    %2201 = vmatprep.subr.bf16.mxu0 0
    %2202 = vmatpush1.bf16.xpose.msra.mxu0 0
    %2203 = vmatprep.mubr.bf16.mxu0 0
    %2204 = vmatmul.mubr.bf16.gmra.mrb[0].mxu0 %v2148
    %v2205 = vpop.f32.mrb[0].mxu0
    %v2206 = vadd.f32 0.0, %v2205
    %v2207 = vpop.f32.mrb[0].mxu0
    %v2208 = vpop.f32.mrb[0].mxu0
    %v2209 = vadd.f32 0.0, %v2208
    %v2210 = vpop.f32.mrb[0].mxu0
    %2211 = vmatprep.mubr.bf16.mxu0 0
    %2212 = vmatmul.mubr.bf16.gmra.mrb[0].mxu0 %v2151
    %v2213 = vpop.f32.mrb[0].mxu0
    %v2214 = vadd.f32 0.0, %v2213
    %v2215 = vpop.f32.mrb[0].mxu0
    %v2216 = vpop.f32.mrb[0].mxu0
    %v2217 = vadd.f32 0.0, %v2216
    %v2218 = vpop.f32.mrb[0].mxu0
    %2219 = vmatprep.mubr.bf16.mxu0 0
    %2220 = vmatmul.mubr.bf16.gmra.mrb[0].mxu0 %v2154
    %v2221 = vpop.f32.mrb[0].mxu0
    %v2222 = vadd.f32 0.0, %v2221
    %v2223 = vpop.f32.mrb[0].mxu0
    %v2224 = vpop.f32.mrb[0].mxu0
    %v2225 = vadd.f32 0.0, %v2224
    %v2226 = vpop.f32.mrb[0].mxu0
    %2227 = vmatprep.mubr.bf16.mxu0 0
    %2228 = vmatmul.mubr.bf16.gmra.mrb[0].mxu0 %v2157
    %v2229 = vpop.f32.mrb[0].mxu0
    %v2230 = vadd.f32 0.0, %v2229
    %v2231 = vpop.f32.mrb[0].mxu0
    %v2232 = vpop.f32.mrb[0].mxu0
    %v2233 = vadd.f32 0.0, %v2232
    %v2234 = vpop.f32.mrb[0].mxu0
    %2235 = vdwg.mxu0
    %v2236 = vsel %vm1078, %v2206, -inf
    %2237 = vmax.xlane.f32.xlu0 %v2236
    %v2238 = vpop.xlane.xlu0 %2237
    %v2239 = vsel %vm1078, %v2209, -inf
    %2240 = vmax.xlane.f32.xlu0 %v2239
    %v2241 = vpop.xlane.xlu0 %2240
    %v2242 = vsel %vm1078, %v2214, -inf
    %2243 = vmax.xlane.f32.xlu0 %v2242
    %v2244 = vpop.xlane.xlu0 %2243
    %v2245 = vsel %vm1078, %v2217, -inf
    %2246 = vmax.xlane.f32.xlu0 %v2245
    %v2247 = vpop.xlane.xlu0 %2246
    %v2248 = vsel %vm1078, %v2222, -inf
    %2249 = vmax.xlane.f32.xlu0 %v2248
    %v2250 = vpop.xlane.xlu0 %2249
    %v2251 = vsel %vm1078, %v2225, -inf
    %2252 = vmax.xlane.f32.xlu0 %v2251
    %v2253 = vpop.xlane.xlu0 %2252
    %v2254 = vsel %vm1078, %v2230, -inf
    %2255 = vmax.xlane.f32.xlu0 %v2254
    %v2256 = vpop.xlane.xlu0 %2255
    %v2257 = vsel %vm1078, %v2233, -inf
    %2258 = vmax.xlane.f32.xlu0 %v2257
    %v2259 = vpop.xlane.xlu0 %2258
    %v2260 = vsub.f32 %v2206, %v2238
    %v2261 = vsub.f32 %v2209, %v2241
    %v2262 = vsub.f32 %v2214, %v2244
    %v2263 = vsub.f32 %v2217, %v2247
    %v2264 = vsub.f32 %v2222, %v2250
    %v2265 = vsub.f32 %v2225, %v2253
    %v2266 = vsub.f32 %v2230, %v2256
    %v2267 = vsub.f32 %v2233, %v2259
    %v2268 = vmul.f32 %v2260, 1.442695
    %v2269 = vpow.pop %v2268
    %v2270 = vmul.f32 %v2261, 1.442695
    %v2271 = vpow.pop %v2270
    %v2272 = vmul.f32 %v2262, 1.442695
    %v2273 = vpow.pop %v2272
    %v2274 = vmul.f32 %v2263, 1.442695
    %v2275 = vpow.pop %v2274
    %v2276 = vmul.f32 %v2264, 1.442695
    %v2277 = vpow.pop %v2276
    %v2278 = vmul.f32 %v2265, 1.442695
    %v2279 = vpow.pop %v2278
    %v2280 = vmul.f32 %v2266, 1.442695
    %v2281 = vpow.pop %v2280
    %v2282 = vmul.f32 %v2267, 1.442695
    %v2283 = vpow.pop %v2282
    %v2284 = vsel %vm1078, %v2269, 0.0
    %2285 = vadd.xlane.f32.xlu0 %v2284
    %v2286 = vpop.xlane.xlu0 %2285
    %v2287 = vsel %vm1078, %v2271, 0.0
    %2288 = vadd.xlane.f32.xlu0 %v2287
    %v2289 = vpop.xlane.xlu0 %2288
    %v2290 = vsel %vm1078, %v2273, 0.0
    %2291 = vadd.xlane.f32.xlu0 %v2290
    %v2292 = vpop.xlane.xlu0 %2291
    %v2293 = vsel %vm1078, %v2275, 0.0
    %2294 = vadd.xlane.f32.xlu0 %v2293
    %v2295 = vpop.xlane.xlu0 %2294
    %v2296 = vsel %vm1078, %v2277, 0.0
    %2297 = vadd.xlane.f32.xlu0 %v2296
    %v2298 = vpop.xlane.xlu0 %2297
    %v2299 = vsel %vm1078, %v2279, 0.0
    %2300 = vadd.xlane.f32.xlu0 %v2299
    %v2301 = vpop.xlane.xlu0 %2300
    %v2302 = vsel %vm1078, %v2281, 0.0
    %2303 = vadd.xlane.f32.xlu0 %v2302
    %v2304 = vpop.xlane.xlu0 %2303
    %v2305 = vsel %vm1078, %v2283, 0.0
    %2306 = vadd.xlane.f32.xlu0 %v2305
    %v2307 = vpop.xlane.xlu0 %2306
    %v2308 = vrcp.pop %v2286
    %v2309 = vrcp.pop %v2289
    %v2310 = vrcp.pop %v2292
    %v2311 = vrcp.pop %v2295
    %v2312 = vrcp.pop %v2298
    %v2313 = vrcp.pop %v2301
    %v2314 = vrcp.pop %v2304
    %v2315 = vrcp.pop %v2307
    %v2316 = vmul.f32 %v2269, %v2308
    %v2317 = vmul.f32 %v2271, %v2309
    %v2318 = vmul.f32 %v2273, %v2310
    %v2319 = vmul.f32 %v2275, %v2311
    %v2320 = vmul.f32 %v2277, %v2312
    %v2321 = vmul.f32 %v2279, %v2313
    %v2322 = vmul.f32 %v2281, %v2314
    %v2323 = vmul.f32 %v2283, %v2315
    %v2324 = vpack.c.bf16 %v2317, %v2316
    %v2325 = vpack.c.bf16 %v2319, %v2318
    %v2326 = vpack.c.bf16 %v2321, %v2320
    %v2327 = vpack.c.bf16 %v2323, %v2322
    %v2329 = vsel %vm1078, %v2324, 0
    %v2332 = vsel %vm1078, %v2325, 0
    %v2335 = vsel %vm1078, %v2326, 0
    %v2338 = vsel %vm1078, %v2327, 0
    %2340 = vmatprep.subr.bf16.mxu0 0
    %2341 = vmatpush1.bf16.msra.mxu0 %v2143
    %2342 = vmatprep.subr.bf16.mxu0 0
    %2343 = vmatpush1.bf16.msra.mxu0 %v2144
    %2344 = vmatprep.subr.bf16.mxu0 0
    %2345 = vmatpush1.bf16.msra.mxu0 %v2145
    %2346 = vmatprep.subr.bf16.mxu0 0
    %2347 = vmatpush1.bf16.msra.mxu0 %v2146
    %2348 = vmatprep.subr.bf16.mxu0 0
    %2349 = vmatpush1.bf16.msra.mxu0 0
    %2350 = vmatprep.subr.bf16.mxu0 0
    %2351 = vmatpush1.bf16.msra.mxu0 0
    %2352 = vmatprep.subr.bf16.mxu0 0
    %2353 = vmatpush1.bf16.msra.mxu0 0
    %2354 = vmatprep.subr.bf16.mxu0 0
    %2355 = vmatpush1.bf16.msra.mxu0 0
    %2356 = vmatprep.subr.bf16.mxu0 0
    %2357 = vmatpush1.bf16.msra.mxu0 0
    %2358 = vmatprep.subr.bf16.mxu0 0
    %2359 = vmatpush1.bf16.msra.mxu0 0
    %2360 = vmatprep.subr.bf16.mxu0 0
    %2361 = vmatpush1.bf16.msra.mxu0 0
    %2362 = vmatprep.subr.bf16.mxu0 0
    %2363 = vmatpush1.bf16.msra.mxu0 0
    %2364 = vmatprep.subr.bf16.mxu0 0
    %2365 = vmatpush1.bf16.msra.mxu0 0
    %2366 = vmatprep.subr.bf16.mxu0 0
    %2367 = vmatpush1.bf16.msra.mxu0 0
    %2368 = vmatprep.subr.bf16.mxu0 0
    %2369 = vmatpush1.bf16.msra.mxu0 0
    %2370 = vmatprep.subr.bf16.mxu0 0
    %2371 = vmatpush1.bf16.msra.mxu0 0
    %2372 = vmatprep.mubr.bf16.mxu0 0
    %2373 = vmatmul.mubr.bf16.gmra.mrb[0].mxu0 %v2329
    %v2374 = vpop.f32.mrb[0].mxu0
    %v2375 = vadd.f32 0.0, %v2374
    %v2376 = vpop.f32.mrb[0].mxu0
    %v2377 = vpop.f32.mrb[0].mxu0
    %v2378 = vadd.f32 0.0, %v2377
    %v2379 = vpop.f32.mrb[0].mxu0
    %2380 = vmatprep.mubr.bf16.mxu0 0
    %2381 = vmatmul.mubr.bf16.gmra.mrb[0].mxu0 %v2332
    %v2382 = vpop.f32.mrb[0].mxu0
    %v2383 = vadd.f32 0.0, %v2382
    %v2384 = vpop.f32.mrb[0].mxu0
    %v2385 = vpop.f32.mrb[0].mxu0
    %v2386 = vadd.f32 0.0, %v2385
    %v2387 = vpop.f32.mrb[0].mxu0
    %2388 = vmatprep.mubr.bf16.mxu0 0
    %2389 = vmatmul.mubr.bf16.gmra.mrb[0].mxu0 %v2335
    %v2390 = vpop.f32.mrb[0].mxu0
    %v2391 = vadd.f32 0.0, %v2390
    %v2392 = vpop.f32.mrb[0].mxu0
    %v2393 = vpop.f32.mrb[0].mxu0
    %v2394 = vadd.f32 0.0, %v2393
    %v2395 = vpop.f32.mrb[0].mxu0
    %2396 = vmatprep.mubr.bf16.mxu0 0
    %2397 = vmatmul.mubr.bf16.gmra.mrb[0].mxu0 %v2338
    %v2398 = vpop.f32.mrb[0].mxu0
    %v2399 = vadd.f32 0.0, %v2398
    %v2400 = vpop.f32.mrb[0].mxu0
    %v2401 = vpop.f32.mrb[0].mxu0
    %v2402 = vadd.f32 0.0, %v2401
    %v2403 = vpop.f32.mrb[0].mxu0
    %2404 = vdwg.mxu0
    %v2405 = vpack.c.bf16 %v2108, %v2105
    %v2406 = vpack.c.bf16 %v2116, %v2113
    %v2407 = vpack.c.bf16 %v2124, %v2121
    %v2408 = vpack.c.bf16 %v2132, %v2129
    %v2409 = vpack.c.bf16 %v2378, %v2375
    %v2410 = vpack.c.bf16 %v2386, %v2383
    %v2411 = vpack.c.bf16 %v2394, %v2391
    %v2412 = vpack.c.bf16 %v2402, %v2399
    %v2414 = vsel %vm988, %v2405, 0
    %v2417 = vsel %vm988, %v2406, 0
    %v2420 = vsel %vm988, %v2407, 0
    %v2423 = vsel %vm988, %v2408, 0
    %v2426 = vsel %vm988, %v2409, 0
    %v2429 = vsel %vm988, %v2410, 0
    %v2432 = vsel %vm988, %v2411, 0
    %v2435 = vsel %vm988, %v2412, 0
    %v2438 = vsel %vm252, %v593, 0
    %2440 = vmatprep.subr.bf16.mxu0 0
    %2441 = vmatpush1.bf16.msra.mxu0 %v2438
    %2442 = vmatprep.subr.bf16.mxu0 0
    %2443 = vmatpush1.bf16.msra.mxu0 0
    %2444 = vmatprep.subr.bf16.mxu0 0
    %2445 = vmatpush1.bf16.msra.mxu0 0
    %2446 = vmatprep.subr.bf16.mxu0 0
    %2447 = vmatpush1.bf16.msra.mxu0 0
    %2448 = vmatprep.subr.bf16.mxu0 0
    %2449 = vmatpush1.bf16.msra.mxu0 0
    %2450 = vmatprep.subr.bf16.mxu0 0
    %2451 = vmatpush1.bf16.msra.mxu0 0
    %2452 = vmatprep.subr.bf16.mxu0 0
    %2453 = vmatpush1.bf16.msra.mxu0 0
    %2454 = vmatprep.subr.bf16.mxu0 0
    %2455 = vmatpush1.bf16.msra.mxu0 0
    %2456 = vmatprep.subr.bf16.mxu0 0
    %2457 = vmatpush1.bf16.msra.mxu0 0
    %2458 = vmatprep.subr.bf16.mxu0 0
    %2459 = vmatpush1.bf16.msra.mxu0 0
    %2460 = vmatprep.subr.bf16.mxu0 0
    %2461 = vmatpush1.bf16.msra.mxu0 0
    %2462 = vmatprep.subr.bf16.mxu0 0
    %2463 = vmatpush1.bf16.msra.mxu0 0
    %2464 = vmatprep.subr.bf16.mxu0 0
    %2465 = vmatpush1.bf16.msra.mxu0 0
    %2466 = vmatprep.subr.bf16.mxu0 0
    %2467 = vmatpush1.bf16.msra.mxu0 0
    %2468 = vmatprep.subr.bf16.mxu0 0
    %2469 = vmatpush1.bf16.msra.mxu0 0
    %2470 = vmatprep.subr.bf16.mxu0 0
    %2471 = vmatpush1.bf16.msra.mxu0 0
    %2472 = vmatprep.mubr.bf16.mxu0 0
    %2473 = vmatmul.mubr.bf16.gmra.mrb[0].mxu0 %v2414
    %v2474 = vpop.f32.mrb[0].mxu0
    %v2475 = vadd.f32 0.0, %v2474
    %v2476 = vpop.f32.mrb[0].mxu0
    %v2477 = vpop.f32.mrb[0].mxu0
    %v2478 = vadd.f32 0.0, %v2477
    %v2479 = vpop.f32.mrb[0].mxu0
    %2480 = vmatprep.mubr.bf16.mxu0 0
    %2481 = vmatmul.mubr.bf16.gmra.mrb[0].mxu0 %v2417
    %v2482 = vpop.f32.mrb[0].mxu0
    %v2483 = vadd.f32 0.0, %v2482
    %v2484 = vpop.f32.mrb[0].mxu0
    %v2485 = vpop.f32.mrb[0].mxu0
    %v2486 = vadd.f32 0.0, %v2485
    %v2487 = vpop.f32.mrb[0].mxu0
    %2488 = vmatprep.mubr.bf16.mxu0 0
    %2489 = vmatmul.mubr.bf16.gmra.mrb[0].mxu0 %v2420
    %v2490 = vpop.f32.mrb[0].mxu0
    %v2491 = vadd.f32 0.0, %v2490
    %v2492 = vpop.f32.mrb[0].mxu0
    %v2493 = vpop.f32.mrb[0].mxu0
    %v2494 = vadd.f32 0.0, %v2493
    %v2495 = vpop.f32.mrb[0].mxu0
    %2496 = vmatprep.mubr.bf16.mxu0 0
    %2497 = vmatmul.mubr.bf16.gmra.mrb[0].mxu0 %v2423
    %v2498 = vpop.f32.mrb[0].mxu0
    %v2499 = vadd.f32 0.0, %v2498
    %v2500 = vpop.f32.mrb[0].mxu0
    %v2501 = vpop.f32.mrb[0].mxu0
    %v2502 = vadd.f32 0.0, %v2501
    %v2503 = vpop.f32.mrb[0].mxu0
    %2504 = vmatprep.mubr.bf16.mxu0 0
    %2505 = vmatmul.mubr.bf16.gmra.mrb[0].mxu0 %v2426
    %v2506 = vpop.f32.mrb[0].mxu0
    %v2507 = vadd.f32 0.0, %v2506
    %v2508 = vpop.f32.mrb[0].mxu0
    %v2509 = vpop.f32.mrb[0].mxu0
    %v2510 = vadd.f32 0.0, %v2509
    %v2511 = vpop.f32.mrb[0].mxu0
    %2512 = vmatprep.mubr.bf16.mxu0 0
    %2513 = vmatmul.mubr.bf16.gmra.mrb[0].mxu0 %v2429
    %v2514 = vpop.f32.mrb[0].mxu0
    %v2515 = vadd.f32 0.0, %v2514
    %v2516 = vpop.f32.mrb[0].mxu0
    %v2517 = vpop.f32.mrb[0].mxu0
    %v2518 = vadd.f32 0.0, %v2517
    %v2519 = vpop.f32.mrb[0].mxu0
    %2520 = vmatprep.mubr.bf16.mxu0 0
    %2521 = vmatmul.mubr.bf16.gmra.mrb[0].mxu0 %v2432
    %v2522 = vpop.f32.mrb[0].mxu0
    %v2523 = vadd.f32 0.0, %v2522
    %v2524 = vpop.f32.mrb[0].mxu0
    %v2525 = vpop.f32.mrb[0].mxu0
    %v2526 = vadd.f32 0.0, %v2525
    %v2527 = vpop.f32.mrb[0].mxu0
    %2528 = vmatprep.mubr.bf16.mxu0 0
    %2529 = vmatmul.mubr.bf16.gmra.mrb[0].mxu0 %v2435
    %v2530 = vpop.f32.mrb[0].mxu0
    %v2531 = vadd.f32 0.0, %v2530
    %v2532 = vpop.f32.mrb[0].mxu0
    %v2533 = vpop.f32.mrb[0].mxu0
    %v2534 = vadd.f32 0.0, %v2533
    %v2535 = vpop.f32.mrb[0].mxu0
    %2536 = vdwg.mxu0
    %v2538 = vsel %vm988, %v1518, 0
    %v2541 = vsel %vm988, %v1519, 0
    %v2544 = vsel %vm988, %v1520, 0
    %v2547 = vsel %vm988, %v1521, 0
    %v2550 = vsel %vm988, %v1522, 0
    %v2553 = vsel %vm988, %v1523, 0
    %v2556 = vsel %vm988, %v1524, 0
    %v2559 = vsel %vm988, %v1525, 0
    %v2562 = vsel %vm252, %v592, 0
    %2564 = vmatprep.subr.bf16.mxu0 0
    %2565 = vmatpush1.bf16.msra.mxu0 %v2562
    %2566 = vmatprep.subr.bf16.mxu0 0
    %2567 = vmatpush1.bf16.msra.mxu0 0
    %2568 = vmatprep.subr.bf16.mxu0 0
    %2569 = vmatpush1.bf16.msra.mxu0 0
    %2570 = vmatprep.subr.bf16.mxu0 0
    %2571 = vmatpush1.bf16.msra.mxu0 0
    %2572 = vmatprep.subr.bf16.mxu0 0
    %2573 = vmatpush1.bf16.msra.mxu0 0
    %2574 = vmatprep.subr.bf16.mxu0 0
    %2575 = vmatpush1.bf16.msra.mxu0 0
    %2576 = vmatprep.subr.bf16.mxu0 0
    %2577 = vmatpush1.bf16.msra.mxu0 0
    %2578 = vmatprep.subr.bf16.mxu0 0
    %2579 = vmatpush1.bf16.msra.mxu0 0
    %2580 = vmatprep.subr.bf16.mxu0 0
    %2581 = vmatpush1.bf16.msra.mxu0 0
    %2582 = vmatprep.subr.bf16.mxu0 0
    %2583 = vmatpush1.bf16.msra.mxu0 0
    %2584 = vmatprep.subr.bf16.mxu0 0
    %2585 = vmatpush1.bf16.msra.mxu0 0
    %2586 = vmatprep.subr.bf16.mxu0 0
    %2587 = vmatpush1.bf16.msra.mxu0 0
    %2588 = vmatprep.subr.bf16.mxu0 0
    %2589 = vmatpush1.bf16.msra.mxu0 0
    %2590 = vmatprep.subr.bf16.mxu0 0
    %2591 = vmatpush1.bf16.msra.mxu0 0
    %2592 = vmatprep.subr.bf16.mxu0 0
    %2593 = vmatpush1.bf16.msra.mxu0 0
    %2594 = vmatprep.subr.bf16.mxu0 0
    %2595 = vmatpush1.bf16.msra.mxu0 0
    %2596 = vmatprep.mubr.bf16.mxu0 0
    %2597 = vmatmul.mubr.bf16.gmra.mrb[0].mxu0 %v2538
    %v2598 = vpop.f32.mrb[0].mxu0
    %v2599 = vadd.f32 %v2475, %v2598
    %v2600 = vpop.f32.mrb[0].mxu0
    %v2601 = vpop.f32.mrb[0].mxu0
    %v2602 = vadd.f32 %v2478, %v2601
    %v2603 = vpop.f32.mrb[0].mxu0
    %2604 = vmatprep.mubr.bf16.mxu0 0
    %2605 = vmatmul.mubr.bf16.gmra.mrb[0].mxu0 %v2541
    %v2606 = vpop.f32.mrb[0].mxu0
    %v2607 = vadd.f32 %v2483, %v2606
    %v2608 = vpop.f32.mrb[0].mxu0
    %v2609 = vpop.f32.mrb[0].mxu0
    %v2610 = vadd.f32 %v2486, %v2609
    %v2611 = vpop.f32.mrb[0].mxu0
    %2612 = vmatprep.mubr.bf16.mxu0 0
    %2613 = vmatmul.mubr.bf16.gmra.mrb[0].mxu0 %v2544
    %v2614 = vpop.f32.mrb[0].mxu0
    %v2615 = vadd.f32 %v2491, %v2614
    %v2616 = vpop.f32.mrb[0].mxu0
    %v2617 = vpop.f32.mrb[0].mxu0
    %v2618 = vadd.f32 %v2494, %v2617
    %v2619 = vpop.f32.mrb[0].mxu0
    %2620 = vmatprep.mubr.bf16.mxu0 0
    %2621 = vmatmul.mubr.bf16.gmra.mrb[0].mxu0 %v2547
    %v2622 = vpop.f32.mrb[0].mxu0
    %v2623 = vadd.f32 %v2499, %v2622
    %v2624 = vpop.f32.mrb[0].mxu0
    %v2625 = vpop.f32.mrb[0].mxu0
    %v2626 = vadd.f32 %v2502, %v2625
    %v2627 = vpop.f32.mrb[0].mxu0
    %2628 = vmatprep.mubr.bf16.mxu0 0
    %2629 = vmatmul.mubr.bf16.gmra.mrb[0].mxu0 %v2550
    %v2630 = vpop.f32.mrb[0].mxu0
    %v2631 = vadd.f32 %v2507, %v2630
    %v2632 = vpop.f32.mrb[0].mxu0
    %v2633 = vpop.f32.mrb[0].mxu0
    %v2634 = vadd.f32 %v2510, %v2633
    %v2635 = vpop.f32.mrb[0].mxu0
    %2636 = vmatprep.mubr.bf16.mxu0 0
    %2637 = vmatmul.mubr.bf16.gmra.mrb[0].mxu0 %v2553
    %v2638 = vpop.f32.mrb[0].mxu0
    %v2639 = vadd.f32 %v2515, %v2638
    %v2640 = vpop.f32.mrb[0].mxu0
    %v2641 = vpop.f32.mrb[0].mxu0
    %v2642 = vadd.f32 %v2518, %v2641
    %v2643 = vpop.f32.mrb[0].mxu0
    %2644 = vmatprep.mubr.bf16.mxu0 0
    %2645 = vmatmul.mubr.bf16.gmra.mrb[0].mxu0 %v2556
    %v2646 = vpop.f32.mrb[0].mxu0
    %v2647 = vadd.f32 %v2523, %v2646
    %v2648 = vpop.f32.mrb[0].mxu0
    %v2649 = vpop.f32.mrb[0].mxu0
    %v2650 = vadd.f32 %v2526, %v2649
    %v2651 = vpop.f32.mrb[0].mxu0
    %2652 = vmatprep.mubr.bf16.mxu0 0
    %2653 = vmatmul.mubr.bf16.gmra.mrb[0].mxu0 %v2559
    %v2654 = vpop.f32.mrb[0].mxu0
    %v2655 = vadd.f32 %v2531, %v2654
    %v2656 = vpop.f32.mrb[0].mxu0
    %v2657 = vpop.f32.mrb[0].mxu0
    %v2658 = vadd.f32 %v2534, %v2657
    %v2659 = vpop.f32.mrb[0].mxu0
    %2660 = vdwg.mxu0
    %v2661 = vlaneseq
    %v2662 = vshrl.u32 %v2661, 7
    %v2663 = vsub.s32 0, %v2662
    %v2664 = vrot.slane %v599, %v2663
    %v2669 = vunpack.c.l.b16 %v545
    %v2670 = vunpack.c.l.b16 %v546
    %v2671 = vunpack.c.l.b16 %v547
    %v2672 = vunpack.c.l.b16 %v548
    %v2673 = vpack.c.b16 %v2670, %v2669
    %v2674 = vpack.c.b16 %v2672, %v2671
    %2677 = vmatprep.subr.bf16.mxu0 0
    %2678 = vmatpush1.bf16.msra.mxu0 %v2673
    %2679 = vmatprep.subr.bf16.mxu0 0
    %2680 = vmatpush1.bf16.msra.mxu0 %v2674
    %2681 = vmatprep.subr.bf16.mxu0 0
    %2682 = vmatpush1.bf16.msra.mxu0 0
    %2683 = vmatprep.subr.bf16.mxu0 0
    %2684 = vmatpush1.bf16.msra.mxu0 0
    %2685 = vmatprep.subr.bf16.mxu0 0
    %2686 = vmatpush1.bf16.msra.mxu0 0
    %2687 = vmatprep.subr.bf16.mxu0 0
    %2688 = vmatpush1.bf16.msra.mxu0 0
    %2689 = vmatprep.subr.bf16.mxu0 0
    %2690 = vmatpush1.bf16.msra.mxu0 0
    %2691 = vmatprep.subr.bf16.mxu0 0
    %2692 = vmatpush1.bf16.msra.mxu0 0
    %2693 = vmatprep.subr.bf16.mxu0 0
    %2694 = vmatpush1.bf16.msra.mxu0 0
    %2695 = vmatprep.subr.bf16.mxu0 0
    %2696 = vmatpush1.bf16.msra.mxu0 0
    %2697 = vmatprep.subr.bf16.mxu0 0
    %2698 = vmatpush1.bf16.msra.mxu0 0
    %2699 = vmatprep.subr.bf16.mxu0 0
    %2700 = vmatpush1.bf16.msra.mxu0 0
    %2701 = vmatprep.subr.bf16.mxu0 0
    %2702 = vmatpush1.bf16.msra.mxu0 0
    %2703 = vmatprep.subr.bf16.mxu0 0
    %2704 = vmatpush1.bf16.msra.mxu0 0
    %2705 = vmatprep.subr.bf16.mxu0 0
    %2706 = vmatpush1.bf16.msra.mxu0 0
    %2707 = vmatprep.subr.bf16.mxu0 0
    %2708 = vmatpush1.bf16.msra.mxu0 0
    %2709 = vmatprep.mubr.bf16.mxu0 0
    %2710 = vmatmul.mubr.bf16.gmra.mrb[0].mxu0 %v630
    %v2711 = vpop.f32.mrb[0].mxu0
    %v2712 = vadd.f32 %v2664, %v2711
    %v2713 = vpop.f32.mrb[0].mxu0
    %v2714 = vpop.f32.mrb[0].mxu0
    %v2715 = vadd.f32 %v2664, %v2714
    %v2716 = vpop.f32.mrb[0].mxu0
    %2717 = vmatprep.mubr.bf16.mxu0 0
    %2718 = vmatmul.mubr.bf16.gmra.mrb[0].mxu0 %v633
    %v2719 = vpop.f32.mrb[0].mxu0
    %v2720 = vadd.f32 %v2664, %v2719
    %v2721 = vpop.f32.mrb[0].mxu0
    %v2722 = vpop.f32.mrb[0].mxu0
    %v2723 = vadd.f32 %v2664, %v2722
    %v2724 = vpop.f32.mrb[0].mxu0
    %2725 = vmatprep.mubr.bf16.mxu0 0
    %2726 = vmatmul.mubr.bf16.gmra.mrb[0].mxu0 %v636
    %v2727 = vpop.f32.mrb[0].mxu0
    %v2728 = vadd.f32 %v2664, %v2727
    %v2729 = vpop.f32.mrb[0].mxu0
    %v2730 = vpop.f32.mrb[0].mxu0
    %v2731 = vadd.f32 %v2664, %v2730
    %v2732 = vpop.f32.mrb[0].mxu0
    %2733 = vmatprep.mubr.bf16.mxu0 0
    %2734 = vmatmul.mubr.bf16.gmra.mrb[0].mxu0 %v639
    %v2735 = vpop.f32.mrb[0].mxu0
    %v2736 = vadd.f32 %v2664, %v2735
    %v2737 = vpop.f32.mrb[0].mxu0
    %v2738 = vpop.f32.mrb[0].mxu0
    %v2739 = vadd.f32 %v2664, %v2738
    %v2740 = vpop.f32.mrb[0].mxu0
    %2741 = vmatprep.mubr.bf16.mxu0 0
    %2742 = vmatmul.mubr.bf16.gmra.mrb[0].mxu0 %v642
    %v2743 = vpop.f32.mrb[0].mxu0
    %v2744 = vadd.f32 %v2664, %v2743
    %v2745 = vpop.f32.mrb[0].mxu0
    %v2746 = vpop.f32.mrb[0].mxu0
    %v2747 = vadd.f32 %v2664, %v2746
    %v2748 = vpop.f32.mrb[0].mxu0
    %2749 = vmatprep.mubr.bf16.mxu0 0
    %2750 = vmatmul.mubr.bf16.gmra.mrb[0].mxu0 %v645
    %v2751 = vpop.f32.mrb[0].mxu0
    %v2752 = vadd.f32 %v2664, %v2751
    %v2753 = vpop.f32.mrb[0].mxu0
    %v2754 = vpop.f32.mrb[0].mxu0
    %v2755 = vadd.f32 %v2664, %v2754
    %v2756 = vpop.f32.mrb[0].mxu0
    %2757 = vmatprep.mubr.bf16.mxu0 0
    %2758 = vmatmul.mubr.bf16.gmra.mrb[0].mxu0 %v648
    %v2759 = vpop.f32.mrb[0].mxu0
    %v2760 = vadd.f32 %v2664, %v2759
    %v2761 = vpop.f32.mrb[0].mxu0
    %v2762 = vpop.f32.mrb[0].mxu0
    %v2763 = vadd.f32 %v2664, %v2762
    %v2764 = vpop.f32.mrb[0].mxu0
    %2765 = vmatprep.mubr.bf16.mxu0 0
    %2766 = vmatmul.mubr.bf16.gmra.mrb[0].mxu0 %v651
    %v2767 = vpop.f32.mrb[0].mxu0
    %v2768 = vadd.f32 %v2664, %v2767
    %v2769 = vpop.f32.mrb[0].mxu0
    %v2770 = vpop.f32.mrb[0].mxu0
    %v2771 = vadd.f32 %v2664, %v2770
    %v2772 = vpop.f32.mrb[0].mxu0
    %2773 = vdwg.mxu0
    %v2774 = vlaneseq
    %v2775 = vshrl.u32 %v2774, 7
    %v2776 = vsub.s32 1, %v2775
    %v2777 = vrot.slane %v599, %v2776
    %v2782 = vunpack.c.l.b16 %v563
    %v2783 = vunpack.c.l.b16 %v564
    %v2784 = vunpack.c.l.b16 %v565
    %v2785 = vunpack.c.l.b16 %v566
    %v2786 = vpack.c.b16 %v2783, %v2782
    %v2787 = vpack.c.b16 %v2785, %v2784
    %2790 = vmatprep.subr.bf16.mxu0 0
    %2791 = vmatpush1.bf16.msra.mxu0 %v2786
    %2792 = vmatprep.subr.bf16.mxu0 0
    %2793 = vmatpush1.bf16.msra.mxu0 %v2787
    %2794 = vmatprep.subr.bf16.mxu0 0
    %2795 = vmatpush1.bf16.msra.mxu0 0
    %2796 = vmatprep.subr.bf16.mxu0 0
    %2797 = vmatpush1.bf16.msra.mxu0 0
    %2798 = vmatprep.subr.bf16.mxu0 0
    %2799 = vmatpush1.bf16.msra.mxu0 0
    %2800 = vmatprep.subr.bf16.mxu0 0
    %2801 = vmatpush1.bf16.msra.mxu0 0
    %2802 = vmatprep.subr.bf16.mxu0 0
    %2803 = vmatpush1.bf16.msra.mxu0 0
    %2804 = vmatprep.subr.bf16.mxu0 0
    %2805 = vmatpush1.bf16.msra.mxu0 0
    %2806 = vmatprep.subr.bf16.mxu0 0
    %2807 = vmatpush1.bf16.msra.mxu0 0
    %2808 = vmatprep.subr.bf16.mxu0 0
    %2809 = vmatpush1.bf16.msra.mxu0 0
    %2810 = vmatprep.subr.bf16.mxu0 0
    %2811 = vmatpush1.bf16.msra.mxu0 0
    %2812 = vmatprep.subr.bf16.mxu0 0
    %2813 = vmatpush1.bf16.msra.mxu0 0
    %2814 = vmatprep.subr.bf16.mxu0 0
    %2815 = vmatpush1.bf16.msra.mxu0 0
    %2816 = vmatprep.subr.bf16.mxu0 0
    %2817 = vmatpush1.bf16.msra.mxu0 0
    %2818 = vmatprep.subr.bf16.mxu0 0
    %2819 = vmatpush1.bf16.msra.mxu0 0
    %2820 = vmatprep.subr.bf16.mxu0 0
    %2821 = vmatpush1.bf16.msra.mxu0 0
    %2822 = vmatprep.mubr.bf16.mxu0 0
    %2823 = vmatmul.mubr.bf16.gmra.mrb[0].mxu0 %v630
    %v2824 = vpop.f32.mrb[0].mxu0
    %v2825 = vadd.f32 %v2777, %v2824
    %v2826 = vpop.f32.mrb[0].mxu0
    %v2827 = vpop.f32.mrb[0].mxu0
    %v2828 = vadd.f32 %v2777, %v2827
    %v2829 = vpop.f32.mrb[0].mxu0
    %2830 = vmatprep.mubr.bf16.mxu0 0
    %2831 = vmatmul.mubr.bf16.gmra.mrb[0].mxu0 %v633
    %v2832 = vpop.f32.mrb[0].mxu0
    %v2833 = vadd.f32 %v2777, %v2832
    %v2834 = vpop.f32.mrb[0].mxu0
    %v2835 = vpop.f32.mrb[0].mxu0
    %v2836 = vadd.f32 %v2777, %v2835
    %v2837 = vpop.f32.mrb[0].mxu0
    %2838 = vmatprep.mubr.bf16.mxu0 0
    %2839 = vmatmul.mubr.bf16.gmra.mrb[0].mxu0 %v636
    %v2840 = vpop.f32.mrb[0].mxu0
    %v2841 = vadd.f32 %v2777, %v2840
    %v2842 = vpop.f32.mrb[0].mxu0
    %v2843 = vpop.f32.mrb[0].mxu0
    %v2844 = vadd.f32 %v2777, %v2843
    %v2845 = vpop.f32.mrb[0].mxu0
    %2846 = vmatprep.mubr.bf16.mxu0 0
    %2847 = vmatmul.mubr.bf16.gmra.mrb[0].mxu0 %v639
    %v2848 = vpop.f32.mrb[0].mxu0
    %v2849 = vadd.f32 %v2777, %v2848
    %v2850 = vpop.f32.mrb[0].mxu0
    %v2851 = vpop.f32.mrb[0].mxu0
    %v2852 = vadd.f32 %v2777, %v2851
    %v2853 = vpop.f32.mrb[0].mxu0
    %2854 = vmatprep.mubr.bf16.mxu0 0
    %2855 = vmatmul.mubr.bf16.gmra.mrb[0].mxu0 %v642
    %v2856 = vpop.f32.mrb[0].mxu0
    %v2857 = vadd.f32 %v2777, %v2856
    %v2858 = vpop.f32.mrb[0].mxu0
    %v2859 = vpop.f32.mrb[0].mxu0
    %v2860 = vadd.f32 %v2777, %v2859
    %v2861 = vpop.f32.mrb[0].mxu0
    %2862 = vmatprep.mubr.bf16.mxu0 0
    %2863 = vmatmul.mubr.bf16.gmra.mrb[0].mxu0 %v645
    %v2864 = vpop.f32.mrb[0].mxu0
    %v2865 = vadd.f32 %v2777, %v2864
    %v2866 = vpop.f32.mrb[0].mxu0
    %v2867 = vpop.f32.mrb[0].mxu0
    %v2868 = vadd.f32 %v2777, %v2867
    %v2869 = vpop.f32.mrb[0].mxu0
    %2870 = vmatprep.mubr.bf16.mxu0 0
    %2871 = vmatmul.mubr.bf16.gmra.mrb[0].mxu0 %v648
    %v2872 = vpop.f32.mrb[0].mxu0
    %v2873 = vadd.f32 %v2777, %v2872
    %v2874 = vpop.f32.mrb[0].mxu0
    %v2875 = vpop.f32.mrb[0].mxu0
    %v2876 = vadd.f32 %v2777, %v2875
    %v2877 = vpop.f32.mrb[0].mxu0
    %2878 = vmatprep.mubr.bf16.mxu0 0
    %2879 = vmatmul.mubr.bf16.gmra.mrb[0].mxu0 %v651
    %v2880 = vpop.f32.mrb[0].mxu0
    %v2881 = vadd.f32 %v2777, %v2880
    %v2882 = vpop.f32.mrb[0].mxu0
    %v2883 = vpop.f32.mrb[0].mxu0
    %v2884 = vadd.f32 %v2777, %v2883
    %v2885 = vpop.f32.mrb[0].mxu0
    %2886 = vdwg.mxu0
    %v2887 = vlaneseq
    %v2888 = vshrl.u32 %v2887, 7
    %v2889 = vsub.s32 2, %v2888
    %v2890 = vrot.slane %v599, %v2889
    %v2895 = vunpack.c.l.b16 %v581
    %v2896 = vunpack.c.l.b16 %v582
    %v2897 = vunpack.c.l.b16 %v583
    %v2898 = vunpack.c.l.b16 %v584
    %v2899 = vpack.c.b16 %v2896, %v2895
    %v2900 = vpack.c.b16 %v2898, %v2897
    %2903 = vmatprep.subr.bf16.mxu0 0
    %2904 = vmatpush1.bf16.msra.mxu0 %v2899
    %2905 = vmatprep.subr.bf16.mxu0 0
    %2906 = vmatpush1.bf16.msra.mxu0 %v2900
    %2907 = vmatprep.subr.bf16.mxu0 0
    %2908 = vmatpush1.bf16.msra.mxu0 0
    %2909 = vmatprep.subr.bf16.mxu0 0
    %2910 = vmatpush1.bf16.msra.mxu0 0
    %2911 = vmatprep.subr.bf16.mxu0 0
    %2912 = vmatpush1.bf16.msra.mxu0 0
    %2913 = vmatprep.subr.bf16.mxu0 0
    %2914 = vmatpush1.bf16.msra.mxu0 0
    %2915 = vmatprep.subr.bf16.mxu0 0
    %2916 = vmatpush1.bf16.msra.mxu0 0
    %2917 = vmatprep.subr.bf16.mxu0 0
    %2918 = vmatpush1.bf16.msra.mxu0 0
    %2919 = vmatprep.subr.bf16.mxu0 0
    %2920 = vmatpush1.bf16.msra.mxu0 0
    %2921 = vmatprep.subr.bf16.mxu0 0
    %2922 = vmatpush1.bf16.msra.mxu0 0
    %2923 = vmatprep.subr.bf16.mxu0 0
    %2924 = vmatpush1.bf16.msra.mxu0 0
    %2925 = vmatprep.subr.bf16.mxu0 0
    %2926 = vmatpush1.bf16.msra.mxu0 0
    %2927 = vmatprep.subr.bf16.mxu0 0
    %2928 = vmatpush1.bf16.msra.mxu0 0
    %2929 = vmatprep.subr.bf16.mxu0 0
    %2930 = vmatpush1.bf16.msra.mxu0 0
    %2931 = vmatprep.subr.bf16.mxu0 0
    %2932 = vmatpush1.bf16.msra.mxu0 0
    %2933 = vmatprep.subr.bf16.mxu0 0
    %2934 = vmatpush1.bf16.msra.mxu0 0
    %2935 = vmatprep.mubr.bf16.mxu0 0
    %2936 = vmatmul.mubr.bf16.gmra.mrb[0].mxu0 %v630
    %v2937 = vpop.f32.mrb[0].mxu0
    %v2938 = vadd.f32 %v2890, %v2937
    %v2939 = vpop.f32.mrb[0].mxu0
    %v2940 = vpop.f32.mrb[0].mxu0
    %v2941 = vadd.f32 %v2890, %v2940
    %v2942 = vpop.f32.mrb[0].mxu0
    %2943 = vmatprep.mubr.bf16.mxu0 0
    %2944 = vmatmul.mubr.bf16.gmra.mrb[0].mxu0 %v633
    %v2945 = vpop.f32.mrb[0].mxu0
    %v2946 = vadd.f32 %v2890, %v2945
    %v2947 = vpop.f32.mrb[0].mxu0
    %v2948 = vpop.f32.mrb[0].mxu0
    %v2949 = vadd.f32 %v2890, %v2948
    %v2950 = vpop.f32.mrb[0].mxu0
    %2951 = vmatprep.mubr.bf16.mxu0 0
    %2952 = vmatmul.mubr.bf16.gmra.mrb[0].mxu0 %v636
    %v2953 = vpop.f32.mrb[0].mxu0
    %v2954 = vadd.f32 %v2890, %v2953
    %v2955 = vpop.f32.mrb[0].mxu0
    %v2956 = vpop.f32.mrb[0].mxu0
    %v2957 = vadd.f32 %v2890, %v2956
    %v2958 = vpop.f32.mrb[0].mxu0
    %2959 = vmatprep.mubr.bf16.mxu0 0
    %2960 = vmatmul.mubr.bf16.gmra.mrb[0].mxu0 %v639
    %v2961 = vpop.f32.mrb[0].mxu0
    %v2962 = vadd.f32 %v2890, %v2961
    %v2963 = vpop.f32.mrb[0].mxu0
    %v2964 = vpop.f32.mrb[0].mxu0
    %v2965 = vadd.f32 %v2890, %v2964
    %v2966 = vpop.f32.mrb[0].mxu0
    %2967 = vmatprep.mubr.bf16.mxu0 0
    %2968 = vmatmul.mubr.bf16.gmra.mrb[0].mxu0 %v642
    %v2969 = vpop.f32.mrb[0].mxu0
    %v2970 = vadd.f32 %v2890, %v2969
    %v2971 = vpop.f32.mrb[0].mxu0
    %v2972 = vpop.f32.mrb[0].mxu0
    %v2973 = vadd.f32 %v2890, %v2972
    %v2974 = vpop.f32.mrb[0].mxu0
    %2975 = vmatprep.mubr.bf16.mxu0 0
    %2976 = vmatmul.mubr.bf16.gmra.mrb[0].mxu0 %v645
    %v2977 = vpop.f32.mrb[0].mxu0
    %v2978 = vadd.f32 %v2890, %v2977
    %v2979 = vpop.f32.mrb[0].mxu0
    %v2980 = vpop.f32.mrb[0].mxu0
    %v2981 = vadd.f32 %v2890, %v2980
    %v2982 = vpop.f32.mrb[0].mxu0
    %2983 = vmatprep.mubr.bf16.mxu0 0
    %2984 = vmatmul.mubr.bf16.gmra.mrb[0].mxu0 %v648
    %v2985 = vpop.f32.mrb[0].mxu0
    %v2986 = vadd.f32 %v2890, %v2985
    %v2987 = vpop.f32.mrb[0].mxu0
    %v2988 = vpop.f32.mrb[0].mxu0
    %v2989 = vadd.f32 %v2890, %v2988
    %v2990 = vpop.f32.mrb[0].mxu0
    %2991 = vmatprep.mubr.bf16.mxu0 0
    %2992 = vmatmul.mubr.bf16.gmra.mrb[0].mxu0 %v651
    %v2993 = vpop.f32.mrb[0].mxu0
    %v2994 = vadd.f32 %v2890, %v2993
    %v2995 = vpop.f32.mrb[0].mxu0
    %v2996 = vpop.f32.mrb[0].mxu0
    %v2997 = vadd.f32 %v2890, %v2996
    %v2998 = vpop.f32.mrb[0].mxu0
    %2999 = vdwg.mxu0
    %v3000 = vpack.c.bf16 %v2715, %v2712
    %v3001 = vpack.c.bf16 %v2723, %v2720
    %v3002 = vpack.c.bf16 %v2731, %v2728
    %v3003 = vpack.c.bf16 %v2739, %v2736
    %v3004 = vpack.c.bf16 %v2828, %v2825
    %v3005 = vpack.c.bf16 %v2836, %v2833
    %v3006 = vpack.c.bf16 %v2844, %v2841
    %v3007 = vpack.c.bf16 %v2852, %v2849
    %v3008 = vpack.c.bf16 %v2941, %v2938
    %v3009 = vpack.c.bf16 %v2949, %v2946
    %v3010 = vpack.c.bf16 %v2957, %v2954
    %v3011 = vpack.c.bf16 %v2965, %v2962
    %v3013 = vsel %vm988, %v3000, 0
    %v3016 = vsel %vm988, %v3001, 0
    %v3019 = vsel %vm988, %v3002, 0
    %v3022 = vsel %vm988, %v3003, 0
    %v3025 = vsel %vm988, %v3004, 0
    %v3028 = vsel %vm988, %v3005, 0
    %v3031 = vsel %vm988, %v3006, 0
    %v3034 = vsel %vm988, %v3007, 0
    %3036 = vmatprep.subr.bf16.mxu0 0
    %3037 = vmatpush1.bf16.xpose.msra.mxu0 %v3025
    %3038 = vmatprep.subr.bf16.mxu0 0
    %3039 = vmatpush1.bf16.xpose.msra.mxu0 %v3028
    %3040 = vmatprep.subr.bf16.mxu0 0
    %3041 = vmatpush1.bf16.xpose.msra.mxu0 %v3031
    %3042 = vmatprep.subr.bf16.mxu0 0
    %3043 = vmatpush1.bf16.xpose.msra.mxu0 %v3034
    %3044 = vmatprep.subr.bf16.mxu0 0
    %3045 = vmatpush1.bf16.xpose.msra.mxu0 0
    %3046 = vmatprep.subr.bf16.mxu0 0
    %3047 = vmatpush1.bf16.xpose.msra.mxu0 0
    %3048 = vmatprep.subr.bf16.mxu0 0
    %3049 = vmatpush1.bf16.xpose.msra.mxu0 0
    %3050 = vmatprep.subr.bf16.mxu0 0
    %3051 = vmatpush1.bf16.xpose.msra.mxu0 0
    %3052 = vmatprep.subr.bf16.mxu0 0
    %3053 = vmatpush1.bf16.xpose.msra.mxu0 0
    %3054 = vmatprep.subr.bf16.mxu0 0
    %3055 = vmatpush1.bf16.xpose.msra.mxu0 0
    %3056 = vmatprep.subr.bf16.mxu0 0
    %3057 = vmatpush1.bf16.xpose.msra.mxu0 0
    %3058 = vmatprep.subr.bf16.mxu0 0
    %3059 = vmatpush1.bf16.xpose.msra.mxu0 0
    %3060 = vmatprep.subr.bf16.mxu0 0
    %3061 = vmatpush1.bf16.xpose.msra.mxu0 0
    %3062 = vmatprep.subr.bf16.mxu0 0
    %3063 = vmatpush1.bf16.xpose.msra.mxu0 0
    %3064 = vmatprep.subr.bf16.mxu0 0
    %3065 = vmatpush1.bf16.xpose.msra.mxu0 0
    %3066 = vmatprep.subr.bf16.mxu0 0
    %3067 = vmatpush1.bf16.xpose.msra.mxu0 0
    %3068 = vmatprep.mubr.bf16.mxu0 0
    %3069 = vmatmul.mubr.bf16.gmra.mrb[0].mxu0 %v3013
    %v3070 = vpop.f32.mrb[0].mxu0
    %v3071 = vadd.f32 0.0, %v3070
    %v3072 = vpop.f32.mrb[0].mxu0
    %v3073 = vpop.f32.mrb[0].mxu0
    %v3074 = vadd.f32 0.0, %v3073
    %v3075 = vpop.f32.mrb[0].mxu0
    %3076 = vmatprep.mubr.bf16.mxu0 0
    %3077 = vmatmul.mubr.bf16.gmra.mrb[0].mxu0 %v3016
    %v3078 = vpop.f32.mrb[0].mxu0
    %v3079 = vadd.f32 0.0, %v3078
    %v3080 = vpop.f32.mrb[0].mxu0
    %v3081 = vpop.f32.mrb[0].mxu0
    %v3082 = vadd.f32 0.0, %v3081
    %v3083 = vpop.f32.mrb[0].mxu0
    %3084 = vmatprep.mubr.bf16.mxu0 0
    %3085 = vmatmul.mubr.bf16.gmra.mrb[0].mxu0 %v3019
    %v3086 = vpop.f32.mrb[0].mxu0
    %v3087 = vadd.f32 0.0, %v3086
    %v3088 = vpop.f32.mrb[0].mxu0
    %v3089 = vpop.f32.mrb[0].mxu0
    %v3090 = vadd.f32 0.0, %v3089
    %v3091 = vpop.f32.mrb[0].mxu0
    %3092 = vmatprep.mubr.bf16.mxu0 0
    %3093 = vmatmul.mubr.bf16.gmra.mrb[0].mxu0 %v3022
    %v3094 = vpop.f32.mrb[0].mxu0
    %v3095 = vadd.f32 0.0, %v3094
    %v3096 = vpop.f32.mrb[0].mxu0
    %v3097 = vpop.f32.mrb[0].mxu0
    %v3098 = vadd.f32 0.0, %v3097
    %v3099 = vpop.f32.mrb[0].mxu0
    %3100 = vdwg.mxu0
    %v3101 = vsel %vm1078, %v3071, -inf
    %3102 = vmax.xlane.f32.xlu0 %v3101
    %v3103 = vpop.xlane.xlu0 %3102
    %v3104 = vsel %vm1078, %v3074, -inf
    %3105 = vmax.xlane.f32.xlu0 %v3104
    %v3106 = vpop.xlane.xlu0 %3105
    %v3107 = vsel %vm1078, %v3079, -inf
    %3108 = vmax.xlane.f32.xlu0 %v3107
    %v3109 = vpop.xlane.xlu0 %3108
    %v3110 = vsel %vm1078, %v3082, -inf
    %3111 = vmax.xlane.f32.xlu0 %v3110
    %v3112 = vpop.xlane.xlu0 %3111
    %v3113 = vsel %vm1078, %v3087, -inf
    %3114 = vmax.xlane.f32.xlu0 %v3113
    %v3115 = vpop.xlane.xlu0 %3114
    %v3116 = vsel %vm1078, %v3090, -inf
    %3117 = vmax.xlane.f32.xlu0 %v3116
    %v3118 = vpop.xlane.xlu0 %3117
    %v3119 = vsel %vm1078, %v3095, -inf
    %3120 = vmax.xlane.f32.xlu0 %v3119
    %v3121 = vpop.xlane.xlu0 %3120
    %v3122 = vsel %vm1078, %v3098, -inf
    %3123 = vmax.xlane.f32.xlu0 %v3122
    %v3124 = vpop.xlane.xlu0 %3123
    %v3125 = vsub.f32 %v3071, %v3103
    %v3126 = vsub.f32 %v3074, %v3106
    %v3127 = vsub.f32 %v3079, %v3109
    %v3128 = vsub.f32 %v3082, %v3112
    %v3129 = vsub.f32 %v3087, %v3115
    %v3130 = vsub.f32 %v3090, %v3118
    %v3131 = vsub.f32 %v3095, %v3121
    %v3132 = vsub.f32 %v3098, %v3124
    %v3133 = vmul.f32 %v3125, 1.442695
    %v3134 = vpow.pop %v3133
    %v3135 = vmul.f32 %v3126, 1.442695
    %v3136 = vpow.pop %v3135
    %v3137 = vmul.f32 %v3127, 1.442695
    %v3138 = vpow.pop %v3137
    %v3139 = vmul.f32 %v3128, 1.442695
    %v3140 = vpow.pop %v3139
    %v3141 = vmul.f32 %v3129, 1.442695
    %v3142 = vpow.pop %v3141
    %v3143 = vmul.f32 %v3130, 1.442695
    %v3144 = vpow.pop %v3143
    %v3145 = vmul.f32 %v3131, 1.442695
    %v3146 = vpow.pop %v3145
    %v3147 = vmul.f32 %v3132, 1.442695
    %v3148 = vpow.pop %v3147
    %v3149 = vsel %vm1078, %v3134, 0.0
    %3150 = vadd.xlane.f32.xlu0 %v3149
    %v3151 = vpop.xlane.xlu0 %3150
    %v3152 = vsel %vm1078, %v3136, 0.0
    %3153 = vadd.xlane.f32.xlu0 %v3152
    %v3154 = vpop.xlane.xlu0 %3153
    %v3155 = vsel %vm1078, %v3138, 0.0
    %3156 = vadd.xlane.f32.xlu0 %v3155
    %v3157 = vpop.xlane.xlu0 %3156
    %v3158 = vsel %vm1078, %v3140, 0.0
    %3159 = vadd.xlane.f32.xlu0 %v3158
    %v3160 = vpop.xlane.xlu0 %3159
    %v3161 = vsel %vm1078, %v3142, 0.0
    %3162 = vadd.xlane.f32.xlu0 %v3161
    %v3163 = vpop.xlane.xlu0 %3162
    %v3164 = vsel %vm1078, %v3144, 0.0
    %3165 = vadd.xlane.f32.xlu0 %v3164
    %v3166 = vpop.xlane.xlu0 %3165
    %v3167 = vsel %vm1078, %v3146, 0.0
    %3168 = vadd.xlane.f32.xlu0 %v3167
    %v3169 = vpop.xlane.xlu0 %3168
    %v3170 = vsel %vm1078, %v3148, 0.0
    %3171 = vadd.xlane.f32.xlu0 %v3170
    %v3172 = vpop.xlane.xlu0 %3171
    %v3173 = vrcp.pop %v3151
    %v3174 = vrcp.pop %v3154
    %v3175 = vrcp.pop %v3157
    %v3176 = vrcp.pop %v3160
    %v3177 = vrcp.pop %v3163
    %v3178 = vrcp.pop %v3166
    %v3179 = vrcp.pop %v3169
    %v3180 = vrcp.pop %v3172
    %v3181 = vmul.f32 %v3134, %v3173
    %v3182 = vmul.f32 %v3136, %v3174
    %v3183 = vmul.f32 %v3138, %v3175
    %v3184 = vmul.f32 %v3140, %v3176
    %v3185 = vmul.f32 %v3142, %v3177
    %v3186 = vmul.f32 %v3144, %v3178
    %v3187 = vmul.f32 %v3146, %v3179
    %v3188 = vmul.f32 %v3148, %v3180
    %v3189 = vpack.c.bf16 %v3182, %v3181
    %v3190 = vpack.c.bf16 %v3184, %v3183
    %v3191 = vpack.c.bf16 %v3186, %v3185
    %v3192 = vpack.c.bf16 %v3188, %v3187
    %v3194 = vsel %vm1078, %v3189, 0
    %v3197 = vsel %vm1078, %v3190, 0
    %v3200 = vsel %vm1078, %v3191, 0
    %v3203 = vsel %vm1078, %v3192, 0
    %3205 = vmatprep.subr.bf16.mxu0 0
    %3206 = vmatpush1.bf16.msra.mxu0 %v3008
    %3207 = vmatprep.subr.bf16.mxu0 0
    %3208 = vmatpush1.bf16.msra.mxu0 %v3009
    %3209 = vmatprep.subr.bf16.mxu0 0
    %3210 = vmatpush1.bf16.msra.mxu0 %v3010
    %3211 = vmatprep.subr.bf16.mxu0 0
    %3212 = vmatpush1.bf16.msra.mxu0 %v3011
    %3213 = vmatprep.subr.bf16.mxu0 0
    %3214 = vmatpush1.bf16.msra.mxu0 0
    %3215 = vmatprep.subr.bf16.mxu0 0
    %3216 = vmatpush1.bf16.msra.mxu0 0
    %3217 = vmatprep.subr.bf16.mxu0 0
    %3218 = vmatpush1.bf16.msra.mxu0 0
    %3219 = vmatprep.subr.bf16.mxu0 0
    %3220 = vmatpush1.bf16.msra.mxu0 0
    %3221 = vmatprep.subr.bf16.mxu0 0
    %3222 = vmatpush1.bf16.msra.mxu0 0
    %3223 = vmatprep.subr.bf16.mxu0 0
    %3224 = vmatpush1.bf16.msra.mxu0 0
    %3225 = vmatprep.subr.bf16.mxu0 0
    %3226 = vmatpush1.bf16.msra.mxu0 0
    %3227 = vmatprep.subr.bf16.mxu0 0
    %3228 = vmatpush1.bf16.msra.mxu0 0
    %3229 = vmatprep.subr.bf16.mxu0 0
    %3230 = vmatpush1.bf16.msra.mxu0 0
    %3231 = vmatprep.subr.bf16.mxu0 0
    %3232 = vmatpush1.bf16.msra.mxu0 0
    %3233 = vmatprep.subr.bf16.mxu0 0
    %3234 = vmatpush1.bf16.msra.mxu0 0
    %3235 = vmatprep.subr.bf16.mxu0 0
    %3236 = vmatpush1.bf16.msra.mxu0 0
    %3237 = vmatprep.mubr.bf16.mxu0 0
    %3238 = vmatmul.mubr.bf16.gmra.mrb[0].mxu0 %v3194
    %v3239 = vpop.f32.mrb[0].mxu0
    %v3240 = vadd.f32 0.0, %v3239
    %v3241 = vpop.f32.mrb[0].mxu0
    %v3242 = vpop.f32.mrb[0].mxu0
    %v3243 = vadd.f32 0.0, %v3242
    %v3244 = vpop.f32.mrb[0].mxu0
    %3245 = vmatprep.mubr.bf16.mxu0 0
    %3246 = vmatmul.mubr.bf16.gmra.mrb[0].mxu0 %v3197
    %v3247 = vpop.f32.mrb[0].mxu0
    %v3248 = vadd.f32 0.0, %v3247
    %v3249 = vpop.f32.mrb[0].mxu0
    %v3250 = vpop.f32.mrb[0].mxu0
    %v3251 = vadd.f32 0.0, %v3250
    %v3252 = vpop.f32.mrb[0].mxu0
    %3253 = vmatprep.mubr.bf16.mxu0 0
    %3254 = vmatmul.mubr.bf16.gmra.mrb[0].mxu0 %v3200
    %v3255 = vpop.f32.mrb[0].mxu0
    %v3256 = vadd.f32 0.0, %v3255
    %v3257 = vpop.f32.mrb[0].mxu0
    %v3258 = vpop.f32.mrb[0].mxu0
    %v3259 = vadd.f32 0.0, %v3258
    %v3260 = vpop.f32.mrb[0].mxu0
    %3261 = vmatprep.mubr.bf16.mxu0 0
    %3262 = vmatmul.mubr.bf16.gmra.mrb[0].mxu0 %v3203
    %v3263 = vpop.f32.mrb[0].mxu0
    %v3264 = vadd.f32 0.0, %v3263
    %v3265 = vpop.f32.mrb[0].mxu0
    %v3266 = vpop.f32.mrb[0].mxu0
    %v3267 = vadd.f32 0.0, %v3266
    %v3268 = vpop.f32.mrb[0].mxu0
    %3269 = vdwg.mxu0
    %v3270 = vpack.c.bf16 %v2747, %v2744
    %v3271 = vpack.c.bf16 %v2755, %v2752
    %v3272 = vpack.c.bf16 %v2763, %v2760
    %v3273 = vpack.c.bf16 %v2771, %v2768
    %v3274 = vpack.c.bf16 %v2860, %v2857
    %v3275 = vpack.c.bf16 %v2868, %v2865
    %v3276 = vpack.c.bf16 %v2876, %v2873
    %v3277 = vpack.c.bf16 %v2884, %v2881
    %v3278 = vpack.c.bf16 %v2973, %v2970
    %v3279 = vpack.c.bf16 %v2981, %v2978
    %v3280 = vpack.c.bf16 %v2989, %v2986
    %v3281 = vpack.c.bf16 %v2997, %v2994
    %v3283 = vsel %vm988, %v3270, 0
    %v3286 = vsel %vm988, %v3271, 0
    %v3289 = vsel %vm988, %v3272, 0
    %v3292 = vsel %vm988, %v3273, 0
    %v3295 = vsel %vm988, %v3274, 0
    %v3298 = vsel %vm988, %v3275, 0
    %v3301 = vsel %vm988, %v3276, 0
    %v3304 = vsel %vm988, %v3277, 0
    %3306 = vmatprep.subr.bf16.mxu0 0
    %3307 = vmatpush1.bf16.xpose.msra.mxu0 %v3295
    %3308 = vmatprep.subr.bf16.mxu0 0
    %3309 = vmatpush1.bf16.xpose.msra.mxu0 %v3298
    %3310 = vmatprep.subr.bf16.mxu0 0
    %3311 = vmatpush1.bf16.xpose.msra.mxu0 %v3301
    %3312 = vmatprep.subr.bf16.mxu0 0
    %3313 = vmatpush1.bf16.xpose.msra.mxu0 %v3304
    %3314 = vmatprep.subr.bf16.mxu0 0
    %3315 = vmatpush1.bf16.xpose.msra.mxu0 0
    %3316 = vmatprep.subr.bf16.mxu0 0
    %3317 = vmatpush1.bf16.xpose.msra.mxu0 0
    %3318 = vmatprep.subr.bf16.mxu0 0
    %3319 = vmatpush1.bf16.xpose.msra.mxu0 0
    %3320 = vmatprep.subr.bf16.mxu0 0
    %3321 = vmatpush1.bf16.xpose.msra.mxu0 0
    %3322 = vmatprep.subr.bf16.mxu0 0
    %3323 = vmatpush1.bf16.xpose.msra.mxu0 0
    %3324 = vmatprep.subr.bf16.mxu0 0
    %3325 = vmatpush1.bf16.xpose.msra.mxu0 0
    %3326 = vmatprep.subr.bf16.mxu0 0
    %3327 = vmatpush1.bf16.xpose.msra.mxu0 0
    %3328 = vmatprep.subr.bf16.mxu0 0
    %3329 = vmatpush1.bf16.xpose.msra.mxu0 0
    %3330 = vmatprep.subr.bf16.mxu0 0
    %3331 = vmatpush1.bf16.xpose.msra.mxu0 0
    %3332 = vmatprep.subr.bf16.mxu0 0
    %3333 = vmatpush1.bf16.xpose.msra.mxu0 0
    %3334 = vmatprep.subr.bf16.mxu0 0
    %3335 = vmatpush1.bf16.xpose.msra.mxu0 0
    %3336 = vmatprep.subr.bf16.mxu0 0
    %3337 = vmatpush1.bf16.xpose.msra.mxu0 0
    %3338 = vmatprep.mubr.bf16.mxu0 0
    %3339 = vmatmul.mubr.bf16.gmra.mrb[0].mxu0 %v3283
    %v3340 = vpop.f32.mrb[0].mxu0
    %v3341 = vadd.f32 0.0, %v3340
    %v3342 = vpop.f32.mrb[0].mxu0
    %v3343 = vpop.f32.mrb[0].mxu0
    %v3344 = vadd.f32 0.0, %v3343
    %v3345 = vpop.f32.mrb[0].mxu0
    %3346 = vmatprep.mubr.bf16.mxu0 0
    %3347 = vmatmul.mubr.bf16.gmra.mrb[0].mxu0 %v3286
    %v3348 = vpop.f32.mrb[0].mxu0
    %v3349 = vadd.f32 0.0, %v3348
    %v3350 = vpop.f32.mrb[0].mxu0
    %v3351 = vpop.f32.mrb[0].mxu0
    %v3352 = vadd.f32 0.0, %v3351
    %v3353 = vpop.f32.mrb[0].mxu0
    %3354 = vmatprep.mubr.bf16.mxu0 0
    %3355 = vmatmul.mubr.bf16.gmra.mrb[0].mxu0 %v3289
    %v3356 = vpop.f32.mrb[0].mxu0
    %v3357 = vadd.f32 0.0, %v3356
    %v3358 = vpop.f32.mrb[0].mxu0
    %v3359 = vpop.f32.mrb[0].mxu0
    %v3360 = vadd.f32 0.0, %v3359
    %v3361 = vpop.f32.mrb[0].mxu0
    %3362 = vmatprep.mubr.bf16.mxu0 0
    %3363 = vmatmul.mubr.bf16.gmra.mrb[0].mxu0 %v3292
    %v3364 = vpop.f32.mrb[0].mxu0
    %v3365 = vadd.f32 0.0, %v3364
    %v3366 = vpop.f32.mrb[0].mxu0
    %v3367 = vpop.f32.mrb[0].mxu0
    %v3368 = vadd.f32 0.0, %v3367
    %v3369 = vpop.f32.mrb[0].mxu0
    %3370 = vdwg.mxu0
    %v3371 = vsel %vm1078, %v3341, -inf
    %3372 = vmax.xlane.f32.xlu0 %v3371
    %v3373 = vpop.xlane.xlu0 %3372
    %v3374 = vsel %vm1078, %v3344, -inf
    %3375 = vmax.xlane.f32.xlu0 %v3374
    %v3376 = vpop.xlane.xlu0 %3375
    %v3377 = vsel %vm1078, %v3349, -inf
    %3378 = vmax.xlane.f32.xlu0 %v3377
    %v3379 = vpop.xlane.xlu0 %3378
    %v3380 = vsel %vm1078, %v3352, -inf
    %3381 = vmax.xlane.f32.xlu0 %v3380
    %v3382 = vpop.xlane.xlu0 %3381
    %v3383 = vsel %vm1078, %v3357, -inf
    %3384 = vmax.xlane.f32.xlu0 %v3383
    %v3385 = vpop.xlane.xlu0 %3384
    %v3386 = vsel %vm1078, %v3360, -inf
    %3387 = vmax.xlane.f32.xlu0 %v3386
    %v3388 = vpop.xlane.xlu0 %3387
    %v3389 = vsel %vm1078, %v3365, -inf
    %3390 = vmax.xlane.f32.xlu0 %v3389
    %v3391 = vpop.xlane.xlu0 %3390
    %v3392 = vsel %vm1078, %v3368, -inf
    %3393 = vmax.xlane.f32.xlu0 %v3392
    %v3394 = vpop.xlane.xlu0 %3393
    %v3395 = vsub.f32 %v3341, %v3373
    %v3396 = vsub.f32 %v3344, %v3376
    %v3397 = vsub.f32 %v3349, %v3379
    %v3398 = vsub.f32 %v3352, %v3382
    %v3399 = vsub.f32 %v3357, %v3385
    %v3400 = vsub.f32 %v3360, %v3388
    %v3401 = vsub.f32 %v3365, %v3391
    %v3402 = vsub.f32 %v3368, %v3394
    %v3403 = vmul.f32 %v3395, 1.442695
    %v3404 = vpow.pop %v3403
    %v3405 = vmul.f32 %v3396, 1.442695
    %v3406 = vpow.pop %v3405
    %v3407 = vmul.f32 %v3397, 1.442695
    %v3408 = vpow.pop %v3407
    %v3409 = vmul.f32 %v3398, 1.442695
    %v3410 = vpow.pop %v3409
    %v3411 = vmul.f32 %v3399, 1.442695
    %v3412 = vpow.pop %v3411
    %v3413 = vmul.f32 %v3400, 1.442695
    %v3414 = vpow.pop %v3413
    %v3415 = vmul.f32 %v3401, 1.442695
    %v3416 = vpow.pop %v3415
    %v3417 = vmul.f32 %v3402, 1.442695
    %v3418 = vpow.pop %v3417
    %v3419 = vsel %vm1078, %v3404, 0.0
    %3420 = vadd.xlane.f32.xlu0 %v3419
    %v3421 = vpop.xlane.xlu0 %3420
    %v3422 = vsel %vm1078, %v3406, 0.0
    %3423 = vadd.xlane.f32.xlu0 %v3422
    %v3424 = vpop.xlane.xlu0 %3423
    %v3425 = vsel %vm1078, %v3408, 0.0
    %3426 = vadd.xlane.f32.xlu0 %v3425
    %v3427 = vpop.xlane.xlu0 %3426
    %v3428 = vsel %vm1078, %v3410, 0.0
    %3429 = vadd.xlane.f32.xlu0 %v3428
    %v3430 = vpop.xlane.xlu0 %3429
    %v3431 = vsel %vm1078, %v3412, 0.0
    %3432 = vadd.xlane.f32.xlu0 %v3431
    %v3433 = vpop.xlane.xlu0 %3432
    %v3434 = vsel %vm1078, %v3414, 0.0
    %3435 = vadd.xlane.f32.xlu0 %v3434
    %v3436 = vpop.xlane.xlu0 %3435
    %v3437 = vsel %vm1078, %v3416, 0.0
    %3438 = vadd.xlane.f32.xlu0 %v3437
    %v3439 = vpop.xlane.xlu0 %3438
    %v3440 = vsel %vm1078, %v3418, 0.0
    %3441 = vadd.xlane.f32.xlu0 %v3440
    %v3442 = vpop.xlane.xlu0 %3441
    %v3443 = vrcp.pop %v3421
    %v3444 = vrcp.pop %v3424
    %v3445 = vrcp.pop %v3427
    %v3446 = vrcp.pop %v3430
    %v3447 = vrcp.pop %v3433
    %v3448 = vrcp.pop %v3436
    %v3449 = vrcp.pop %v3439
    %v3450 = vrcp.pop %v3442
    %v3451 = vmul.f32 %v3404, %v3443
    %v3452 = vmul.f32 %v3406, %v3444
    %v3453 = vmul.f32 %v3408, %v3445
    %v3454 = vmul.f32 %v3410, %v3446
    %v3455 = vmul.f32 %v3412, %v3447
    %v3456 = vmul.f32 %v3414, %v3448
    %v3457 = vmul.f32 %v3416, %v3449
    %v3458 = vmul.f32 %v3418, %v3450
    %v3459 = vpack.c.bf16 %v3452, %v3451
    %v3460 = vpack.c.bf16 %v3454, %v3453
    %v3461 = vpack.c.bf16 %v3456, %v3455
    %v3462 = vpack.c.bf16 %v3458, %v3457
    %v3464 = vsel %vm1078, %v3459, 0
    %v3467 = vsel %vm1078, %v3460, 0
    %v3470 = vsel %vm1078, %v3461, 0
    %v3473 = vsel %vm1078, %v3462, 0
    %3475 = vmatprep.subr.bf16.mxu0 0
    %3476 = vmatpush1.bf16.msra.mxu0 %v3278
    %3477 = vmatprep.subr.bf16.mxu0 0
    %3478 = vmatpush1.bf16.msra.mxu0 %v3279
    %3479 = vmatprep.subr.bf16.mxu0 0
    %3480 = vmatpush1.bf16.msra.mxu0 %v3280
    %3481 = vmatprep.subr.bf16.mxu0 0
    %3482 = vmatpush1.bf16.msra.mxu0 %v3281
    %3483 = vmatprep.subr.bf16.mxu0 0
    %3484 = vmatpush1.bf16.msra.mxu0 0
    %3485 = vmatprep.subr.bf16.mxu0 0
    %3486 = vmatpush1.bf16.msra.mxu0 0
    %3487 = vmatprep.subr.bf16.mxu0 0
    %3488 = vmatpush1.bf16.msra.mxu0 0
    %3489 = vmatprep.subr.bf16.mxu0 0
    %3490 = vmatpush1.bf16.msra.mxu0 0
    %3491 = vmatprep.subr.bf16.mxu0 0
    %3492 = vmatpush1.bf16.msra.mxu0 0
    %3493 = vmatprep.subr.bf16.mxu0 0
    %3494 = vmatpush1.bf16.msra.mxu0 0
    %3495 = vmatprep.subr.bf16.mxu0 0
    %3496 = vmatpush1.bf16.msra.mxu0 0
    %3497 = vmatprep.subr.bf16.mxu0 0
    %3498 = vmatpush1.bf16.msra.mxu0 0
    %3499 = vmatprep.subr.bf16.mxu0 0
    %3500 = vmatpush1.bf16.msra.mxu0 0
    %3501 = vmatprep.subr.bf16.mxu0 0
    %3502 = vmatpush1.bf16.msra.mxu0 0
    %3503 = vmatprep.subr.bf16.mxu0 0
    %3504 = vmatpush1.bf16.msra.mxu0 0
    %3505 = vmatprep.subr.bf16.mxu0 0
    %3506 = vmatpush1.bf16.msra.mxu0 0
    %3507 = vmatprep.mubr.bf16.mxu0 0
    %3508 = vmatmul.mubr.bf16.gmra.mrb[0].mxu0 %v3464
    %v3509 = vpop.f32.mrb[0].mxu0
    %v3510 = vadd.f32 0.0, %v3509
    %v3511 = vpop.f32.mrb[0].mxu0
    %v3512 = vpop.f32.mrb[0].mxu0
    %v3513 = vadd.f32 0.0, %v3512
    %v3514 = vpop.f32.mrb[0].mxu0
    %3515 = vmatprep.mubr.bf16.mxu0 0
    %3516 = vmatmul.mubr.bf16.gmra.mrb[0].mxu0 %v3467
    %v3517 = vpop.f32.mrb[0].mxu0
    %v3518 = vadd.f32 0.0, %v3517
    %v3519 = vpop.f32.mrb[0].mxu0
    %v3520 = vpop.f32.mrb[0].mxu0
    %v3521 = vadd.f32 0.0, %v3520
    %v3522 = vpop.f32.mrb[0].mxu0
    %3523 = vmatprep.mubr.bf16.mxu0 0
    %3524 = vmatmul.mubr.bf16.gmra.mrb[0].mxu0 %v3470
    %v3525 = vpop.f32.mrb[0].mxu0
    %v3526 = vadd.f32 0.0, %v3525
    %v3527 = vpop.f32.mrb[0].mxu0
    %v3528 = vpop.f32.mrb[0].mxu0
    %v3529 = vadd.f32 0.0, %v3528
    %v3530 = vpop.f32.mrb[0].mxu0
    %3531 = vmatprep.mubr.bf16.mxu0 0
    %3532 = vmatmul.mubr.bf16.gmra.mrb[0].mxu0 %v3473
    %v3533 = vpop.f32.mrb[0].mxu0
    %v3534 = vadd.f32 0.0, %v3533
    %v3535 = vpop.f32.mrb[0].mxu0
    %v3536 = vpop.f32.mrb[0].mxu0
    %v3537 = vadd.f32 0.0, %v3536
    %v3538 = vpop.f32.mrb[0].mxu0
    %3539 = vdwg.mxu0
    %v3540 = vpack.c.bf16 %v3243, %v3240
    %v3541 = vpack.c.bf16 %v3251, %v3248
    %v3542 = vpack.c.bf16 %v3259, %v3256
    %v3543 = vpack.c.bf16 %v3267, %v3264
    %v3544 = vpack.c.bf16 %v3513, %v3510
    %v3545 = vpack.c.bf16 %v3521, %v3518
    %v3546 = vpack.c.bf16 %v3529, %v3526
    %v3547 = vpack.c.bf16 %v3537, %v3534
    %v3549 = vsel %vm988, %v3540, 0
    %v3552 = vsel %vm988, %v3541, 0
    %v3555 = vsel %vm988, %v3542, 0
    %v3558 = vsel %vm988, %v3543, 0
    %v3561 = vsel %vm988, %v3544, 0
    %v3564 = vsel %vm988, %v3545, 0
    %v3567 = vsel %vm988, %v3546, 0
    %v3570 = vsel %vm988, %v3547, 0
    %v3573 = vsel %vm252, %v594, 0
    %3575 = vmatprep.subr.bf16.mxu0 0
    %3576 = vmatpush1.bf16.msra.mxu0 %v3573
    %3577 = vmatprep.subr.bf16.mxu0 0
    %3578 = vmatpush1.bf16.msra.mxu0 0
    %3579 = vmatprep.subr.bf16.mxu0 0
    %3580 = vmatpush1.bf16.msra.mxu0 0
    %3581 = vmatprep.subr.bf16.mxu0 0
    %3582 = vmatpush1.bf16.msra.mxu0 0
    %3583 = vmatprep.subr.bf16.mxu0 0
    %3584 = vmatpush1.bf16.msra.mxu0 0
    %3585 = vmatprep.subr.bf16.mxu0 0
    %3586 = vmatpush1.bf16.msra.mxu0 0
    %3587 = vmatprep.subr.bf16.mxu0 0
    %3588 = vmatpush1.bf16.msra.mxu0 0
    %3589 = vmatprep.subr.bf16.mxu0 0
    %3590 = vmatpush1.bf16.msra.mxu0 0
    %3591 = vmatprep.subr.bf16.mxu0 0
    %3592 = vmatpush1.bf16.msra.mxu0 0
    %3593 = vmatprep.subr.bf16.mxu0 0
    %3594 = vmatpush1.bf16.msra.mxu0 0
    %3595 = vmatprep.subr.bf16.mxu0 0
    %3596 = vmatpush1.bf16.msra.mxu0 0
    %3597 = vmatprep.subr.bf16.mxu0 0
    %3598 = vmatpush1.bf16.msra.mxu0 0
    %3599 = vmatprep.subr.bf16.mxu0 0
    %3600 = vmatpush1.bf16.msra.mxu0 0
    %3601 = vmatprep.subr.bf16.mxu0 0
    %3602 = vmatpush1.bf16.msra.mxu0 0
    %3603 = vmatprep.subr.bf16.mxu0 0
    %3604 = vmatpush1.bf16.msra.mxu0 0
    %3605 = vmatprep.subr.bf16.mxu0 0
    %3606 = vmatpush1.bf16.msra.mxu0 0
    %3607 = vmatprep.mubr.bf16.mxu0 0
    %3608 = vmatmul.mubr.bf16.gmra.mrb[0].mxu0 %v3549
    %v3609 = vpop.f32.mrb[0].mxu0
    %v3610 = vadd.f32 0.0, %v3609
    %v3611 = vpop.f32.mrb[0].mxu0
    %v3612 = vpop.f32.mrb[0].mxu0
    %v3613 = vadd.f32 0.0, %v3612
    %v3614 = vpop.f32.mrb[0].mxu0
    %3615 = vmatprep.mubr.bf16.mxu0 0
    %3616 = vmatmul.mubr.bf16.gmra.mrb[0].mxu0 %v3552
    %v3617 = vpop.f32.mrb[0].mxu0
    %v3618 = vadd.f32 0.0, %v3617
    %v3619 = vpop.f32.mrb[0].mxu0
    %v3620 = vpop.f32.mrb[0].mxu0
    %v3621 = vadd.f32 0.0, %v3620
    %v3622 = vpop.f32.mrb[0].mxu0
    %3623 = vmatprep.mubr.bf16.mxu0 0
    %3624 = vmatmul.mubr.bf16.gmra.mrb[0].mxu0 %v3555
    %v3625 = vpop.f32.mrb[0].mxu0
    %v3626 = vadd.f32 0.0, %v3625
    %v3627 = vpop.f32.mrb[0].mxu0
    %v3628 = vpop.f32.mrb[0].mxu0
    %v3629 = vadd.f32 0.0, %v3628
    %v3630 = vpop.f32.mrb[0].mxu0
    %3631 = vmatprep.mubr.bf16.mxu0 0
    %3632 = vmatmul.mubr.bf16.gmra.mrb[0].mxu0 %v3558
    %v3633 = vpop.f32.mrb[0].mxu0
    %v3634 = vadd.f32 0.0, %v3633
    %v3635 = vpop.f32.mrb[0].mxu0
    %v3636 = vpop.f32.mrb[0].mxu0
    %v3637 = vadd.f32 0.0, %v3636
    %v3638 = vpop.f32.mrb[0].mxu0
    %3639 = vmatprep.mubr.bf16.mxu0 0
    %3640 = vmatmul.mubr.bf16.gmra.mrb[0].mxu0 %v3561
    %v3641 = vpop.f32.mrb[0].mxu0
    %v3642 = vadd.f32 0.0, %v3641
    %v3643 = vpop.f32.mrb[0].mxu0
    %v3644 = vpop.f32.mrb[0].mxu0
    %v3645 = vadd.f32 0.0, %v3644
    %v3646 = vpop.f32.mrb[0].mxu0
    %3647 = vmatprep.mubr.bf16.mxu0 0
    %3648 = vmatmul.mubr.bf16.gmra.mrb[0].mxu0 %v3564
    %v3649 = vpop.f32.mrb[0].mxu0
    %v3650 = vadd.f32 0.0, %v3649
    %v3651 = vpop.f32.mrb[0].mxu0
    %v3652 = vpop.f32.mrb[0].mxu0
    %v3653 = vadd.f32 0.0, %v3652
    %v3654 = vpop.f32.mrb[0].mxu0
    %3655 = vmatprep.mubr.bf16.mxu0 0
    %3656 = vmatmul.mubr.bf16.gmra.mrb[0].mxu0 %v3567
    %v3657 = vpop.f32.mrb[0].mxu0
    %v3658 = vadd.f32 0.0, %v3657
    %v3659 = vpop.f32.mrb[0].mxu0
    %v3660 = vpop.f32.mrb[0].mxu0
    %v3661 = vadd.f32 0.0, %v3660
    %v3662 = vpop.f32.mrb[0].mxu0
    %3663 = vmatprep.mubr.bf16.mxu0 0
    %3664 = vmatmul.mubr.bf16.gmra.mrb[0].mxu0 %v3570
    %v3665 = vpop.f32.mrb[0].mxu0
    %v3666 = vadd.f32 0.0, %v3665
    %v3667 = vpop.f32.mrb[0].mxu0
    %v3668 = vpop.f32.mrb[0].mxu0
    %v3669 = vadd.f32 0.0, %v3668
    %v3670 = vpop.f32.mrb[0].mxu0
    %3671 = vdwg.mxu0
    %v3672 = vadd.f32 %v2599, %v3610
    %v3673 = vadd.f32 %v2602, %v3613
    %v3674 = vadd.f32 %v2607, %v3618
    %v3675 = vadd.f32 %v2610, %v3621
    %v3676 = vadd.f32 %v2615, %v3626
    %v3677 = vadd.f32 %v2618, %v3629
    %v3678 = vadd.f32 %v2623, %v3634
    %v3679 = vadd.f32 %v2626, %v3637
    %v3680 = vadd.f32 %v2631, %v3642
    %v3681 = vadd.f32 %v2634, %v3645
    %v3682 = vadd.f32 %v2639, %v3650
    %v3683 = vadd.f32 %v2642, %v3653
    %v3684 = vadd.f32 %v2647, %v3658
    %v3685 = vadd.f32 %v2650, %v3661
    %v3686 = vadd.f32 %v2655, %v3666
    %v3687 = vadd.f32 %v2658, %v3669
    %v3688 = vlaneseq
    %v3689 = vshrl.u32 %v3688, 7
    %v3690 = vsub.s32 0, %v3689
    %v3691 = vrot.slane %v600, %v3690
    %v3696 = vunpack.c.l.b16 %v549
    %v3697 = vunpack.c.l.b16 %v550
    %v3698 = vunpack.c.l.b16 %v551
    %v3699 = vunpack.c.l.b16 %v552
    %v3700 = vpack.c.b16 %v3697, %v3696
    %v3701 = vpack.c.b16 %v3699, %v3698
    %3704 = vmatprep.subr.bf16.mxu0 0
    %3705 = vmatpush1.bf16.msra.mxu0 %v3700
    %3706 = vmatprep.subr.bf16.mxu0 0
    %3707 = vmatpush1.bf16.msra.mxu0 %v3701
    %3708 = vmatprep.subr.bf16.mxu0 0
    %3709 = vmatpush1.bf16.msra.mxu0 0
    %3710 = vmatprep.subr.bf16.mxu0 0
    %3711 = vmatpush1.bf16.msra.mxu0 0
    %3712 = vmatprep.subr.bf16.mxu0 0
    %3713 = vmatpush1.bf16.msra.mxu0 0
    %3714 = vmatprep.subr.bf16.mxu0 0
    %3715 = vmatpush1.bf16.msra.mxu0 0
    %3716 = vmatprep.subr.bf16.mxu0 0
    %3717 = vmatpush1.bf16.msra.mxu0 0
    %3718 = vmatprep.subr.bf16.mxu0 0
    %3719 = vmatpush1.bf16.msra.mxu0 0
    %3720 = vmatprep.subr.bf16.mxu0 0
    %3721 = vmatpush1.bf16.msra.mxu0 0
    %3722 = vmatprep.subr.bf16.mxu0 0
    %3723 = vmatpush1.bf16.msra.mxu0 0
    %3724 = vmatprep.subr.bf16.mxu0 0
    %3725 = vmatpush1.bf16.msra.mxu0 0
    %3726 = vmatprep.subr.bf16.mxu0 0
    %3727 = vmatpush1.bf16.msra.mxu0 0
    %3728 = vmatprep.subr.bf16.mxu0 0
    %3729 = vmatpush1.bf16.msra.mxu0 0
    %3730 = vmatprep.subr.bf16.mxu0 0
    %3731 = vmatpush1.bf16.msra.mxu0 0
    %3732 = vmatprep.subr.bf16.mxu0 0
    %3733 = vmatpush1.bf16.msra.mxu0 0
    %3734 = vmatprep.subr.bf16.mxu0 0
    %3735 = vmatpush1.bf16.msra.mxu0 0
    %3736 = vmatprep.mubr.bf16.mxu0 0
    %3737 = vmatmul.mubr.bf16.gmra.mrb[0].mxu0 %v630
    %v3738 = vpop.f32.mrb[0].mxu0
    %v3739 = vadd.f32 %v3691, %v3738
    %v3740 = vpop.f32.mrb[0].mxu0
    %v3741 = vpop.f32.mrb[0].mxu0
    %v3742 = vadd.f32 %v3691, %v3741
    %v3743 = vpop.f32.mrb[0].mxu0
    %3744 = vmatprep.mubr.bf16.mxu0 0
    %3745 = vmatmul.mubr.bf16.gmra.mrb[0].mxu0 %v633
    %v3746 = vpop.f32.mrb[0].mxu0
    %v3747 = vadd.f32 %v3691, %v3746
    %v3748 = vpop.f32.mrb[0].mxu0
    %v3749 = vpop.f32.mrb[0].mxu0
    %v3750 = vadd.f32 %v3691, %v3749
    %v3751 = vpop.f32.mrb[0].mxu0
    %3752 = vmatprep.mubr.bf16.mxu0 0
    %3753 = vmatmul.mubr.bf16.gmra.mrb[0].mxu0 %v636
    %v3754 = vpop.f32.mrb[0].mxu0
    %v3755 = vadd.f32 %v3691, %v3754
    %v3756 = vpop.f32.mrb[0].mxu0
    %v3757 = vpop.f32.mrb[0].mxu0
    %v3758 = vadd.f32 %v3691, %v3757
    %v3759 = vpop.f32.mrb[0].mxu0
    %3760 = vmatprep.mubr.bf16.mxu0 0
    %3761 = vmatmul.mubr.bf16.gmra.mrb[0].mxu0 %v639
    %v3762 = vpop.f32.mrb[0].mxu0
    %v3763 = vadd.f32 %v3691, %v3762
    %v3764 = vpop.f32.mrb[0].mxu0
    %v3765 = vpop.f32.mrb[0].mxu0
    %v3766 = vadd.f32 %v3691, %v3765
    %v3767 = vpop.f32.mrb[0].mxu0
    %3768 = vmatprep.mubr.bf16.mxu0 0
    %3769 = vmatmul.mubr.bf16.gmra.mrb[0].mxu0 %v642
    %v3770 = vpop.f32.mrb[0].mxu0
    %v3771 = vadd.f32 %v3691, %v3770
    %v3772 = vpop.f32.mrb[0].mxu0
    %v3773 = vpop.f32.mrb[0].mxu0
    %v3774 = vadd.f32 %v3691, %v3773
    %v3775 = vpop.f32.mrb[0].mxu0
    %3776 = vmatprep.mubr.bf16.mxu0 0
    %3777 = vmatmul.mubr.bf16.gmra.mrb[0].mxu0 %v645
    %v3778 = vpop.f32.mrb[0].mxu0
    %v3779 = vadd.f32 %v3691, %v3778
    %v3780 = vpop.f32.mrb[0].mxu0
    %v3781 = vpop.f32.mrb[0].mxu0
    %v3782 = vadd.f32 %v3691, %v3781
    %v3783 = vpop.f32.mrb[0].mxu0
    %3784 = vmatprep.mubr.bf16.mxu0 0
    %3785 = vmatmul.mubr.bf16.gmra.mrb[0].mxu0 %v648
    %v3786 = vpop.f32.mrb[0].mxu0
    %v3787 = vadd.f32 %v3691, %v3786
    %v3788 = vpop.f32.mrb[0].mxu0
    %v3789 = vpop.f32.mrb[0].mxu0
    %v3790 = vadd.f32 %v3691, %v3789
    %v3791 = vpop.f32.mrb[0].mxu0
    %3792 = vmatprep.mubr.bf16.mxu0 0
    %3793 = vmatmul.mubr.bf16.gmra.mrb[0].mxu0 %v651
    %v3794 = vpop.f32.mrb[0].mxu0
    %v3795 = vadd.f32 %v3691, %v3794
    %v3796 = vpop.f32.mrb[0].mxu0
    %v3797 = vpop.f32.mrb[0].mxu0
    %v3798 = vadd.f32 %v3691, %v3797
    %v3799 = vpop.f32.mrb[0].mxu0
    %3800 = vdwg.mxu0
    %v3801 = vlaneseq
    %v3802 = vshrl.u32 %v3801, 7
    %v3803 = vsub.s32 1, %v3802
    %v3804 = vrot.slane %v600, %v3803
    %v3809 = vunpack.c.l.b16 %v567
    %v3810 = vunpack.c.l.b16 %v568
    %v3811 = vunpack.c.l.b16 %v569
    %v3812 = vunpack.c.l.b16 %v570
    %v3813 = vpack.c.b16 %v3810, %v3809
    %v3814 = vpack.c.b16 %v3812, %v3811
    %3817 = vmatprep.subr.bf16.mxu0 0
    %3818 = vmatpush1.bf16.msra.mxu0 %v3813
    %3819 = vmatprep.subr.bf16.mxu0 0
    %3820 = vmatpush1.bf16.msra.mxu0 %v3814
    %3821 = vmatprep.subr.bf16.mxu0 0
    %3822 = vmatpush1.bf16.msra.mxu0 0
    %3823 = vmatprep.subr.bf16.mxu0 0
    %3824 = vmatpush1.bf16.msra.mxu0 0
    %3825 = vmatprep.subr.bf16.mxu0 0
    %3826 = vmatpush1.bf16.msra.mxu0 0
    %3827 = vmatprep.subr.bf16.mxu0 0
    %3828 = vmatpush1.bf16.msra.mxu0 0
    %3829 = vmatprep.subr.bf16.mxu0 0
    %3830 = vmatpush1.bf16.msra.mxu0 0
    %3831 = vmatprep.subr.bf16.mxu0 0
    %3832 = vmatpush1.bf16.msra.mxu0 0
    %3833 = vmatprep.subr.bf16.mxu0 0
    %3834 = vmatpush1.bf16.msra.mxu0 0
    %3835 = vmatprep.subr.bf16.mxu0 0
    %3836 = vmatpush1.bf16.msra.mxu0 0
    %3837 = vmatprep.subr.bf16.mxu0 0
    %3838 = vmatpush1.bf16.msra.mxu0 0
    %3839 = vmatprep.subr.bf16.mxu0 0
    %3840 = vmatpush1.bf16.msra.mxu0 0
    %3841 = vmatprep.subr.bf16.mxu0 0
    %3842 = vmatpush1.bf16.msra.mxu0 0
    %3843 = vmatprep.subr.bf16.mxu0 0
    %3844 = vmatpush1.bf16.msra.mxu0 0
    %3845 = vmatprep.subr.bf16.mxu0 0
    %3846 = vmatpush1.bf16.msra.mxu0 0
    %3847 = vmatprep.subr.bf16.mxu0 0
    %3848 = vmatpush1.bf16.msra.mxu0 0
    %3849 = vmatprep.mubr.bf16.mxu0 0
    %3850 = vmatmul.mubr.bf16.gmra.mrb[0].mxu0 %v630
    %v3851 = vpop.f32.mrb[0].mxu0
    %v3852 = vadd.f32 %v3804, %v3851
    %v3853 = vpop.f32.mrb[0].mxu0
    %v3854 = vpop.f32.mrb[0].mxu0
    %v3855 = vadd.f32 %v3804, %v3854
    %v3856 = vpop.f32.mrb[0].mxu0
    %3857 = vmatprep.mubr.bf16.mxu0 0
    %3858 = vmatmul.mubr.bf16.gmra.mrb[0].mxu0 %v633
    %v3859 = vpop.f32.mrb[0].mxu0
    %v3860 = vadd.f32 %v3804, %v3859
    %v3861 = vpop.f32.mrb[0].mxu0
    %v3862 = vpop.f32.mrb[0].mxu0
    %v3863 = vadd.f32 %v3804, %v3862
    %v3864 = vpop.f32.mrb[0].mxu0
    %3865 = vmatprep.mubr.bf16.mxu0 0
    %3866 = vmatmul.mubr.bf16.gmra.mrb[0].mxu0 %v636
    %v3867 = vpop.f32.mrb[0].mxu0
    %v3868 = vadd.f32 %v3804, %v3867
    %v3869 = vpop.f32.mrb[0].mxu0
    %v3870 = vpop.f32.mrb[0].mxu0
    %v3871 = vadd.f32 %v3804, %v3870
    %v3872 = vpop.f32.mrb[0].mxu0
    %3873 = vmatprep.mubr.bf16.mxu0 0
    %3874 = vmatmul.mubr.bf16.gmra.mrb[0].mxu0 %v639
    %v3875 = vpop.f32.mrb[0].mxu0
    %v3876 = vadd.f32 %v3804, %v3875
    %v3877 = vpop.f32.mrb[0].mxu0
    %v3878 = vpop.f32.mrb[0].mxu0
    %v3879 = vadd.f32 %v3804, %v3878
    %v3880 = vpop.f32.mrb[0].mxu0
    %3881 = vmatprep.mubr.bf16.mxu0 0
    %3882 = vmatmul.mubr.bf16.gmra.mrb[0].mxu0 %v642
    %v3883 = vpop.f32.mrb[0].mxu0
    %v3884 = vadd.f32 %v3804, %v3883
    %v3885 = vpop.f32.mrb[0].mxu0
    %v3886 = vpop.f32.mrb[0].mxu0
    %v3887 = vadd.f32 %v3804, %v3886
    %v3888 = vpop.f32.mrb[0].mxu0
    %3889 = vmatprep.mubr.bf16.mxu0 0
    %3890 = vmatmul.mubr.bf16.gmra.mrb[0].mxu0 %v645
    %v3891 = vpop.f32.mrb[0].mxu0
    %v3892 = vadd.f32 %v3804, %v3891
    %v3893 = vpop.f32.mrb[0].mxu0
    %v3894 = vpop.f32.mrb[0].mxu0
    %v3895 = vadd.f32 %v3804, %v3894
    %v3896 = vpop.f32.mrb[0].mxu0
    %3897 = vmatprep.mubr.bf16.mxu0 0
    %3898 = vmatmul.mubr.bf16.gmra.mrb[0].mxu0 %v648
    %v3899 = vpop.f32.mrb[0].mxu0
    %v3900 = vadd.f32 %v3804, %v3899
    %v3901 = vpop.f32.mrb[0].mxu0
    %v3902 = vpop.f32.mrb[0].mxu0
    %v3903 = vadd.f32 %v3804, %v3902
    %v3904 = vpop.f32.mrb[0].mxu0
    %3905 = vmatprep.mubr.bf16.mxu0 0
    %3906 = vmatmul.mubr.bf16.gmra.mrb[0].mxu0 %v651
    %v3907 = vpop.f32.mrb[0].mxu0
    %v3908 = vadd.f32 %v3804, %v3907
    %v3909 = vpop.f32.mrb[0].mxu0
    %v3910 = vpop.f32.mrb[0].mxu0
    %v3911 = vadd.f32 %v3804, %v3910
    %v3912 = vpop.f32.mrb[0].mxu0
    %3913 = vdwg.mxu0
    %v3914 = vlaneseq
    %v3915 = vshrl.u32 %v3914, 7
    %v3916 = vsub.s32 2, %v3915
    %v3917 = vrot.slane %v600, %v3916
    %v3922 = vunpack.c.l.b16 %v585
    %v3923 = vunpack.c.l.b16 %v586
    %v3924 = vunpack.c.l.b16 %v587
    %v3925 = vunpack.c.l.b16 %v588
    %v3926 = vpack.c.b16 %v3923, %v3922
    %v3927 = vpack.c.b16 %v3925, %v3924
    %3930 = vmatprep.subr.bf16.mxu0 0
    %3931 = vmatpush1.bf16.msra.mxu0 %v3926
    %3932 = vmatprep.subr.bf16.mxu0 0
    %3933 = vmatpush1.bf16.msra.mxu0 %v3927
    %3934 = vmatprep.subr.bf16.mxu0 0
    %3935 = vmatpush1.bf16.msra.mxu0 0
    %3936 = vmatprep.subr.bf16.mxu0 0
    %3937 = vmatpush1.bf16.msra.mxu0 0
    %3938 = vmatprep.subr.bf16.mxu0 0
    %3939 = vmatpush1.bf16.msra.mxu0 0
    %3940 = vmatprep.subr.bf16.mxu0 0
    %3941 = vmatpush1.bf16.msra.mxu0 0
    %3942 = vmatprep.subr.bf16.mxu0 0
    %3943 = vmatpush1.bf16.msra.mxu0 0
    %3944 = vmatprep.subr.bf16.mxu0 0
    %3945 = vmatpush1.bf16.msra.mxu0 0
    %3946 = vmatprep.subr.bf16.mxu0 0
    %3947 = vmatpush1.bf16.msra.mxu0 0
    %3948 = vmatprep.subr.bf16.mxu0 0
    %3949 = vmatpush1.bf16.msra.mxu0 0
    %3950 = vmatprep.subr.bf16.mxu0 0
    %3951 = vmatpush1.bf16.msra.mxu0 0
    %3952 = vmatprep.subr.bf16.mxu0 0
    %3953 = vmatpush1.bf16.msra.mxu0 0
    %3954 = vmatprep.subr.bf16.mxu0 0
    %3955 = vmatpush1.bf16.msra.mxu0 0
    %3956 = vmatprep.subr.bf16.mxu0 0
    %3957 = vmatpush1.bf16.msra.mxu0 0
    %3958 = vmatprep.subr.bf16.mxu0 0
    %3959 = vmatpush1.bf16.msra.mxu0 0
    %3960 = vmatprep.subr.bf16.mxu0 0
    %3961 = vmatpush1.bf16.msra.mxu0 0
    %3962 = vmatprep.mubr.bf16.mxu0 0
    %3963 = vmatmul.mubr.bf16.gmra.mrb[0].mxu0 %v630
    %v3964 = vpop.f32.mrb[0].mxu0
    %v3965 = vadd.f32 %v3917, %v3964
    %v3966 = vpop.f32.mrb[0].mxu0
    %v3967 = vpop.f32.mrb[0].mxu0
    %v3968 = vadd.f32 %v3917, %v3967
    %v3969 = vpop.f32.mrb[0].mxu0
    %3970 = vmatprep.mubr.bf16.mxu0 0
    %3971 = vmatmul.mubr.bf16.gmra.mrb[0].mxu0 %v633
    %v3972 = vpop.f32.mrb[0].mxu0
    %v3973 = vadd.f32 %v3917, %v3972
    %v3974 = vpop.f32.mrb[0].mxu0
    %v3975 = vpop.f32.mrb[0].mxu0
    %v3976 = vadd.f32 %v3917, %v3975
    %v3977 = vpop.f32.mrb[0].mxu0
    %3978 = vmatprep.mubr.bf16.mxu0 0
    %3979 = vmatmul.mubr.bf16.gmra.mrb[0].mxu0 %v636
    %v3980 = vpop.f32.mrb[0].mxu0
    %v3981 = vadd.f32 %v3917, %v3980
    %v3982 = vpop.f32.mrb[0].mxu0
    %v3983 = vpop.f32.mrb[0].mxu0
    %v3984 = vadd.f32 %v3917, %v3983
    %v3985 = vpop.f32.mrb[0].mxu0
    %3986 = vmatprep.mubr.bf16.mxu0 0
    %3987 = vmatmul.mubr.bf16.gmra.mrb[0].mxu0 %v639
    %v3988 = vpop.f32.mrb[0].mxu0
    %v3989 = vadd.f32 %v3917, %v3988
    %v3990 = vpop.f32.mrb[0].mxu0
    %v3991 = vpop.f32.mrb[0].mxu0
    %v3992 = vadd.f32 %v3917, %v3991
    %v3993 = vpop.f32.mrb[0].mxu0
    %3994 = vmatprep.mubr.bf16.mxu0 0
    %3995 = vmatmul.mubr.bf16.gmra.mrb[0].mxu0 %v642
    %v3996 = vpop.f32.mrb[0].mxu0
    %v3997 = vadd.f32 %v3917, %v3996
    %v3998 = vpop.f32.mrb[0].mxu0
    %v3999 = vpop.f32.mrb[0].mxu0
    %v4000 = vadd.f32 %v3917, %v3999
    %v4001 = vpop.f32.mrb[0].mxu0
    %4002 = vmatprep.mubr.bf16.mxu0 0
    %4003 = vmatmul.mubr.bf16.gmra.mrb[0].mxu0 %v645
    %v4004 = vpop.f32.mrb[0].mxu0
    %v4005 = vadd.f32 %v3917, %v4004
    %v4006 = vpop.f32.mrb[0].mxu0
    %v4007 = vpop.f32.mrb[0].mxu0
    %v4008 = vadd.f32 %v3917, %v4007
    %v4009 = vpop.f32.mrb[0].mxu0
    %4010 = vmatprep.mubr.bf16.mxu0 0
    %4011 = vmatmul.mubr.bf16.gmra.mrb[0].mxu0 %v648
    %v4012 = vpop.f32.mrb[0].mxu0
    %v4013 = vadd.f32 %v3917, %v4012
    %v4014 = vpop.f32.mrb[0].mxu0
    %v4015 = vpop.f32.mrb[0].mxu0
    %v4016 = vadd.f32 %v3917, %v4015
    %v4017 = vpop.f32.mrb[0].mxu0
    %4018 = vmatprep.mubr.bf16.mxu0 0
    %4019 = vmatmul.mubr.bf16.gmra.mrb[0].mxu0 %v651
    %v4020 = vpop.f32.mrb[0].mxu0
    %v4021 = vadd.f32 %v3917, %v4020
    %v4022 = vpop.f32.mrb[0].mxu0
    %v4023 = vpop.f32.mrb[0].mxu0
    %v4024 = vadd.f32 %v3917, %v4023
    %v4025 = vpop.f32.mrb[0].mxu0
    %4026 = vdwg.mxu0
    %v4027 = vpack.c.bf16 %v3742, %v3739
    %v4028 = vpack.c.bf16 %v3750, %v3747
    %v4029 = vpack.c.bf16 %v3758, %v3755
    %v4030 = vpack.c.bf16 %v3766, %v3763
    %v4031 = vpack.c.bf16 %v3855, %v3852
    %v4032 = vpack.c.bf16 %v3863, %v3860
    %v4033 = vpack.c.bf16 %v3871, %v3868
    %v4034 = vpack.c.bf16 %v3879, %v3876
    %v4035 = vpack.c.bf16 %v3968, %v3965
    %v4036 = vpack.c.bf16 %v3976, %v3973
    %v4037 = vpack.c.bf16 %v3984, %v3981
    %v4038 = vpack.c.bf16 %v3992, %v3989
    %v4040 = vsel %vm988, %v4027, 0
    %v4043 = vsel %vm988, %v4028, 0
    %v4046 = vsel %vm988, %v4029, 0
    %v4049 = vsel %vm988, %v4030, 0
    %v4052 = vsel %vm988, %v4031, 0
    %v4055 = vsel %vm988, %v4032, 0
    %v4058 = vsel %vm988, %v4033, 0
    %v4061 = vsel %vm988, %v4034, 0
    %4063 = vmatprep.subr.bf16.mxu0 0
    %4064 = vmatpush1.bf16.xpose.msra.mxu0 %v4052
    %4065 = vmatprep.subr.bf16.mxu0 0
    %4066 = vmatpush1.bf16.xpose.msra.mxu0 %v4055
    %4067 = vmatprep.subr.bf16.mxu0 0
    %4068 = vmatpush1.bf16.xpose.msra.mxu0 %v4058
    %4069 = vmatprep.subr.bf16.mxu0 0
    %4070 = vmatpush1.bf16.xpose.msra.mxu0 %v4061
    %4071 = vmatprep.subr.bf16.mxu0 0
    %4072 = vmatpush1.bf16.xpose.msra.mxu0 0
    %4073 = vmatprep.subr.bf16.mxu0 0
    %4074 = vmatpush1.bf16.xpose.msra.mxu0 0
    %4075 = vmatprep.subr.bf16.mxu0 0
    %4076 = vmatpush1.bf16.xpose.msra.mxu0 0
    %4077 = vmatprep.subr.bf16.mxu0 0
    %4078 = vmatpush1.bf16.xpose.msra.mxu0 0
    %4079 = vmatprep.subr.bf16.mxu0 0
    %4080 = vmatpush1.bf16.xpose.msra.mxu0 0
    %4081 = vmatprep.subr.bf16.mxu0 0
    %4082 = vmatpush1.bf16.xpose.msra.mxu0 0
    %4083 = vmatprep.subr.bf16.mxu0 0
    %4084 = vmatpush1.bf16.xpose.msra.mxu0 0
    %4085 = vmatprep.subr.bf16.mxu0 0
    %4086 = vmatpush1.bf16.xpose.msra.mxu0 0
    %4087 = vmatprep.subr.bf16.mxu0 0
    %4088 = vmatpush1.bf16.xpose.msra.mxu0 0
    %4089 = vmatprep.subr.bf16.mxu0 0
    %4090 = vmatpush1.bf16.xpose.msra.mxu0 0
    %4091 = vmatprep.subr.bf16.mxu0 0
    %4092 = vmatpush1.bf16.xpose.msra.mxu0 0
    %4093 = vmatprep.subr.bf16.mxu0 0
    %4094 = vmatpush1.bf16.xpose.msra.mxu0 0
    %4095 = vmatprep.mubr.bf16.mxu0 0
    %4096 = vmatmul.mubr.bf16.gmra.mrb[0].mxu0 %v4040
    %v4097 = vpop.f32.mrb[0].mxu0
    %v4098 = vadd.f32 0.0, %v4097
    %v4099 = vpop.f32.mrb[0].mxu0
    %v4100 = vpop.f32.mrb[0].mxu0
    %v4101 = vadd.f32 0.0, %v4100
    %v4102 = vpop.f32.mrb[0].mxu0
    %4103 = vmatprep.mubr.bf16.mxu0 0
    %4104 = vmatmul.mubr.bf16.gmra.mrb[0].mxu0 %v4043
    %v4105 = vpop.f32.mrb[0].mxu0
    %v4106 = vadd.f32 0.0, %v4105
    %v4107 = vpop.f32.mrb[0].mxu0
    %v4108 = vpop.f32.mrb[0].mxu0
    %v4109 = vadd.f32 0.0, %v4108
    %v4110 = vpop.f32.mrb[0].mxu0
    %4111 = vmatprep.mubr.bf16.mxu0 0
    %4112 = vmatmul.mubr.bf16.gmra.mrb[0].mxu0 %v4046
    %v4113 = vpop.f32.mrb[0].mxu0
    %v4114 = vadd.f32 0.0, %v4113
    %v4115 = vpop.f32.mrb[0].mxu0
    %v4116 = vpop.f32.mrb[0].mxu0
    %v4117 = vadd.f32 0.0, %v4116
    %v4118 = vpop.f32.mrb[0].mxu0
    %4119 = vmatprep.mubr.bf16.mxu0 0
    %4120 = vmatmul.mubr.bf16.gmra.mrb[0].mxu0 %v4049
    %v4121 = vpop.f32.mrb[0].mxu0
    %v4122 = vadd.f32 0.0, %v4121
    %v4123 = vpop.f32.mrb[0].mxu0
    %v4124 = vpop.f32.mrb[0].mxu0
    %v4125 = vadd.f32 0.0, %v4124
    %v4126 = vpop.f32.mrb[0].mxu0
    %4127 = vdwg.mxu0
    %v4128 = vsel %vm1078, %v4098, -inf
    %4129 = vmax.xlane.f32.xlu0 %v4128
    %v4130 = vpop.xlane.xlu0 %4129
    %v4131 = vsel %vm1078, %v4101, -inf
    %4132 = vmax.xlane.f32.xlu0 %v4131
    %v4133 = vpop.xlane.xlu0 %4132
    %v4134 = vsel %vm1078, %v4106, -inf
    %4135 = vmax.xlane.f32.xlu0 %v4134
    %v4136 = vpop.xlane.xlu0 %4135
    %v4137 = vsel %vm1078, %v4109, -inf
    %4138 = vmax.xlane.f32.xlu0 %v4137
    %v4139 = vpop.xlane.xlu0 %4138
    %v4140 = vsel %vm1078, %v4114, -inf
    %4141 = vmax.xlane.f32.xlu0 %v4140
    %v4142 = vpop.xlane.xlu0 %4141
    %v4143 = vsel %vm1078, %v4117, -inf
    %4144 = vmax.xlane.f32.xlu0 %v4143
    %v4145 = vpop.xlane.xlu0 %4144
    %v4146 = vsel %vm1078, %v4122, -inf
    %4147 = vmax.xlane.f32.xlu0 %v4146
    %v4148 = vpop.xlane.xlu0 %4147
    %v4149 = vsel %vm1078, %v4125, -inf
    %4150 = vmax.xlane.f32.xlu0 %v4149
    %v4151 = vpop.xlane.xlu0 %4150
    %v4152 = vsub.f32 %v4098, %v4130
    %v4153 = vsub.f32 %v4101, %v4133
    %v4154 = vsub.f32 %v4106, %v4136
    %v4155 = vsub.f32 %v4109, %v4139
    %v4156 = vsub.f32 %v4114, %v4142
    %v4157 = vsub.f32 %v4117, %v4145
    %v4158 = vsub.f32 %v4122, %v4148
    %v4159 = vsub.f32 %v4125, %v4151
    %v4160 = vmul.f32 %v4152, 1.442695
    %v4161 = vpow.pop %v4160
    %v4162 = vmul.f32 %v4153, 1.442695
    %v4163 = vpow.pop %v4162
    %v4164 = vmul.f32 %v4154, 1.442695
    %v4165 = vpow.pop %v4164
    %v4166 = vmul.f32 %v4155, 1.442695
    %v4167 = vpow.pop %v4166
    %v4168 = vmul.f32 %v4156, 1.442695
    %v4169 = vpow.pop %v4168
    %v4170 = vmul.f32 %v4157, 1.442695
    %v4171 = vpow.pop %v4170
    %v4172 = vmul.f32 %v4158, 1.442695
    %v4173 = vpow.pop %v4172
    %v4174 = vmul.f32 %v4159, 1.442695
    %v4175 = vpow.pop %v4174
    %v4176 = vsel %vm1078, %v4161, 0.0
    %4177 = vadd.xlane.f32.xlu0 %v4176
    %v4178 = vpop.xlane.xlu0 %4177
    %v4179 = vsel %vm1078, %v4163, 0.0
    %4180 = vadd.xlane.f32.xlu0 %v4179
    %v4181 = vpop.xlane.xlu0 %4180
    %v4182 = vsel %vm1078, %v4165, 0.0
    %4183 = vadd.xlane.f32.xlu0 %v4182
    %v4184 = vpop.xlane.xlu0 %4183
    %v4185 = vsel %vm1078, %v4167, 0.0
    %4186 = vadd.xlane.f32.xlu0 %v4185
    %v4187 = vpop.xlane.xlu0 %4186
    %v4188 = vsel %vm1078, %v4169, 0.0
    %4189 = vadd.xlane.f32.xlu0 %v4188
    %v4190 = vpop.xlane.xlu0 %4189
    %v4191 = vsel %vm1078, %v4171, 0.0
    %4192 = vadd.xlane.f32.xlu0 %v4191
    %v4193 = vpop.xlane.xlu0 %4192
    %v4194 = vsel %vm1078, %v4173, 0.0
    %4195 = vadd.xlane.f32.xlu0 %v4194
    %v4196 = vpop.xlane.xlu0 %4195
    %v4197 = vsel %vm1078, %v4175, 0.0
    %4198 = vadd.xlane.f32.xlu0 %v4197
    %v4199 = vpop.xlane.xlu0 %4198
    %v4200 = vrcp.pop %v4178
    %v4201 = vrcp.pop %v4181
    %v4202 = vrcp.pop %v4184
    %v4203 = vrcp.pop %v4187
    %v4204 = vrcp.pop %v4190
    %v4205 = vrcp.pop %v4193
    %v4206 = vrcp.pop %v4196
    %v4207 = vrcp.pop %v4199
    %v4208 = vmul.f32 %v4161, %v4200
    %v4209 = vmul.f32 %v4163, %v4201
    %v4210 = vmul.f32 %v4165, %v4202
    %v4211 = vmul.f32 %v4167, %v4203
    %v4212 = vmul.f32 %v4169, %v4204
    %v4213 = vmul.f32 %v4171, %v4205
    %v4214 = vmul.f32 %v4173, %v4206
    %v4215 = vmul.f32 %v4175, %v4207
    %v4216 = vpack.c.bf16 %v4209, %v4208
    %v4217 = vpack.c.bf16 %v4211, %v4210
    %v4218 = vpack.c.bf16 %v4213, %v4212
    %v4219 = vpack.c.bf16 %v4215, %v4214
    %v4221 = vsel %vm1078, %v4216, 0
    %v4224 = vsel %vm1078, %v4217, 0
    %v4227 = vsel %vm1078, %v4218, 0
    %v4230 = vsel %vm1078, %v4219, 0
    %4232 = vmatprep.subr.bf16.mxu0 0
    %4233 = vmatpush1.bf16.msra.mxu0 %v4035
    %4234 = vmatprep.subr.bf16.mxu0 0
    %4235 = vmatpush1.bf16.msra.mxu0 %v4036
    %4236 = vmatprep.subr.bf16.mxu0 0
    %4237 = vmatpush1.bf16.msra.mxu0 %v4037
    %4238 = vmatprep.subr.bf16.mxu0 0
    %4239 = vmatpush1.bf16.msra.mxu0 %v4038
    %4240 = vmatprep.subr.bf16.mxu0 0
    %4241 = vmatpush1.bf16.msra.mxu0 0
    %4242 = vmatprep.subr.bf16.mxu0 0
    %4243 = vmatpush1.bf16.msra.mxu0 0
    %4244 = vmatprep.subr.bf16.mxu0 0
    %4245 = vmatpush1.bf16.msra.mxu0 0
    %4246 = vmatprep.subr.bf16.mxu0 0
    %4247 = vmatpush1.bf16.msra.mxu0 0
    %4248 = vmatprep.subr.bf16.mxu0 0
    %4249 = vmatpush1.bf16.msra.mxu0 0
    %4250 = vmatprep.subr.bf16.mxu0 0
    %4251 = vmatpush1.bf16.msra.mxu0 0
    %4252 = vmatprep.subr.bf16.mxu0 0
    %4253 = vmatpush1.bf16.msra.mxu0 0
    %4254 = vmatprep.subr.bf16.mxu0 0
    %4255 = vmatpush1.bf16.msra.mxu0 0
    %4256 = vmatprep.subr.bf16.mxu0 0
    %4257 = vmatpush1.bf16.msra.mxu0 0
    %4258 = vmatprep.subr.bf16.mxu0 0
    %4259 = vmatpush1.bf16.msra.mxu0 0
    %4260 = vmatprep.subr.bf16.mxu0 0
    %4261 = vmatpush1.bf16.msra.mxu0 0
    %4262 = vmatprep.subr.bf16.mxu0 0
    %4263 = vmatpush1.bf16.msra.mxu0 0
    %4264 = vmatprep.mubr.bf16.mxu0 0
    %4265 = vmatmul.mubr.bf16.gmra.mrb[0].mxu0 %v4221
    %v4266 = vpop.f32.mrb[0].mxu0
    %v4267 = vadd.f32 0.0, %v4266
    %v4268 = vpop.f32.mrb[0].mxu0
    %v4269 = vpop.f32.mrb[0].mxu0
    %v4270 = vadd.f32 0.0, %v4269
    %v4271 = vpop.f32.mrb[0].mxu0
    %4272 = vmatprep.mubr.bf16.mxu0 0
    %4273 = vmatmul.mubr.bf16.gmra.mrb[0].mxu0 %v4224
    %v4274 = vpop.f32.mrb[0].mxu0
    %v4275 = vadd.f32 0.0, %v4274
    %v4276 = vpop.f32.mrb[0].mxu0
    %v4277 = vpop.f32.mrb[0].mxu0
    %v4278 = vadd.f32 0.0, %v4277
    %v4279 = vpop.f32.mrb[0].mxu0
    %4280 = vmatprep.mubr.bf16.mxu0 0
    %4281 = vmatmul.mubr.bf16.gmra.mrb[0].mxu0 %v4227
    %v4282 = vpop.f32.mrb[0].mxu0
    %v4283 = vadd.f32 0.0, %v4282
    %v4284 = vpop.f32.mrb[0].mxu0
    %v4285 = vpop.f32.mrb[0].mxu0
    %v4286 = vadd.f32 0.0, %v4285
    %v4287 = vpop.f32.mrb[0].mxu0
    %4288 = vmatprep.mubr.bf16.mxu0 0
    %4289 = vmatmul.mubr.bf16.gmra.mrb[0].mxu0 %v4230
    %v4290 = vpop.f32.mrb[0].mxu0
    %v4291 = vadd.f32 0.0, %v4290
    %v4292 = vpop.f32.mrb[0].mxu0
    %v4293 = vpop.f32.mrb[0].mxu0
    %v4294 = vadd.f32 0.0, %v4293
    %v4295 = vpop.f32.mrb[0].mxu0
    %4296 = vdwg.mxu0
    %v4297 = vpack.c.bf16 %v3774, %v3771
    %v4298 = vpack.c.bf16 %v3782, %v3779
    %v4299 = vpack.c.bf16 %v3790, %v3787
    %v4300 = vpack.c.bf16 %v3798, %v3795
    %v4301 = vpack.c.bf16 %v3887, %v3884
    %v4302 = vpack.c.bf16 %v3895, %v3892
    %v4303 = vpack.c.bf16 %v3903, %v3900
    %v4304 = vpack.c.bf16 %v3911, %v3908
    %v4305 = vpack.c.bf16 %v4000, %v3997
    %v4306 = vpack.c.bf16 %v4008, %v4005
    %v4307 = vpack.c.bf16 %v4016, %v4013
    %v4308 = vpack.c.bf16 %v4024, %v4021
    %v4310 = vsel %vm988, %v4297, 0
    %v4313 = vsel %vm988, %v4298, 0
    %v4316 = vsel %vm988, %v4299, 0
    %v4319 = vsel %vm988, %v4300, 0
    %v4322 = vsel %vm988, %v4301, 0
    %v4325 = vsel %vm988, %v4302, 0
    %v4328 = vsel %vm988, %v4303, 0
    %v4331 = vsel %vm988, %v4304, 0
    %4333 = vmatprep.subr.bf16.mxu0 0
    %4334 = vmatpush1.bf16.xpose.msra.mxu0 %v4322
    %4335 = vmatprep.subr.bf16.mxu0 0
    %4336 = vmatpush1.bf16.xpose.msra.mxu0 %v4325
    %4337 = vmatprep.subr.bf16.mxu0 0
    %4338 = vmatpush1.bf16.xpose.msra.mxu0 %v4328
    %4339 = vmatprep.subr.bf16.mxu0 0
    %4340 = vmatpush1.bf16.xpose.msra.mxu0 %v4331
    %4341 = vmatprep.subr.bf16.mxu0 0
    %4342 = vmatpush1.bf16.xpose.msra.mxu0 0
    %4343 = vmatprep.subr.bf16.mxu0 0
    %4344 = vmatpush1.bf16.xpose.msra.mxu0 0
    %4345 = vmatprep.subr.bf16.mxu0 0
    %4346 = vmatpush1.bf16.xpose.msra.mxu0 0
    %4347 = vmatprep.subr.bf16.mxu0 0
    %4348 = vmatpush1.bf16.xpose.msra.mxu0 0
    %4349 = vmatprep.subr.bf16.mxu0 0
    %4350 = vmatpush1.bf16.xpose.msra.mxu0 0
    %4351 = vmatprep.subr.bf16.mxu0 0
    %4352 = vmatpush1.bf16.xpose.msra.mxu0 0
    %4353 = vmatprep.subr.bf16.mxu0 0
    %4354 = vmatpush1.bf16.xpose.msra.mxu0 0
    %4355 = vmatprep.subr.bf16.mxu0 0
    %4356 = vmatpush1.bf16.xpose.msra.mxu0 0
    %4357 = vmatprep.subr.bf16.mxu0 0
    %4358 = vmatpush1.bf16.xpose.msra.mxu0 0
    %4359 = vmatprep.subr.bf16.mxu0 0
    %4360 = vmatpush1.bf16.xpose.msra.mxu0 0
    %4361 = vmatprep.subr.bf16.mxu0 0
    %4362 = vmatpush1.bf16.xpose.msra.mxu0 0
    %4363 = vmatprep.subr.bf16.mxu0 0
    %4364 = vmatpush1.bf16.xpose.msra.mxu0 0
    %4365 = vmatprep.mubr.bf16.mxu0 0
    %4366 = vmatmul.mubr.bf16.gmra.mrb[0].mxu0 %v4310
    %v4367 = vpop.f32.mrb[0].mxu0
    %v4368 = vadd.f32 0.0, %v4367
    %v4369 = vpop.f32.mrb[0].mxu0
    %v4370 = vpop.f32.mrb[0].mxu0
    %v4371 = vadd.f32 0.0, %v4370
    %v4372 = vpop.f32.mrb[0].mxu0
    %4373 = vmatprep.mubr.bf16.mxu0 0
    %4374 = vmatmul.mubr.bf16.gmra.mrb[0].mxu0 %v4313
    %v4375 = vpop.f32.mrb[0].mxu0
    %v4376 = vadd.f32 0.0, %v4375
    %v4377 = vpop.f32.mrb[0].mxu0
    %v4378 = vpop.f32.mrb[0].mxu0
    %v4379 = vadd.f32 0.0, %v4378
    %v4380 = vpop.f32.mrb[0].mxu0
    %4381 = vmatprep.mubr.bf16.mxu0 0
    %4382 = vmatmul.mubr.bf16.gmra.mrb[0].mxu0 %v4316
    %v4383 = vpop.f32.mrb[0].mxu0
    %v4384 = vadd.f32 0.0, %v4383
    %v4385 = vpop.f32.mrb[0].mxu0
    %v4386 = vpop.f32.mrb[0].mxu0
    %v4387 = vadd.f32 0.0, %v4386
    %v4388 = vpop.f32.mrb[0].mxu0
    %4389 = vmatprep.mubr.bf16.mxu0 0
    %4390 = vmatmul.mubr.bf16.gmra.mrb[0].mxu0 %v4319
    %v4391 = vpop.f32.mrb[0].mxu0
    %v4392 = vadd.f32 0.0, %v4391
    %v4393 = vpop.f32.mrb[0].mxu0
    %v4394 = vpop.f32.mrb[0].mxu0
    %v4395 = vadd.f32 0.0, %v4394
    %v4396 = vpop.f32.mrb[0].mxu0
    %4397 = vdwg.mxu0
    %v4398 = vsel %vm1078, %v4368, -inf
    %4399 = vmax.xlane.f32.xlu0 %v4398
    %v4400 = vpop.xlane.xlu0 %4399
    %v4401 = vsel %vm1078, %v4371, -inf
    %4402 = vmax.xlane.f32.xlu0 %v4401
    %v4403 = vpop.xlane.xlu0 %4402
    %v4404 = vsel %vm1078, %v4376, -inf
    %4405 = vmax.xlane.f32.xlu0 %v4404
    %v4406 = vpop.xlane.xlu0 %4405
    %v4407 = vsel %vm1078, %v4379, -inf
    %4408 = vmax.xlane.f32.xlu0 %v4407
    %v4409 = vpop.xlane.xlu0 %4408
    %v4410 = vsel %vm1078, %v4384, -inf
    %4411 = vmax.xlane.f32.xlu0 %v4410
    %v4412 = vpop.xlane.xlu0 %4411
    %v4413 = vsel %vm1078, %v4387, -inf
    %4414 = vmax.xlane.f32.xlu0 %v4413
    %v4415 = vpop.xlane.xlu0 %4414
    %v4416 = vsel %vm1078, %v4392, -inf
    %4417 = vmax.xlane.f32.xlu0 %v4416
    %v4418 = vpop.xlane.xlu0 %4417
    %v4419 = vsel %vm1078, %v4395, -inf
    %4420 = vmax.xlane.f32.xlu0 %v4419
    %v4421 = vpop.xlane.xlu0 %4420
    %v4422 = vsub.f32 %v4368, %v4400
    %v4423 = vsub.f32 %v4371, %v4403
    %v4424 = vsub.f32 %v4376, %v4406
    %v4425 = vsub.f32 %v4379, %v4409
    %v4426 = vsub.f32 %v4384, %v4412
    %v4427 = vsub.f32 %v4387, %v4415
    %v4428 = vsub.f32 %v4392, %v4418
    %v4429 = vsub.f32 %v4395, %v4421
    %v4430 = vmul.f32 %v4422, 1.442695
    %v4431 = vpow.pop %v4430
    %v4432 = vmul.f32 %v4423, 1.442695
    %v4433 = vpow.pop %v4432
    %v4434 = vmul.f32 %v4424, 1.442695
    %v4435 = vpow.pop %v4434
    %v4436 = vmul.f32 %v4425, 1.442695
    %v4437 = vpow.pop %v4436
    %v4438 = vmul.f32 %v4426, 1.442695
    %v4439 = vpow.pop %v4438
    %v4440 = vmul.f32 %v4427, 1.442695
    %v4441 = vpow.pop %v4440
    %v4442 = vmul.f32 %v4428, 1.442695
    %v4443 = vpow.pop %v4442
    %v4444 = vmul.f32 %v4429, 1.442695
    %v4445 = vpow.pop %v4444
    %v4446 = vsel %vm1078, %v4431, 0.0
    %4447 = vadd.xlane.f32.xlu0 %v4446
    %v4448 = vpop.xlane.xlu0 %4447
    %v4449 = vsel %vm1078, %v4433, 0.0
    %4450 = vadd.xlane.f32.xlu0 %v4449
    %v4451 = vpop.xlane.xlu0 %4450
    %v4452 = vsel %vm1078, %v4435, 0.0
    %4453 = vadd.xlane.f32.xlu0 %v4452
    %v4454 = vpop.xlane.xlu0 %4453
    %v4455 = vsel %vm1078, %v4437, 0.0
    %4456 = vadd.xlane.f32.xlu0 %v4455
    %v4457 = vpop.xlane.xlu0 %4456
    %v4458 = vsel %vm1078, %v4439, 0.0
    %4459 = vadd.xlane.f32.xlu0 %v4458
    %v4460 = vpop.xlane.xlu0 %4459
    %v4461 = vsel %vm1078, %v4441, 0.0
    %4462 = vadd.xlane.f32.xlu0 %v4461
    %v4463 = vpop.xlane.xlu0 %4462
    %v4464 = vsel %vm1078, %v4443, 0.0
    %4465 = vadd.xlane.f32.xlu0 %v4464
    %v4466 = vpop.xlane.xlu0 %4465
    %v4467 = vsel %vm1078, %v4445, 0.0
    %4468 = vadd.xlane.f32.xlu0 %v4467
    %v4469 = vpop.xlane.xlu0 %4468
    %v4470 = vrcp.pop %v4448
    %v4471 = vrcp.pop %v4451
    %v4472 = vrcp.pop %v4454
    %v4473 = vrcp.pop %v4457
    %v4474 = vrcp.pop %v4460
    %v4475 = vrcp.pop %v4463
    %v4476 = vrcp.pop %v4466
    %v4477 = vrcp.pop %v4469
    %v4478 = vmul.f32 %v4431, %v4470
    %v4479 = vmul.f32 %v4433, %v4471
    %v4480 = vmul.f32 %v4435, %v4472
    %v4481 = vmul.f32 %v4437, %v4473
    %v4482 = vmul.f32 %v4439, %v4474
    %v4483 = vmul.f32 %v4441, %v4475
    %v4484 = vmul.f32 %v4443, %v4476
    %v4485 = vmul.f32 %v4445, %v4477
    %v4486 = vpack.c.bf16 %v4479, %v4478
    %v4487 = vpack.c.bf16 %v4481, %v4480
    %v4488 = vpack.c.bf16 %v4483, %v4482
    %v4489 = vpack.c.bf16 %v4485, %v4484
    %v4491 = vsel %vm1078, %v4486, 0
    %v4494 = vsel %vm1078, %v4487, 0
    %v4497 = vsel %vm1078, %v4488, 0
    %v4500 = vsel %vm1078, %v4489, 0
    %4502 = vmatprep.subr.bf16.mxu0 0
    %4503 = vmatpush1.bf16.msra.mxu0 %v4305
    %4504 = vmatprep.subr.bf16.mxu0 0
    %4505 = vmatpush1.bf16.msra.mxu0 %v4306
    %4506 = vmatprep.subr.bf16.mxu0 0
    %4507 = vmatpush1.bf16.msra.mxu0 %v4307
    %4508 = vmatprep.subr.bf16.mxu0 0
    %4509 = vmatpush1.bf16.msra.mxu0 %v4308
    %4510 = vmatprep.subr.bf16.mxu0 0
    %4511 = vmatpush1.bf16.msra.mxu0 0
    %4512 = vmatprep.subr.bf16.mxu0 0
    %4513 = vmatpush1.bf16.msra.mxu0 0
    %4514 = vmatprep.subr.bf16.mxu0 0
    %4515 = vmatpush1.bf16.msra.mxu0 0
    %4516 = vmatprep.subr.bf16.mxu0 0
    %4517 = vmatpush1.bf16.msra.mxu0 0
    %4518 = vmatprep.subr.bf16.mxu0 0
    %4519 = vmatpush1.bf16.msra.mxu0 0
    %4520 = vmatprep.subr.bf16.mxu0 0
    %4521 = vmatpush1.bf16.msra.mxu0 0
    %4522 = vmatprep.subr.bf16.mxu0 0
    %4523 = vmatpush1.bf16.msra.mxu0 0
    %4524 = vmatprep.subr.bf16.mxu0 0
    %4525 = vmatpush1.bf16.msra.mxu0 0
    %4526 = vmatprep.subr.bf16.mxu0 0
    %4527 = vmatpush1.bf16.msra.mxu0 0
    %4528 = vmatprep.subr.bf16.mxu0 0
    %4529 = vmatpush1.bf16.msra.mxu0 0
    %4530 = vmatprep.subr.bf16.mxu0 0
    %4531 = vmatpush1.bf16.msra.mxu0 0
    %4532 = vmatprep.subr.bf16.mxu0 0
    %4533 = vmatpush1.bf16.msra.mxu0 0
    %4534 = vmatprep.mubr.bf16.mxu0 0
    %4535 = vmatmul.mubr.bf16.gmra.mrb[0].mxu0 %v4491
    %v4536 = vpop.f32.mrb[0].mxu0
    %v4537 = vadd.f32 0.0, %v4536
    %v4538 = vpop.f32.mrb[0].mxu0
    %v4539 = vpop.f32.mrb[0].mxu0
    %v4540 = vadd.f32 0.0, %v4539
    %v4541 = vpop.f32.mrb[0].mxu0
    %4542 = vmatprep.mubr.bf16.mxu0 0
    %4543 = vmatmul.mubr.bf16.gmra.mrb[0].mxu0 %v4494
    %v4544 = vpop.f32.mrb[0].mxu0
    %v4545 = vadd.f32 0.0, %v4544
    %v4546 = vpop.f32.mrb[0].mxu0
    %v4547 = vpop.f32.mrb[0].mxu0
    %v4548 = vadd.f32 0.0, %v4547
    %v4549 = vpop.f32.mrb[0].mxu0
    %4550 = vmatprep.mubr.bf16.mxu0 0
    %4551 = vmatmul.mubr.bf16.gmra.mrb[0].mxu0 %v4497
    %v4552 = vpop.f32.mrb[0].mxu0
    %v4553 = vadd.f32 0.0, %v4552
    %v4554 = vpop.f32.mrb[0].mxu0
    %v4555 = vpop.f32.mrb[0].mxu0
    %v4556 = vadd.f32 0.0, %v4555
    %v4557 = vpop.f32.mrb[0].mxu0
    %4558 = vmatprep.mubr.bf16.mxu0 0
    %4559 = vmatmul.mubr.bf16.gmra.mrb[0].mxu0 %v4500
    %v4560 = vpop.f32.mrb[0].mxu0
    %v4561 = vadd.f32 0.0, %v4560
    %v4562 = vpop.f32.mrb[0].mxu0
    %v4563 = vpop.f32.mrb[0].mxu0
    %v4564 = vadd.f32 0.0, %v4563
    %v4565 = vpop.f32.mrb[0].mxu0
    %4566 = vdwg.mxu0
    %v4567 = vpack.c.bf16 %v4270, %v4267
    %v4568 = vpack.c.bf16 %v4278, %v4275
    %v4569 = vpack.c.bf16 %v4286, %v4283
    %v4570 = vpack.c.bf16 %v4294, %v4291
    %v4571 = vpack.c.bf16 %v4540, %v4537
    %v4572 = vpack.c.bf16 %v4548, %v4545
    %v4573 = vpack.c.bf16 %v4556, %v4553
    %v4574 = vpack.c.bf16 %v4564, %v4561
    %v4576 = vsel %vm988, %v4567, 0
    %v4579 = vsel %vm988, %v4568, 0
    %v4582 = vsel %vm988, %v4569, 0
    %v4585 = vsel %vm988, %v4570, 0
    %v4588 = vsel %vm988, %v4571, 0
    %v4591 = vsel %vm988, %v4572, 0
    %v4594 = vsel %vm988, %v4573, 0
    %v4597 = vsel %vm988, %v4574, 0
    %v4600 = vsel %vm252, %v595, 0
    %4602 = vmatprep.subr.bf16.mxu0 0
    %4603 = vmatpush1.bf16.msra.mxu0 %v4600
    %4604 = vmatprep.subr.bf16.mxu0 0
    %4605 = vmatpush1.bf16.msra.mxu0 0
    %4606 = vmatprep.subr.bf16.mxu0 0
    %4607 = vmatpush1.bf16.msra.mxu0 0
    %4608 = vmatprep.subr.bf16.mxu0 0
    %4609 = vmatpush1.bf16.msra.mxu0 0
    %4610 = vmatprep.subr.bf16.mxu0 0
    %4611 = vmatpush1.bf16.msra.mxu0 0
    %4612 = vmatprep.subr.bf16.mxu0 0
    %4613 = vmatpush1.bf16.msra.mxu0 0
    %4614 = vmatprep.subr.bf16.mxu0 0
    %4615 = vmatpush1.bf16.msra.mxu0 0
    %4616 = vmatprep.subr.bf16.mxu0 0
    %4617 = vmatpush1.bf16.msra.mxu0 0
    %4618 = vmatprep.subr.bf16.mxu0 0
    %4619 = vmatpush1.bf16.msra.mxu0 0
    %4620 = vmatprep.subr.bf16.mxu0 0
    %4621 = vmatpush1.bf16.msra.mxu0 0
    %4622 = vmatprep.subr.bf16.mxu0 0
    %4623 = vmatpush1.bf16.msra.mxu0 0
    %4624 = vmatprep.subr.bf16.mxu0 0
    %4625 = vmatpush1.bf16.msra.mxu0 0
    %4626 = vmatprep.subr.bf16.mxu0 0
    %4627 = vmatpush1.bf16.msra.mxu0 0
    %4628 = vmatprep.subr.bf16.mxu0 0
    %4629 = vmatpush1.bf16.msra.mxu0 0
    %4630 = vmatprep.subr.bf16.mxu0 0
    %4631 = vmatpush1.bf16.msra.mxu0 0
    %4632 = vmatprep.subr.bf16.mxu0 0
    %4633 = vmatpush1.bf16.msra.mxu0 0
    %4634 = vmatprep.mubr.bf16.mxu0 0
    %4635 = vmatmul.mubr.bf16.gmra.mrb[0].mxu0 %v4576
    %v4636 = vpop.f32.mrb[0].mxu0
    %v4637 = vadd.f32 0.0, %v4636
    %v4638 = vpop.f32.mrb[0].mxu0
    %v4639 = vpop.f32.mrb[0].mxu0
    %v4640 = vadd.f32 0.0, %v4639
    %v4641 = vpop.f32.mrb[0].mxu0
    %4642 = vmatprep.mubr.bf16.mxu0 0
    %4643 = vmatmul.mubr.bf16.gmra.mrb[0].mxu0 %v4579
    %v4644 = vpop.f32.mrb[0].mxu0
    %v4645 = vadd.f32 0.0, %v4644
    %v4646 = vpop.f32.mrb[0].mxu0
    %v4647 = vpop.f32.mrb[0].mxu0
    %v4648 = vadd.f32 0.0, %v4647
    %v4649 = vpop.f32.mrb[0].mxu0
    %4650 = vmatprep.mubr.bf16.mxu0 0
    %4651 = vmatmul.mubr.bf16.gmra.mrb[0].mxu0 %v4582
    %v4652 = vpop.f32.mrb[0].mxu0
    %v4653 = vadd.f32 0.0, %v4652
    %v4654 = vpop.f32.mrb[0].mxu0
    %v4655 = vpop.f32.mrb[0].mxu0
    %v4656 = vadd.f32 0.0, %v4655
    %v4657 = vpop.f32.mrb[0].mxu0
    %4658 = vmatprep.mubr.bf16.mxu0 0
    %4659 = vmatmul.mubr.bf16.gmra.mrb[0].mxu0 %v4585
    %v4660 = vpop.f32.mrb[0].mxu0
    %v4661 = vadd.f32 0.0, %v4660
    %v4662 = vpop.f32.mrb[0].mxu0
    %v4663 = vpop.f32.mrb[0].mxu0
    %v4664 = vadd.f32 0.0, %v4663
    %v4665 = vpop.f32.mrb[0].mxu0
    %4666 = vmatprep.mubr.bf16.mxu0 0
    %4667 = vmatmul.mubr.bf16.gmra.mrb[0].mxu0 %v4588
    %v4668 = vpop.f32.mrb[0].mxu0
    %v4669 = vadd.f32 0.0, %v4668
    %v4670 = vpop.f32.mrb[0].mxu0
    %v4671 = vpop.f32.mrb[0].mxu0
    %v4672 = vadd.f32 0.0, %v4671
    %v4673 = vpop.f32.mrb[0].mxu0
    %4674 = vmatprep.mubr.bf16.mxu0 0
    %4675 = vmatmul.mubr.bf16.gmra.mrb[0].mxu0 %v4591
    %v4676 = vpop.f32.mrb[0].mxu0
    %v4677 = vadd.f32 0.0, %v4676
    %v4678 = vpop.f32.mrb[0].mxu0
    %v4679 = vpop.f32.mrb[0].mxu0
    %v4680 = vadd.f32 0.0, %v4679
    %v4681 = vpop.f32.mrb[0].mxu0
    %4682 = vmatprep.mubr.bf16.mxu0 0
    %4683 = vmatmul.mubr.bf16.gmra.mrb[0].mxu0 %v4594
    %v4684 = vpop.f32.mrb[0].mxu0
    %v4685 = vadd.f32 0.0, %v4684
    %v4686 = vpop.f32.mrb[0].mxu0
    %v4687 = vpop.f32.mrb[0].mxu0
    %v4688 = vadd.f32 0.0, %v4687
    %v4689 = vpop.f32.mrb[0].mxu0
    %4690 = vmatprep.mubr.bf16.mxu0 0
    %4691 = vmatmul.mubr.bf16.gmra.mrb[0].mxu0 %v4597
    %v4692 = vpop.f32.mrb[0].mxu0
    %v4693 = vadd.f32 0.0, %v4692
    %v4694 = vpop.f32.mrb[0].mxu0
    %v4695 = vpop.f32.mrb[0].mxu0
    %v4696 = vadd.f32 0.0, %v4695
    %v4697 = vpop.f32.mrb[0].mxu0
    %4698 = vdwg.mxu0
    %v4699 = vadd.f32 %v3672, %v4637
    %v4700 = vadd.f32 %v3673, %v4640
    %v4701 = vadd.f32 %v3674, %v4645
    %v4702 = vadd.f32 %v3675, %v4648
    %v4703 = vadd.f32 %v3676, %v4653
    %v4704 = vadd.f32 %v3677, %v4656
    %v4705 = vadd.f32 %v3678, %v4661
    %v4706 = vadd.f32 %v3679, %v4664
    %v4707 = vadd.f32 %v3680, %v4669
    %v4708 = vadd.f32 %v3681, %v4672
    %v4709 = vadd.f32 %v3682, %v4677
    %v4710 = vadd.f32 %v3683, %v4680
    %v4711 = vadd.f32 %v3684, %v4685
    %v4712 = vadd.f32 %v3685, %v4688
    %v4713 = vadd.f32 %v3686, %v4693
    %v4714 = vadd.f32 %v3687, %v4696
    %v4715 = vlaneseq
    %v4716 = vshrl.u32 %v4715, 7
    %v4717 = vsub.s32 0, %v4716
    %v4718 = vrot.slane %v603, %v4717
    %v4719 = vadd.f32 %v4699, %v4718
    %v4720 = vadd.f32 %v4700, %v4718
    %v4721 = vadd.f32 %v4701, %v4718
    %v4722 = vadd.f32 %v4702, %v4718
    %v4723 = vadd.f32 %v4703, %v4718
    %v4724 = vadd.f32 %v4704, %v4718
    %v4725 = vadd.f32 %v4705, %v4718
    %v4726 = vadd.f32 %v4706, %v4718
    %v4727 = vadd.f32 %v4707, %v4718
    %v4728 = vadd.f32 %v4708, %v4718
    %v4729 = vadd.f32 %v4709, %v4718
    %v4730 = vadd.f32 %v4710, %v4718
    %v4731 = vadd.f32 %v4711, %v4718
    %v4732 = vadd.f32 %v4712, %v4718
    %v4733 = vadd.f32 %v4713, %v4718
    %v4734 = vadd.f32 %v4714, %v4718
    %v4735 = vadd.f32 %v518, %v4719
    %v4736 = vadd.f32 %v519, %v4720
    %v4737 = vadd.f32 %v520, %v4721
    %v4738 = vadd.f32 %v521, %v4722
    %v4739 = vadd.f32 %v522, %v4723
    %v4740 = vadd.f32 %v523, %v4724
    %v4741 = vadd.f32 %v524, %v4725
    %v4742 = vadd.f32 %v525, %v4726
    %v4743 = vadd.f32 %v526, %v4727
    %v4744 = vadd.f32 %v527, %v4728
    %v4745 = vadd.f32 %v528, %v4729
    %v4746 = vadd.f32 %v529, %v4730
    %v4747 = vadd.f32 %v530, %v4731
    %v4748 = vadd.f32 %v531, %v4732
    %v4749 = vadd.f32 %v532, %v4733
    %v4750 = vadd.f32 %v533, %v4734
    %v4751 = vsel %vm628, %v4735, 0.0
    %4752 = vadd.xlane.f32.xlu0 %v4751
    %v4753 = vpop.xlane.xlu0 %4752
    %v4754 = vsel %vm628, %v4736, 0.0
    %4755 = vadd.xlane.f32.xlu0 %v4754
    %v4756 = vpop.xlane.xlu0 %4755
    %v4757 = vsel %vm628, %v4737, 0.0
    %4758 = vadd.xlane.f32.xlu0 %v4757
    %v4759 = vpop.xlane.xlu0 %4758
    %v4760 = vsel %vm628, %v4738, 0.0
    %4761 = vadd.xlane.f32.xlu0 %v4760
    %v4762 = vpop.xlane.xlu0 %4761
    %v4763 = vsel %vm628, %v4739, 0.0
    %4764 = vadd.xlane.f32.xlu0 %v4763
    %v4765 = vpop.xlane.xlu0 %4764
    %v4766 = vsel %vm628, %v4740, 0.0
    %4767 = vadd.xlane.f32.xlu0 %v4766
    %v4768 = vpop.xlane.xlu0 %4767
    %v4769 = vsel %vm628, %v4741, 0.0
    %4770 = vadd.xlane.f32.xlu0 %v4769
    %v4771 = vpop.xlane.xlu0 %4770
    %v4772 = vsel %vm628, %v4742, 0.0
    %4773 = vadd.xlane.f32.xlu0 %v4772
    %v4774 = vpop.xlane.xlu0 %4773
    %v4775 = vsel %vm628, %v4743, 0.0
    %4776 = vadd.xlane.f32.xlu0 %v4775
    %v4777 = vpop.xlane.xlu0 %4776
    %v4778 = vsel %vm628, %v4744, 0.0
    %4779 = vadd.xlane.f32.xlu0 %v4778
    %v4780 = vpop.xlane.xlu0 %4779
    %v4781 = vsel %vm628, %v4745, 0.0
    %4782 = vadd.xlane.f32.xlu0 %v4781
    %v4783 = vpop.xlane.xlu0 %4782
    %v4784 = vsel %vm628, %v4746, 0.0
    %4785 = vadd.xlane.f32.xlu0 %v4784
    %v4786 = vpop.xlane.xlu0 %4785
    %v4787 = vsel %vm628, %v4747, 0.0
    %4788 = vadd.xlane.f32.xlu0 %v4787
    %v4789 = vpop.xlane.xlu0 %4788
    %v4790 = vsel %vm628, %v4748, 0.0
    %4791 = vadd.xlane.f32.xlu0 %v4790
    %v4792 = vpop.xlane.xlu0 %4791
    %v4793 = vsel %vm628, %v4749, 0.0
    %4794 = vadd.xlane.f32.xlu0 %v4793
    %v4795 = vpop.xlane.xlu0 %4794
    %v4796 = vsel %vm628, %v4750, 0.0
    %4797 = vadd.xlane.f32.xlu0 %v4796
    %v4798 = vpop.xlane.xlu0 %4797
    %v4799 = vrcp.pop 32.0
    %v4800 = vmul.f32 %v4753, %v4799
    %v4801 = vmul.f32 %v4756, %v4799
    %v4802 = vmul.f32 %v4759, %v4799
    %v4803 = vmul.f32 %v4762, %v4799
    %v4804 = vmul.f32 %v4765, %v4799
    %v4805 = vmul.f32 %v4768, %v4799
    %v4806 = vmul.f32 %v4771, %v4799
    %v4807 = vmul.f32 %v4774, %v4799
    %v4808 = vmul.f32 %v4777, %v4799
    %v4809 = vmul.f32 %v4780, %v4799
    %v4810 = vmul.f32 %v4783, %v4799
    %v4811 = vmul.f32 %v4786, %v4799
    %v4812 = vmul.f32 %v4789, %v4799
    %v4813 = vmul.f32 %v4792, %v4799
    %v4814 = vmul.f32 %v4795, %v4799
    %v4815 = vmul.f32 %v4798, %v4799
    %v4816 = vsub.f32 %v4735, %v4800
    %v4817 = vsub.f32 %v4736, %v4801
    %v4818 = vsub.f32 %v4737, %v4802
    %v4819 = vsub.f32 %v4738, %v4803
    %v4820 = vsub.f32 %v4739, %v4804
    %v4821 = vsub.f32 %v4740, %v4805
    %v4822 = vsub.f32 %v4741, %v4806
    %v4823 = vsub.f32 %v4742, %v4807
    %v4824 = vsub.f32 %v4743, %v4808
    %v4825 = vsub.f32 %v4744, %v4809
    %v4826 = vsub.f32 %v4745, %v4810
    %v4827 = vsub.f32 %v4746, %v4811
    %v4828 = vsub.f32 %v4747, %v4812
    %v4829 = vsub.f32 %v4748, %v4813
    %v4830 = vsub.f32 %v4749, %v4814
    %v4831 = vsub.f32 %v4750, %v4815
    %v4832 = vmul.f32 %v4816, %v4816
    %v4833 = vmul.f32 %v4817, %v4817
    %v4834 = vmul.f32 %v4818, %v4818
    %v4835 = vmul.f32 %v4819, %v4819
    %v4836 = vmul.f32 %v4820, %v4820
    %v4837 = vmul.f32 %v4821, %v4821
    %v4838 = vmul.f32 %v4822, %v4822
    %v4839 = vmul.f32 %v4823, %v4823
    %v4840 = vmul.f32 %v4824, %v4824
    %v4841 = vmul.f32 %v4825, %v4825
    %v4842 = vmul.f32 %v4826, %v4826
    %v4843 = vmul.f32 %v4827, %v4827
    %v4844 = vmul.f32 %v4828, %v4828
    %v4845 = vmul.f32 %v4829, %v4829
    %v4846 = vmul.f32 %v4830, %v4830
    %v4847 = vmul.f32 %v4831, %v4831
    %v4848 = vsel %vm628, %v4832, 0.0
    %4849 = vadd.xlane.f32.xlu0 %v4848
    %v4850 = vpop.xlane.xlu0 %4849
    %v4851 = vsel %vm628, %v4833, 0.0
    %4852 = vadd.xlane.f32.xlu0 %v4851
    %v4853 = vpop.xlane.xlu0 %4852
    %v4854 = vsel %vm628, %v4834, 0.0
    %4855 = vadd.xlane.f32.xlu0 %v4854
    %v4856 = vpop.xlane.xlu0 %4855
    %v4857 = vsel %vm628, %v4835, 0.0
    %4858 = vadd.xlane.f32.xlu0 %v4857
    %v4859 = vpop.xlane.xlu0 %4858
    %v4860 = vsel %vm628, %v4836, 0.0
    %4861 = vadd.xlane.f32.xlu0 %v4860
    %v4862 = vpop.xlane.xlu0 %4861
    %v4863 = vsel %vm628, %v4837, 0.0
    %4864 = vadd.xlane.f32.xlu0 %v4863
    %v4865 = vpop.xlane.xlu0 %4864
    %v4866 = vsel %vm628, %v4838, 0.0
    %4867 = vadd.xlane.f32.xlu0 %v4866
    %v4868 = vpop.xlane.xlu0 %4867
    %v4869 = vsel %vm628, %v4839, 0.0
    %4870 = vadd.xlane.f32.xlu0 %v4869
    %v4871 = vpop.xlane.xlu0 %4870
    %v4872 = vsel %vm628, %v4840, 0.0
    %4873 = vadd.xlane.f32.xlu0 %v4872
    %v4874 = vpop.xlane.xlu0 %4873
    %v4875 = vsel %vm628, %v4841, 0.0
    %4876 = vadd.xlane.f32.xlu0 %v4875
    %v4877 = vpop.xlane.xlu0 %4876
    %v4878 = vsel %vm628, %v4842, 0.0
    %4879 = vadd.xlane.f32.xlu0 %v4878
    %v4880 = vpop.xlane.xlu0 %4879
    %v4881 = vsel %vm628, %v4843, 0.0
    %4882 = vadd.xlane.f32.xlu0 %v4881
    %v4883 = vpop.xlane.xlu0 %4882
    %v4884 = vsel %vm628, %v4844, 0.0
    %4885 = vadd.xlane.f32.xlu0 %v4884
    %v4886 = vpop.xlane.xlu0 %4885
    %v4887 = vsel %vm628, %v4845, 0.0
    %4888 = vadd.xlane.f32.xlu0 %v4887
    %v4889 = vpop.xlane.xlu0 %4888
    %v4890 = vsel %vm628, %v4846, 0.0
    %4891 = vadd.xlane.f32.xlu0 %v4890
    %v4892 = vpop.xlane.xlu0 %4891
    %v4893 = vsel %vm628, %v4847, 0.0
    %4894 = vadd.xlane.f32.xlu0 %v4893
    %v4895 = vpop.xlane.xlu0 %4894
    %v4896 = vmul.f32 %v4850, %v4799
    %v4897 = vmul.f32 %v4853, %v4799
    %v4898 = vmul.f32 %v4856, %v4799
    %v4899 = vmul.f32 %v4859, %v4799
    %v4900 = vmul.f32 %v4862, %v4799
    %v4901 = vmul.f32 %v4865, %v4799
    %v4902 = vmul.f32 %v4868, %v4799
    %v4903 = vmul.f32 %v4871, %v4799
    %v4904 = vmul.f32 %v4874, %v4799
    %v4905 = vmul.f32 %v4877, %v4799
    %v4906 = vmul.f32 %v4880, %v4799
    %v4907 = vmul.f32 %v4883, %v4799
    %v4908 = vmul.f32 %v4886, %v4799
    %v4909 = vmul.f32 %v4889, %v4799
    %v4910 = vmul.f32 %v4892, %v4799
    %v4911 = vmul.f32 %v4895, %v4799
    %v4912 = vadd.f32 %v4896, 1e-05
    %v4913 = vadd.f32 %v4897, 1e-05
    %v4914 = vadd.f32 %v4898, 1e-05
    %v4915 = vadd.f32 %v4899, 1e-05
    %v4916 = vadd.f32 %v4900, 1e-05
    %v4917 = vadd.f32 %v4901, 1e-05
    %v4918 = vadd.f32 %v4902, 1e-05
    %v4919 = vadd.f32 %v4903, 1e-05
    %v4920 = vadd.f32 %v4904, 1e-05
    %v4921 = vadd.f32 %v4905, 1e-05
    %v4922 = vadd.f32 %v4906, 1e-05
    %v4923 = vadd.f32 %v4907, 1e-05
    %v4924 = vadd.f32 %v4908, 1e-05
    %v4925 = vadd.f32 %v4909, 1e-05
    %v4926 = vadd.f32 %v4910, 1e-05
    %v4927 = vadd.f32 %v4911, 1e-05
    %v4928 = vrsqrt.pop %v4912
    %v4929 = vrsqrt.pop %v4913
    %v4930 = vrsqrt.pop %v4914
    %v4931 = vrsqrt.pop %v4915
    %v4932 = vrsqrt.pop %v4916
    %v4933 = vrsqrt.pop %v4917
    %v4934 = vrsqrt.pop %v4918
    %v4935 = vrsqrt.pop %v4919
    %v4936 = vrsqrt.pop %v4920
    %v4937 = vrsqrt.pop %v4921
    %v4938 = vrsqrt.pop %v4922
    %v4939 = vrsqrt.pop %v4923
    %v4940 = vrsqrt.pop %v4924
    %v4941 = vrsqrt.pop %v4925
    %v4942 = vrsqrt.pop %v4926
    %v4943 = vrsqrt.pop %v4927
    %v4944 = vmul.f32 %v4816, %v4928
    %v4945 = vmul.f32 %v4817, %v4929
    %v4946 = vmul.f32 %v4818, %v4930
    %v4947 = vmul.f32 %v4819, %v4931
    %v4948 = vmul.f32 %v4820, %v4932
    %v4949 = vmul.f32 %v4821, %v4933
    %v4950 = vmul.f32 %v4822, %v4934
    %v4951 = vmul.f32 %v4823, %v4935
    %v4952 = vmul.f32 %v4824, %v4936
    %v4953 = vmul.f32 %v4825, %v4937
    %v4954 = vmul.f32 %v4826, %v4938
    %v4955 = vmul.f32 %v4827, %v4939
    %v4956 = vmul.f32 %v4828, %v4940
    %v4957 = vmul.f32 %v4829, %v4941
    %v4958 = vmul.f32 %v4830, %v4942
    %v4959 = vmul.f32 %v4831, %v4943
    %v4960 = vlaneseq
    %v4961 = vshrl.u32 %v4960, 7
    %v4962 = vsub.s32 1, %v4961
    %v4963 = vrot.slane %v603, %v4962
    %v4964 = vmul.f32 %v4944, %v4963
    %v4965 = vmul.f32 %v4945, %v4963
    %v4966 = vmul.f32 %v4946, %v4963
    %v4967 = vmul.f32 %v4947, %v4963
    %v4968 = vmul.f32 %v4948, %v4963
    %v4969 = vmul.f32 %v4949, %v4963
    %v4970 = vmul.f32 %v4950, %v4963
    %v4971 = vmul.f32 %v4951, %v4963
    %v4972 = vmul.f32 %v4952, %v4963
    %v4973 = vmul.f32 %v4953, %v4963
    %v4974 = vmul.f32 %v4954, %v4963
    %v4975 = vmul.f32 %v4955, %v4963
    %v4976 = vmul.f32 %v4956, %v4963
    %v4977 = vmul.f32 %v4957, %v4963
    %v4978 = vmul.f32 %v4958, %v4963
    %v4979 = vmul.f32 %v4959, %v4963
    %v4980 = vlaneseq
    %v4981 = vshrl.u32 %v4980, 7
    %v4982 = vsub.s32 2, %v4981
    %v4983 = vrot.slane %v603, %v4982
    %v4984 = vadd.f32 %v4964, %v4983
    %v4985 = vadd.f32 %v4965, %v4983
    %v4986 = vadd.f32 %v4966, %v4983
    %v4987 = vadd.f32 %v4967, %v4983
    %v4988 = vadd.f32 %v4968, %v4983
    %v4989 = vadd.f32 %v4969, %v4983
    %v4990 = vadd.f32 %v4970, %v4983
    %v4991 = vadd.f32 %v4971, %v4983
    %v4992 = vadd.f32 %v4972, %v4983
    %v4993 = vadd.f32 %v4973, %v4983
    %v4994 = vadd.f32 %v4974, %v4983
    %v4995 = vadd.f32 %v4975, %v4983
    %v4996 = vadd.f32 %v4976, %v4983
    %v4997 = vadd.f32 %v4977, %v4983
    %v4998 = vadd.f32 %v4978, %v4983
    %v4999 = vadd.f32 %v4979, %v4983
    %v5000 = vpack.c.bf16 %v4985, %v4984
    %v5001 = vpack.c.bf16 %v4987, %v4986
    %v5002 = vpack.c.bf16 %v4989, %v4988
    %v5003 = vpack.c.bf16 %v4991, %v4990
    %v5004 = vpack.c.bf16 %v4993, %v4992
    %v5005 = vpack.c.bf16 %v4995, %v4994
    %v5006 = vpack.c.bf16 %v4997, %v4996
    %v5007 = vpack.c.bf16 %v4999, %v4998
    %s5008 = smul.addr %s589, 4
    %s5009 = scalar_lea.vmem %s9, %s5008
    %v5010 = vld [vmem:[%s5009] sm:$0xf]
    %v5011 = vld [vmem:[%s5009 + $0x4] sm:$0xf]
    %v5012 = vld [vmem:[%s5009 + $0x8] sm:$0xf]
    %v5013 = vld [vmem:[%s5009 + $0xc] sm:$0xf]
    %v5014 = vlaneseq
    %v5015 = vshrl.u32 %v5014, 7
    %v5016 = vsub.s32 3, %v5015
    %v5017 = vrot.slane %v603, %v5016
    %v5022 = vunpack.c.l.b16 %v5010
    %v5023 = vunpack.c.l.b16 %v5011
    %v5024 = vunpack.c.l.b16 %v5012
    %v5025 = vunpack.c.l.b16 %v5013
    %v5026 = vpack.c.b16 %v5023, %v5022
    %v5027 = vpack.c.b16 %v5025, %v5024
    %v5031 = vsel %vm628, %v5000, 0
    %v5034 = vsel %vm628, %v5001, 0
    %v5037 = vsel %vm628, %v5002, 0
    %v5040 = vsel %vm628, %v5003, 0
    %v5043 = vsel %vm628, %v5004, 0
    %v5046 = vsel %vm628, %v5005, 0
    %v5049 = vsel %vm628, %v5006, 0
    %v5052 = vsel %vm628, %v5007, 0
    %5054 = vmatprep.subr.bf16.mxu0 0
    %5055 = vmatpush1.bf16.msra.mxu0 %v5026
    %5056 = vmatprep.subr.bf16.mxu0 0
    %5057 = vmatpush1.bf16.msra.mxu0 %v5027
    %5058 = vmatprep.subr.bf16.mxu0 0
    %5059 = vmatpush1.bf16.msra.mxu0 0
    %5060 = vmatprep.subr.bf16.mxu0 0
    %5061 = vmatpush1.bf16.msra.mxu0 0
    %5062 = vmatprep.subr.bf16.mxu0 0
    %5063 = vmatpush1.bf16.msra.mxu0 0
    %5064 = vmatprep.subr.bf16.mxu0 0
    %5065 = vmatpush1.bf16.msra.mxu0 0
    %5066 = vmatprep.subr.bf16.mxu0 0
    %5067 = vmatpush1.bf16.msra.mxu0 0
    %5068 = vmatprep.subr.bf16.mxu0 0
    %5069 = vmatpush1.bf16.msra.mxu0 0
    %5070 = vmatprep.subr.bf16.mxu0 0
    %5071 = vmatpush1.bf16.msra.mxu0 0
    %5072 = vmatprep.subr.bf16.mxu0 0
    %5073 = vmatpush1.bf16.msra.mxu0 0
    %5074 = vmatprep.subr.bf16.mxu0 0
    %5075 = vmatpush1.bf16.msra.mxu0 0
    %5076 = vmatprep.subr.bf16.mxu0 0
    %5077 = vmatpush1.bf16.msra.mxu0 0
    %5078 = vmatprep.subr.bf16.mxu0 0
    %5079 = vmatpush1.bf16.msra.mxu0 0
    %5080 = vmatprep.subr.bf16.mxu0 0
    %5081 = vmatpush1.bf16.msra.mxu0 0
    %5082 = vmatprep.subr.bf16.mxu0 0
    %5083 = vmatpush1.bf16.msra.mxu0 0
    %5084 = vmatprep.subr.bf16.mxu0 0
    %5085 = vmatpush1.bf16.msra.mxu0 0
    %5086 = vmatprep.mubr.bf16.mxu0 0
    %5087 = vmatmul.mubr.bf16.gmra.mrb[0].mxu0 %v5031
    %v5088 = vpop.f32.mrb[0].mxu0
    %v5089 = vadd.f32 %v5017, %v5088
    %v5090 = vpop.f32.mrb[0].mxu0
    %v5091 = vpop.f32.mrb[0].mxu0
    %v5092 = vadd.f32 %v5017, %v5091
    %v5093 = vpop.f32.mrb[0].mxu0
    %5094 = vmatprep.mubr.bf16.mxu0 0
    %5095 = vmatmul.mubr.bf16.gmra.mrb[0].mxu0 %v5034
    %v5096 = vpop.f32.mrb[0].mxu0
    %v5097 = vadd.f32 %v5017, %v5096
    %v5098 = vpop.f32.mrb[0].mxu0
    %v5099 = vpop.f32.mrb[0].mxu0
    %v5100 = vadd.f32 %v5017, %v5099
    %v5101 = vpop.f32.mrb[0].mxu0
    %5102 = vmatprep.mubr.bf16.mxu0 0
    %5103 = vmatmul.mubr.bf16.gmra.mrb[0].mxu0 %v5037
    %v5104 = vpop.f32.mrb[0].mxu0
    %v5105 = vadd.f32 %v5017, %v5104
    %v5106 = vpop.f32.mrb[0].mxu0
    %v5107 = vpop.f32.mrb[0].mxu0
    %v5108 = vadd.f32 %v5017, %v5107
    %v5109 = vpop.f32.mrb[0].mxu0
    %5110 = vmatprep.mubr.bf16.mxu0 0
    %5111 = vmatmul.mubr.bf16.gmra.mrb[0].mxu0 %v5040
    %v5112 = vpop.f32.mrb[0].mxu0
    %v5113 = vadd.f32 %v5017, %v5112
    %v5114 = vpop.f32.mrb[0].mxu0
    %v5115 = vpop.f32.mrb[0].mxu0
    %v5116 = vadd.f32 %v5017, %v5115
    %v5117 = vpop.f32.mrb[0].mxu0
    %5118 = vmatprep.mubr.bf16.mxu0 0
    %5119 = vmatmul.mubr.bf16.gmra.mrb[0].mxu0 %v5043
    %v5120 = vpop.f32.mrb[0].mxu0
    %v5121 = vadd.f32 %v5017, %v5120
    %v5122 = vpop.f32.mrb[0].mxu0
    %v5123 = vpop.f32.mrb[0].mxu0
    %v5124 = vadd.f32 %v5017, %v5123
    %v5125 = vpop.f32.mrb[0].mxu0
    %5126 = vmatprep.mubr.bf16.mxu0 0
    %5127 = vmatmul.mubr.bf16.gmra.mrb[0].mxu0 %v5046
    %v5128 = vpop.f32.mrb[0].mxu0
    %v5129 = vadd.f32 %v5017, %v5128
    %v5130 = vpop.f32.mrb[0].mxu0
    %v5131 = vpop.f32.mrb[0].mxu0
    %v5132 = vadd.f32 %v5017, %v5131
    %v5133 = vpop.f32.mrb[0].mxu0
    %5134 = vmatprep.mubr.bf16.mxu0 0
    %5135 = vmatmul.mubr.bf16.gmra.mrb[0].mxu0 %v5049
    %v5136 = vpop.f32.mrb[0].mxu0
    %v5137 = vadd.f32 %v5017, %v5136
    %v5138 = vpop.f32.mrb[0].mxu0
    %v5139 = vpop.f32.mrb[0].mxu0
    %v5140 = vadd.f32 %v5017, %v5139
    %v5141 = vpop.f32.mrb[0].mxu0
    %5142 = vmatprep.mubr.bf16.mxu0 0
    %5143 = vmatmul.mubr.bf16.gmra.mrb[0].mxu0 %v5052
    %v5144 = vpop.f32.mrb[0].mxu0
    %v5145 = vadd.f32 %v5017, %v5144
    %v5146 = vpop.f32.mrb[0].mxu0
    %v5147 = vpop.f32.mrb[0].mxu0
    %v5148 = vadd.f32 %v5017, %v5147
    %v5149 = vpop.f32.mrb[0].mxu0
    %5150 = vdwg.mxu0
    %v5151 = vmax.f32 %v5089, 0.0
    %v5152 = vmax.f32 %v5092, 0.0
    %v5153 = vmax.f32 %v5097, 0.0
    %v5154 = vmax.f32 %v5100, 0.0
    %v5155 = vmax.f32 %v5105, 0.0
    %v5156 = vmax.f32 %v5108, 0.0
    %v5157 = vmax.f32 %v5113, 0.0
    %v5158 = vmax.f32 %v5116, 0.0
    %v5159 = vmax.f32 %v5121, 0.0
    %v5160 = vmax.f32 %v5124, 0.0
    %v5161 = vmax.f32 %v5129, 0.0
    %v5162 = vmax.f32 %v5132, 0.0
    %v5163 = vmax.f32 %v5137, 0.0
    %v5164 = vmax.f32 %v5140, 0.0
    %v5165 = vmax.f32 %v5145, 0.0
    %v5166 = vmax.f32 %v5148, 0.0
    %v5167 = vpack.c.bf16 %v5152, %v5151
    %v5168 = vpack.c.bf16 %v5154, %v5153
    %v5169 = vpack.c.bf16 %v5156, %v5155
    %v5170 = vpack.c.bf16 %v5158, %v5157
    %v5171 = vpack.c.bf16 %v5160, %v5159
    %v5172 = vpack.c.bf16 %v5162, %v5161
    %v5173 = vpack.c.bf16 %v5164, %v5163
    %v5174 = vpack.c.bf16 %v5166, %v5165
    %s5175 = smul.addr %s601, 4
    %s5176 = scalar_lea.vmem %s10, %s5175
    %v5177 = vld [vmem:[%s5176] sm:$0xf]
    %v5178 = vld [vmem:[%s5176 + $0x4] sm:$0xf]
    %v5179 = vld [vmem:[%s5176 + $0x8] sm:$0xf]
    %v5180 = vld [vmem:[%s5176 + $0xc] sm:$0xf]
    %v5181 = vld [vmem:[%s5176 + $0x10] sm:$0xf]
    %v5182 = vld [vmem:[%s5176 + $0x14] sm:$0xf]
    %v5183 = vld [vmem:[%s5176 + $0x18] sm:$0xf]
    %v5184 = vld [vmem:[%s5176 + $0x1c] sm:$0xf]
    %v5185 = vlaneseq
    %v5186 = vshrl.u32 %v5185, 7
    %v5187 = vsub.s32 4, %v5186
    %v5188 = vrot.slane %v603, %v5187
    %v5197 = vunpack.c.l.b16 %v5177
    %v5198 = vunpack.c.l.b16 %v5178
    %v5199 = vunpack.c.l.b16 %v5179
    %v5200 = vunpack.c.l.b16 %v5180
    %v5201 = vunpack.c.l.b16 %v5181
    %v5202 = vunpack.c.l.b16 %v5182
    %v5203 = vunpack.c.l.b16 %v5183
    %v5204 = vunpack.c.l.b16 %v5184
    %v5205 = vpack.c.b16 %v5198, %v5197
    %v5206 = vpack.c.b16 %v5200, %v5199
    %v5207 = vpack.c.b16 %v5202, %v5201
    %v5208 = vpack.c.b16 %v5204, %v5203
    %v5214 = vsel %vm1078, %v5167, 0
    %v5217 = vsel %vm1078, %v5168, 0
    %v5220 = vsel %vm1078, %v5169, 0
    %v5223 = vsel %vm1078, %v5170, 0
    %v5226 = vsel %vm1078, %v5171, 0
    %v5229 = vsel %vm1078, %v5172, 0
    %v5232 = vsel %vm1078, %v5173, 0
    %v5235 = vsel %vm1078, %v5174, 0
    %5237 = vmatprep.subr.bf16.mxu0 0
    %5238 = vmatpush1.bf16.msra.mxu0 %v5205
    %5239 = vmatprep.subr.bf16.mxu0 0
    %5240 = vmatpush1.bf16.msra.mxu0 %v5206
    %5241 = vmatprep.subr.bf16.mxu0 0
    %5242 = vmatpush1.bf16.msra.mxu0 %v5207
    %5243 = vmatprep.subr.bf16.mxu0 0
    %5244 = vmatpush1.bf16.msra.mxu0 %v5208
    %5245 = vmatprep.subr.bf16.mxu0 0
    %5246 = vmatpush1.bf16.msra.mxu0 0
    %5247 = vmatprep.subr.bf16.mxu0 0
    %5248 = vmatpush1.bf16.msra.mxu0 0
    %5249 = vmatprep.subr.bf16.mxu0 0
    %5250 = vmatpush1.bf16.msra.mxu0 0
    %5251 = vmatprep.subr.bf16.mxu0 0
    %5252 = vmatpush1.bf16.msra.mxu0 0
    %5253 = vmatprep.subr.bf16.mxu0 0
    %5254 = vmatpush1.bf16.msra.mxu0 0
    %5255 = vmatprep.subr.bf16.mxu0 0
    %5256 = vmatpush1.bf16.msra.mxu0 0
    %5257 = vmatprep.subr.bf16.mxu0 0
    %5258 = vmatpush1.bf16.msra.mxu0 0
    %5259 = vmatprep.subr.bf16.mxu0 0
    %5260 = vmatpush1.bf16.msra.mxu0 0
    %5261 = vmatprep.subr.bf16.mxu0 0
    %5262 = vmatpush1.bf16.msra.mxu0 0
    %5263 = vmatprep.subr.bf16.mxu0 0
    %5264 = vmatpush1.bf16.msra.mxu0 0
    %5265 = vmatprep.subr.bf16.mxu0 0
    %5266 = vmatpush1.bf16.msra.mxu0 0
    %5267 = vmatprep.subr.bf16.mxu0 0
    %5268 = vmatpush1.bf16.msra.mxu0 0
    %5269 = vmatprep.mubr.bf16.mxu0 0
    %5270 = vmatmul.mubr.bf16.gmra.mrb[0].mxu0 %v5214
    %v5271 = vpop.f32.mrb[0].mxu0
    %v5272 = vadd.f32 %v5188, %v5271
    %v5273 = vpop.f32.mrb[0].mxu0
    %v5274 = vpop.f32.mrb[0].mxu0
    %v5275 = vadd.f32 %v5188, %v5274
    %v5276 = vpop.f32.mrb[0].mxu0
    %5277 = vmatprep.mubr.bf16.mxu0 0
    %5278 = vmatmul.mubr.bf16.gmra.mrb[0].mxu0 %v5217
    %v5279 = vpop.f32.mrb[0].mxu0
    %v5280 = vadd.f32 %v5188, %v5279
    %v5281 = vpop.f32.mrb[0].mxu0
    %v5282 = vpop.f32.mrb[0].mxu0
    %v5283 = vadd.f32 %v5188, %v5282
    %v5284 = vpop.f32.mrb[0].mxu0
    %5285 = vmatprep.mubr.bf16.mxu0 0
    %5286 = vmatmul.mubr.bf16.gmra.mrb[0].mxu0 %v5220
    %v5287 = vpop.f32.mrb[0].mxu0
    %v5288 = vadd.f32 %v5188, %v5287
    %v5289 = vpop.f32.mrb[0].mxu0
    %v5290 = vpop.f32.mrb[0].mxu0
    %v5291 = vadd.f32 %v5188, %v5290
    %v5292 = vpop.f32.mrb[0].mxu0
    %5293 = vmatprep.mubr.bf16.mxu0 0
    %5294 = vmatmul.mubr.bf16.gmra.mrb[0].mxu0 %v5223
    %v5295 = vpop.f32.mrb[0].mxu0
    %v5296 = vadd.f32 %v5188, %v5295
    %v5297 = vpop.f32.mrb[0].mxu0
    %v5298 = vpop.f32.mrb[0].mxu0
    %v5299 = vadd.f32 %v5188, %v5298
    %v5300 = vpop.f32.mrb[0].mxu0
    %5301 = vmatprep.mubr.bf16.mxu0 0
    %5302 = vmatmul.mubr.bf16.gmra.mrb[0].mxu0 %v5226
    %v5303 = vpop.f32.mrb[0].mxu0
    %v5304 = vadd.f32 %v5188, %v5303
    %v5305 = vpop.f32.mrb[0].mxu0
    %v5306 = vpop.f32.mrb[0].mxu0
    %v5307 = vadd.f32 %v5188, %v5306
    %v5308 = vpop.f32.mrb[0].mxu0
    %5309 = vmatprep.mubr.bf16.mxu0 0
    %5310 = vmatmul.mubr.bf16.gmra.mrb[0].mxu0 %v5229
    %v5311 = vpop.f32.mrb[0].mxu0
    %v5312 = vadd.f32 %v5188, %v5311
    %v5313 = vpop.f32.mrb[0].mxu0
    %v5314 = vpop.f32.mrb[0].mxu0
    %v5315 = vadd.f32 %v5188, %v5314
    %v5316 = vpop.f32.mrb[0].mxu0
    %5317 = vmatprep.mubr.bf16.mxu0 0
    %5318 = vmatmul.mubr.bf16.gmra.mrb[0].mxu0 %v5232
    %v5319 = vpop.f32.mrb[0].mxu0
    %v5320 = vadd.f32 %v5188, %v5319
    %v5321 = vpop.f32.mrb[0].mxu0
    %v5322 = vpop.f32.mrb[0].mxu0
    %v5323 = vadd.f32 %v5188, %v5322
    %v5324 = vpop.f32.mrb[0].mxu0
    %5325 = vmatprep.mubr.bf16.mxu0 0
    %5326 = vmatmul.mubr.bf16.gmra.mrb[0].mxu0 %v5235
    %v5327 = vpop.f32.mrb[0].mxu0
    %v5328 = vadd.f32 %v5188, %v5327
    %v5329 = vpop.f32.mrb[0].mxu0
    %v5330 = vpop.f32.mrb[0].mxu0
    %v5331 = vadd.f32 %v5188, %v5330
    %v5332 = vpop.f32.mrb[0].mxu0
    %5333 = vdwg.mxu0
    %v5334 = vadd.f32 %v4984, %v5272
    %v5335 = vadd.f32 %v4985, %v5275
    %v5336 = vadd.f32 %v4986, %v5280
    %v5337 = vadd.f32 %v4987, %v5283
    %v5338 = vadd.f32 %v4988, %v5288
    %v5339 = vadd.f32 %v4989, %v5291
    %v5340 = vadd.f32 %v4990, %v5296
    %v5341 = vadd.f32 %v4991, %v5299
    %v5342 = vadd.f32 %v4992, %v5304
    %v5343 = vadd.f32 %v4993, %v5307
    %v5344 = vadd.f32 %v4994, %v5312
    %v5345 = vadd.f32 %v4995, %v5315
    %v5346 = vadd.f32 %v4996, %v5320
    %v5347 = vadd.f32 %v4997, %v5323
    %v5348 = vadd.f32 %v4998, %v5328
    %v5349 = vadd.f32 %v4999, %v5331
    %v5350 = vsel %vm628, %v5334, 0.0
    %5351 = vadd.xlane.f32.xlu0 %v5350
    %v5352 = vpop.xlane.xlu0 %5351
    %v5353 = vsel %vm628, %v5335, 0.0
    %5354 = vadd.xlane.f32.xlu0 %v5353
    %v5355 = vpop.xlane.xlu0 %5354
    %v5356 = vsel %vm628, %v5336, 0.0
    %5357 = vadd.xlane.f32.xlu0 %v5356
    %v5358 = vpop.xlane.xlu0 %5357
    %v5359 = vsel %vm628, %v5337, 0.0
    %5360 = vadd.xlane.f32.xlu0 %v5359
    %v5361 = vpop.xlane.xlu0 %5360
    %v5362 = vsel %vm628, %v5338, 0.0
    %5363 = vadd.xlane.f32.xlu0 %v5362
    %v5364 = vpop.xlane.xlu0 %5363
    %v5365 = vsel %vm628, %v5339, 0.0
    %5366 = vadd.xlane.f32.xlu0 %v5365
    %v5367 = vpop.xlane.xlu0 %5366
    %v5368 = vsel %vm628, %v5340, 0.0
    %5369 = vadd.xlane.f32.xlu0 %v5368
    %v5370 = vpop.xlane.xlu0 %5369
    %v5371 = vsel %vm628, %v5341, 0.0
    %5372 = vadd.xlane.f32.xlu0 %v5371
    %v5373 = vpop.xlane.xlu0 %5372
    %v5374 = vsel %vm628, %v5342, 0.0
    %5375 = vadd.xlane.f32.xlu0 %v5374
    %v5376 = vpop.xlane.xlu0 %5375
    %v5377 = vsel %vm628, %v5343, 0.0
    %5378 = vadd.xlane.f32.xlu0 %v5377
    %v5379 = vpop.xlane.xlu0 %5378
    %v5380 = vsel %vm628, %v5344, 0.0
    %5381 = vadd.xlane.f32.xlu0 %v5380
    %v5382 = vpop.xlane.xlu0 %5381
    %v5383 = vsel %vm628, %v5345, 0.0
    %5384 = vadd.xlane.f32.xlu0 %v5383
    %v5385 = vpop.xlane.xlu0 %5384
    %v5386 = vsel %vm628, %v5346, 0.0
    %5387 = vadd.xlane.f32.xlu0 %v5386
    %v5388 = vpop.xlane.xlu0 %5387
    %v5389 = vsel %vm628, %v5347, 0.0
    %5390 = vadd.xlane.f32.xlu0 %v5389
    %v5391 = vpop.xlane.xlu0 %5390
    %v5392 = vsel %vm628, %v5348, 0.0
    %5393 = vadd.xlane.f32.xlu0 %v5392
    %v5394 = vpop.xlane.xlu0 %5393
    %v5395 = vsel %vm628, %v5349, 0.0
    %5396 = vadd.xlane.f32.xlu0 %v5395
    %v5397 = vpop.xlane.xlu0 %5396
    %v5398 = vmul.f32 %v5352, %v4799
    %v5399 = vmul.f32 %v5355, %v4799
    %v5400 = vmul.f32 %v5358, %v4799
    %v5401 = vmul.f32 %v5361, %v4799
    %v5402 = vmul.f32 %v5364, %v4799
    %v5403 = vmul.f32 %v5367, %v4799
    %v5404 = vmul.f32 %v5370, %v4799
    %v5405 = vmul.f32 %v5373, %v4799
    %v5406 = vmul.f32 %v5376, %v4799
    %v5407 = vmul.f32 %v5379, %v4799
    %v5408 = vmul.f32 %v5382, %v4799
    %v5409 = vmul.f32 %v5385, %v4799
    %v5410 = vmul.f32 %v5388, %v4799
    %v5411 = vmul.f32 %v5391, %v4799
    %v5412 = vmul.f32 %v5394, %v4799
    %v5413 = vmul.f32 %v5397, %v4799
    %v5414 = vsub.f32 %v5334, %v5398
    %v5415 = vsub.f32 %v5335, %v5399
    %v5416 = vsub.f32 %v5336, %v5400
    %v5417 = vsub.f32 %v5337, %v5401
    %v5418 = vsub.f32 %v5338, %v5402
    %v5419 = vsub.f32 %v5339, %v5403
    %v5420 = vsub.f32 %v5340, %v5404
    %v5421 = vsub.f32 %v5341, %v5405
    %v5422 = vsub.f32 %v5342, %v5406
    %v5423 = vsub.f32 %v5343, %v5407
    %v5424 = vsub.f32 %v5344, %v5408
    %v5425 = vsub.f32 %v5345, %v5409
    %v5426 = vsub.f32 %v5346, %v5410
    %v5427 = vsub.f32 %v5347, %v5411
    %v5428 = vsub.f32 %v5348, %v5412
    %v5429 = vsub.f32 %v5349, %v5413
    %v5430 = vmul.f32 %v5414, %v5414
    %v5431 = vmul.f32 %v5415, %v5415
    %v5432 = vmul.f32 %v5416, %v5416
    %v5433 = vmul.f32 %v5417, %v5417
    %v5434 = vmul.f32 %v5418, %v5418
    %v5435 = vmul.f32 %v5419, %v5419
    %v5436 = vmul.f32 %v5420, %v5420
    %v5437 = vmul.f32 %v5421, %v5421
    %v5438 = vmul.f32 %v5422, %v5422
    %v5439 = vmul.f32 %v5423, %v5423
    %v5440 = vmul.f32 %v5424, %v5424
    %v5441 = vmul.f32 %v5425, %v5425
    %v5442 = vmul.f32 %v5426, %v5426
    %v5443 = vmul.f32 %v5427, %v5427
    %v5444 = vmul.f32 %v5428, %v5428
    %v5445 = vmul.f32 %v5429, %v5429
    %v5446 = vsel %vm628, %v5430, 0.0
    %5447 = vadd.xlane.f32.xlu0 %v5446
    %v5448 = vpop.xlane.xlu0 %5447
    %v5449 = vsel %vm628, %v5431, 0.0
    %5450 = vadd.xlane.f32.xlu0 %v5449
    %v5451 = vpop.xlane.xlu0 %5450
    %v5452 = vsel %vm628, %v5432, 0.0
    %5453 = vadd.xlane.f32.xlu0 %v5452
    %v5454 = vpop.xlane.xlu0 %5453
    %v5455 = vsel %vm628, %v5433, 0.0
    %5456 = vadd.xlane.f32.xlu0 %v5455
    %v5457 = vpop.xlane.xlu0 %5456
    %v5458 = vsel %vm628, %v5434, 0.0
    %5459 = vadd.xlane.f32.xlu0 %v5458
    %v5460 = vpop.xlane.xlu0 %5459
    %v5461 = vsel %vm628, %v5435, 0.0
    %5462 = vadd.xlane.f32.xlu0 %v5461
    %v5463 = vpop.xlane.xlu0 %5462
    %v5464 = vsel %vm628, %v5436, 0.0
    %5465 = vadd.xlane.f32.xlu0 %v5464
    %v5466 = vpop.xlane.xlu0 %5465
    %v5467 = vsel %vm628, %v5437, 0.0
    %5468 = vadd.xlane.f32.xlu0 %v5467
    %v5469 = vpop.xlane.xlu0 %5468
    %v5470 = vsel %vm628, %v5438, 0.0
    %5471 = vadd.xlane.f32.xlu0 %v5470
    %v5472 = vpop.xlane.xlu0 %5471
    %v5473 = vsel %vm628, %v5439, 0.0
    %5474 = vadd.xlane.f32.xlu0 %v5473
    %v5475 = vpop.xlane.xlu0 %5474
    %v5476 = vsel %vm628, %v5440, 0.0
    %5477 = vadd.xlane.f32.xlu0 %v5476
    %v5478 = vpop.xlane.xlu0 %5477
    %v5479 = vsel %vm628, %v5441, 0.0
    %5480 = vadd.xlane.f32.xlu0 %v5479
    %v5481 = vpop.xlane.xlu0 %5480
    %v5482 = vsel %vm628, %v5442, 0.0
    %5483 = vadd.xlane.f32.xlu0 %v5482
    %v5484 = vpop.xlane.xlu0 %5483
    %v5485 = vsel %vm628, %v5443, 0.0
    %5486 = vadd.xlane.f32.xlu0 %v5485
    %v5487 = vpop.xlane.xlu0 %5486
    %v5488 = vsel %vm628, %v5444, 0.0
    %5489 = vadd.xlane.f32.xlu0 %v5488
    %v5490 = vpop.xlane.xlu0 %5489
    %v5491 = vsel %vm628, %v5445, 0.0
    %5492 = vadd.xlane.f32.xlu0 %v5491
    %v5493 = vpop.xlane.xlu0 %5492
    %v5494 = vmul.f32 %v5448, %v4799
    %v5495 = vmul.f32 %v5451, %v4799
    %v5496 = vmul.f32 %v5454, %v4799
    %v5497 = vmul.f32 %v5457, %v4799
    %v5498 = vmul.f32 %v5460, %v4799
    %v5499 = vmul.f32 %v5463, %v4799
    %v5500 = vmul.f32 %v5466, %v4799
    %v5501 = vmul.f32 %v5469, %v4799
    %v5502 = vmul.f32 %v5472, %v4799
    %v5503 = vmul.f32 %v5475, %v4799
    %v5504 = vmul.f32 %v5478, %v4799
    %v5505 = vmul.f32 %v5481, %v4799
    %v5506 = vmul.f32 %v5484, %v4799
    %v5507 = vmul.f32 %v5487, %v4799
    %v5508 = vmul.f32 %v5490, %v4799
    %v5509 = vmul.f32 %v5493, %v4799
    %v5510 = vadd.f32 %v5494, 1e-05
    %v5511 = vadd.f32 %v5495, 1e-05
    %v5512 = vadd.f32 %v5496, 1e-05
    %v5513 = vadd.f32 %v5497, 1e-05
    %v5514 = vadd.f32 %v5498, 1e-05
    %v5515 = vadd.f32 %v5499, 1e-05
    %v5516 = vadd.f32 %v5500, 1e-05
    %v5517 = vadd.f32 %v5501, 1e-05
    %v5518 = vadd.f32 %v5502, 1e-05
    %v5519 = vadd.f32 %v5503, 1e-05
    %v5520 = vadd.f32 %v5504, 1e-05
    %v5521 = vadd.f32 %v5505, 1e-05
    %v5522 = vadd.f32 %v5506, 1e-05
    %v5523 = vadd.f32 %v5507, 1e-05
    %v5524 = vadd.f32 %v5508, 1e-05
    %v5525 = vadd.f32 %v5509, 1e-05
    %v5526 = vrsqrt.pop %v5510
    %v5527 = vrsqrt.pop %v5511
    %v5528 = vrsqrt.pop %v5512
    %v5529 = vrsqrt.pop %v5513
    %v5530 = vrsqrt.pop %v5514
    %v5531 = vrsqrt.pop %v5515
    %v5532 = vrsqrt.pop %v5516
    %v5533 = vrsqrt.pop %v5517
    %v5534 = vrsqrt.pop %v5518
    %v5535 = vrsqrt.pop %v5519
    %v5536 = vrsqrt.pop %v5520
    %v5537 = vrsqrt.pop %v5521
    %v5538 = vrsqrt.pop %v5522
    %v5539 = vrsqrt.pop %v5523
    %v5540 = vrsqrt.pop %v5524
    %v5541 = vrsqrt.pop %v5525
    %v5542 = vmul.f32 %v5414, %v5526
    %v5543 = vmul.f32 %v5415, %v5527
    %v5544 = vmul.f32 %v5416, %v5528
    %v5545 = vmul.f32 %v5417, %v5529
    %v5546 = vmul.f32 %v5418, %v5530
    %v5547 = vmul.f32 %v5419, %v5531
    %v5548 = vmul.f32 %v5420, %v5532
    %v5549 = vmul.f32 %v5421, %v5533
    %v5550 = vmul.f32 %v5422, %v5534
    %v5551 = vmul.f32 %v5423, %v5535
    %v5552 = vmul.f32 %v5424, %v5536
    %v5553 = vmul.f32 %v5425, %v5537
    %v5554 = vmul.f32 %v5426, %v5538
    %v5555 = vmul.f32 %v5427, %v5539
    %v5556 = vmul.f32 %v5428, %v5540
    %v5557 = vmul.f32 %v5429, %v5541
    %v5558 = vlaneseq
    %v5559 = vshrl.u32 %v5558, 7
    %v5560 = vsub.s32 5, %v5559
    %v5561 = vrot.slane %v603, %v5560
    %v5562 = vmul.f32 %v5542, %v5561
    %v5563 = vmul.f32 %v5543, %v5561
    %v5564 = vmul.f32 %v5544, %v5561
    %v5565 = vmul.f32 %v5545, %v5561
    %v5566 = vmul.f32 %v5546, %v5561
    %v5567 = vmul.f32 %v5547, %v5561
    %v5568 = vmul.f32 %v5548, %v5561
    %v5569 = vmul.f32 %v5549, %v5561
    %v5570 = vmul.f32 %v5550, %v5561
    %v5571 = vmul.f32 %v5551, %v5561
    %v5572 = vmul.f32 %v5552, %v5561
    %v5573 = vmul.f32 %v5553, %v5561
    %v5574 = vmul.f32 %v5554, %v5561
    %v5575 = vmul.f32 %v5555, %v5561
    %v5576 = vmul.f32 %v5556, %v5561
    %v5577 = vmul.f32 %v5557, %v5561
    %v5578 = vlaneseq
    %v5579 = vshrl.u32 %v5578, 7
    %v5580 = vsub.s32 6, %v5579
    %v5581 = vrot.slane %v603, %v5580
    %v5582 = vadd.f32 %v5562, %v5581
    %v5583 = vadd.f32 %v5563, %v5581
    %v5584 = vadd.f32 %v5564, %v5581
    %v5585 = vadd.f32 %v5565, %v5581
    %v5586 = vadd.f32 %v5566, %v5581
    %v5587 = vadd.f32 %v5567, %v5581
    %v5588 = vadd.f32 %v5568, %v5581
    %v5589 = vadd.f32 %v5569, %v5581
    %v5590 = vadd.f32 %v5570, %v5581
    %v5591 = vadd.f32 %v5571, %v5581
    %v5592 = vadd.f32 %v5572, %v5581
    %v5593 = vadd.f32 %v5573, %v5581
    %v5594 = vadd.f32 %v5574, %v5581
    %v5595 = vadd.f32 %v5575, %v5581
    %v5596 = vadd.f32 %v5576, %v5581
    %v5597 = vadd.f32 %v5577, %v5581
  $region54: #{transformer_encoder_forward.1} parent=0 // loop_footer
    %s517 = sadd.s32 1, %s513
  $region55: #{transformer_encoder_forward.1} parent=0 // loop_footer_branch
    %512 = sbr.rel target = $region51
  $region56: #{transformer_encoder_forward.1} parent=0 // loop_exit
    _
  %5598 = vxpose.xlu0.b32.start [1/16] %v518, 128
  %5599 = vxpose.xlu0.b32.cont [2/16] %v519, 128
  %5600 = vxpose.xlu0.b32.cont [3/16] %v520, 128
  %5601 = vxpose.xlu0.b32.cont [4/16] %v521, 128
  %5602 = vxpose.xlu0.b32.cont [5/16] %v522, 128
  %5603 = vxpose.xlu0.b32.cont [6/16] %v523, 128
  %5604 = vxpose.xlu0.b32.cont [7/16] %v524, 128
  %5605 = vxpose.xlu0.b32.cont [8/16] %v525, 128
  %5606 = vxpose.xlu0.b32.cont [9/16] %v526, 128
  %5607 = vxpose.xlu0.b32.cont [10/16] %v527, 128
  %5608 = vxpose.xlu0.b32.cont [11/16] %v528, 128
  %5609 = vxpose.xlu0.b32.cont [12/16] %v529, 128
  %5610 = vxpose.xlu0.b32.cont [13/16] %v530, 128
  %5611 = vxpose.xlu0.b32.cont [14/16] %v531, 128
  %5612 = vxpose.xlu0.b32.cont [15/16] %v532, 128
  %5613 = vxpose.xlu0.b32.end [16/16] %v533, 128
  %v5614 = vpop.trf.xlu0
  %v5615 = vpop.trf.xlu0
  %v5616 = vpop.trf.xlu0
  %v5617 = vpop.trf.xlu0
  %v5618 = vpop.trf.xlu0
  %v5619 = vpop.trf.xlu0
  %v5620 = vpop.trf.xlu0
  %v5621 = vpop.trf.xlu0
  %v5622 = vpop.trf.xlu0
  %v5623 = vpop.trf.xlu0
  %v5624 = vpop.trf.xlu0
  %v5625 = vpop.trf.xlu0
  %v5626 = vpop.trf.xlu0
  %v5627 = vpop.trf.xlu0
  %v5628 = vpop.trf.xlu0
  %v5629 = vpop.trf.xlu0
  %5630 = vst [vmem:[%s12] sm:$0xff] %v5614
  %5631 = vst [vmem:[%s12 + $0x8] sm:$0xff] %v5615
  %5632 = vst [vmem:[%s12 + $0x10] sm:$0xff] %v5616
  %5633 = vst [vmem:[%s12 + $0x18] sm:$0xff] %v5617
  // Predicated region
  $region57: #{transformer_encoder_forward.1} parent=0 // pred_check
    _
  $region58: #{transformer_encoder_forward.1} parent=0 // pred_check_branch
    %5635 = sbr.rel (0) target = $region60
  $region59: #{transformer_encoder_forward.1} parent=0 // pred_region
    _
  $region60: #{transformer_encoder_forward.1} parent=0 // pred_fallthru
    _
  // Predicated region
  $region61: #{transformer_encoder_forward.1} parent=0 // pred_check
    _
  $region62: #{transformer_encoder_forward.1} parent=0 // pred_check_branch
    %5637 = sbr.rel (0) target = $region64
  $region63: #{transformer_encoder_forward.1} parent=0 // pred_region
    _
  $region64: #{transformer_encoder_forward.1} parent=0 // pred_fallthru
    _

</llo_original>
